<compile_context>
chip_gen: v7x
topology: tpu7x:2x2x1
jax: 0.10.0
libtpu: 0.0.40
codegen_flags: <defaults>
</compile_context>

<pallas_src>
import jax
import jax.numpy as jnp
from jax import lax
from jax.experimental import pallas as pl
from jax.experimental.pallas import tpu as pltpu

EMBED_DIM = 32
NUM_HEADS = 4
HEAD_DIM = EMBED_DIM // NUM_HEADS
LN_EPS = 1e-5

# Row indices of the packed (7, 1, E) per-token vector operand.
_BQ, _BK, _BV, _G1, _B1, _G2, _B2 = range(7)

# dot_general dimension numbers.
_NN = (((1,), (0,)), ((), ()))   # plain matmul
_NT = (((1,), (1,)), ((), ()))   # contract last dims ("rhs transposed")


# ----------------------------------------------------------------------------
# Fused kernel: QKV + per-head attention + buggy flatten + merge + LN1 + MLP
#               + LN2 + residual, one batch element per grid step.
# ----------------------------------------------------------------------------
def _fused_mhsa_kernel(x_ref, s_cn_ref, wq_ref, wkv_ref, wm_ref,
                       w1_ref, w2_ref, vec_ref, out_ref):
    E, H, D = EMBED_DIM, NUM_HEADS, HEAD_DIM
    f32 = jnp.float32
    n = x_ref.shape[1]
    B = n // H                      # rows per head-band of the buggy flatten

    x_seq = x_ref[0]                # (n, E)  token-major x
    s_cn = s_cn_ref[0]              # (E, n)  channel-major source (raw NCHW view)

    # Fold the NCHW -> (n, E) permute of `source` into the kernel: transpose
    # the VMEM tile on the MXU via an identity NT-matmul (no XLU relayout, no
    # wrapper-side XLA transpose + HBM round trip for source).
    eye_n = (lax.broadcasted_iota(jnp.int32, (n, n), 0) ==
             lax.broadcasted_iota(jnp.int32, (n, n), 1)).astype(f32)
    s_seq = lax.dot_general(eye_n, s_cn, _NT, preferred_element_type=f32)  # (n, E)

    # Projections: weights pre-transposed in the wrapper, K/V weights stacked.
    q = jnp.dot(x_seq, wq_ref[...], preferred_element_type=f32) + vec_ref[_BQ]
    kv = jnp.dot(s_seq, wkv_ref[...], preferred_element_type=f32)          # (n, 2E)
    k = kv[:, :E] + vec_ref[_BK]
    v = kv[:, E:] + vec_ref[_BV]

    # Per-head attention (no 1/sqrt(d) scaling, exactly like FullAttention).
    heads = []
    for h in range(H):
        lo = h * D
        q_h = q[:, lo:lo + D]
        k_h = k[:, lo:lo + D]
        v_h = v[:, lo:lo + D]
        scores = lax.dot_general(q_h, k_h, _NT, preferred_element_type=f32)  # (n, n)
        scores = scores - jnp.max(scores, axis=-1, keepdims=True)
        p = jnp.exp(scores)
        denom = jnp.sum(p, axis=-1, keepdims=True)
        w_h = p * pl.reciprocal(denom, approx=True)            # EUP vrcp slot
        heads.append(jnp.dot(w_h, v_h, preferred_element_type=f32))        # (n, D)

    # Merge linear fused with the reference's buggy head flatten:
    #   attention_output (b, H, n, D) .view(b, n, H*D)
    # is a pure row-major reshape: flat row i = B*h + r takes head h's rows
    # H*r + q (q = 0..H-1) as its H consecutive D-wide lane blocks.  We never
    # materialize that lane-width-D relayout: the row gather is a tiny 0/1
    # selection matmul, and the lane placement is folded into the merge
    # weight's row blocks, so every stored value stays lane-dense.
    wm = wm_ref[...]                                           # (E, E) = merge.T
    r_i = lax.broadcasted_iota(jnp.int32, (B, n), 0)
    c_i = lax.broadcasted_iota(jnp.int32, (B, n), 1)
    sel = [(c_i == H * r_i + qq).astype(f32) for qq in range(H)]   # (B, n) each

    bands = []
    for h in range(H):
        band = None
        for qq in range(H):
            rows = lax.dot_general(sel[qq], heads[h], _NN,
                                   preferred_element_type=f32)      # (B, D)
            part = jnp.dot(rows, wm[qq * D:(qq + 1) * D, :],
                           preferred_element_type=f32)              # (B, E)
            band = part if band is None else band + part
        bands.append(band)
    m = jnp.concatenate(bands, axis=0)                              # (n, E)

    # LayerNorm 1.
    mu1 = jnp.mean(m, axis=-1, keepdims=True)
    var1 = jnp.mean((m - mu1) ** 2, axis=-1, keepdims=True)
    ln1 = (m - mu1) * lax.rsqrt(var1 + LN_EPS) * vec_ref[_G1] + vec_ref[_B1]

    # MLP on concat([x, ln1]) -> LayerNorm 2 -> residual.
    cat = jnp.concatenate([x_seq, ln1], axis=-1)                    # (n, 2E)
    hdn = jnp.maximum(jnp.dot(cat, w1_ref[...], preferred_element_type=f32), 0.0)
    mlp = jnp.dot(hdn, w2_ref[...], preferred_element_type=f32)

    mu2 = jnp.mean(mlp, axis=-1, keepdims=True)
    var2 = jnp.mean((mlp - mu2) ** 2, axis=-1, keepdims=True)
    ln2 = (mlp - mu2) * lax.rsqrt(var2 + LN_EPS) * vec_ref[_G2] + vec_ref[_B2]

    out_ref[0] = x_seq + ln2


def _const_spec(shape):
    # Grid-invariant operand: constant block index -> fetched once, stays
    # resident across the (batch) grid.
    return pl.BlockSpec(shape, lambda i: (0,) * len(shape))


@jax.jit
def multihead_self_attention(x_nchw, source_nchw, params):
    b, c, hh, ww = x_nchw.shape
    n = hh * ww
    E = EMBED_DIM
    assert c == E and n % NUM_HEADS == 0

    # x.view(b, c, h*w).permute(0, 2, 1): done in XLA for x (so the residual
    # path adds exactly the values the reference sees); `source` only gets the
    # free row-major reshape here and is permuted on-chip inside the kernel.
    x_seq = jnp.transpose(x_nchw.reshape(b, E, n), (0, 2, 1))       # (b, n, E)
    s_cn = source_nchw.reshape(b, E, n)                             # (b, E, n)

    # Pre-transposed / stacked weights + one packed vector-parameter ref.
    wq_t = params["wq"].T                                           # (E, E)
    wkv_t = jnp.concatenate([params["wk"].T, params["wv"].T], axis=1)  # (E, 2E)
    wm_t = params["wm"].T                                           # (E, E)
    w1_t = params["w_mlp1"].T                                       # (2E, 2E)
    w2_t = params["w_mlp2"].T                                       # (2E, E)
    vecs = jnp.stack([params["bq"], params["bk"], params["bv"],
                      params["g1"], params["b1"],
                      params["g2"], params["b2"]], axis=0).reshape(7, 1, E)

    out = pl.pallas_call(
        _fused_mhsa_kernel,
        out_shape=jax.ShapeDtypeStruct((b, n, E), jnp.float32),
        grid=(b,),
        in_specs=[
            pl.BlockSpec((1, n, E), lambda i: (i, 0, 0)),
            pl.BlockSpec((1, E, n), lambda i: (i, 0, 0)),
            _const_spec((E, E)),
            _const_spec((E, 2 * E)),
            _const_spec((E, E)),
            _const_spec((2 * E, 2 * E)),
            _const_spec((2 * E, E)),
            _const_spec((7, 1, E)),
        ],
        out_specs=pl.BlockSpec((1, n, E), lambda i: (i, 0, 0)),
        compiler_params=pltpu.CompilerParams(
            dimension_semantics=("parallel",)),    # v7x: 2 TCs split the batch
    )(x_seq, s_cn, wq_t, wkv_t, wm_t, w1_t, w2_t, vecs)
    return out  # (b, n, E)


def init_params(key):
    ks = jax.random.split(key, 8)
    E = EMBED_DIM
    scale = 0.05
    return {
        "wq": scale * jax.random.normal(ks[0], (E, E), jnp.float32),
        "bq": scale * jax.random.normal(ks[1], (E,), jnp.float32),
        "wk": scale * jax.random.normal(ks[2], (E, E), jnp.float32),
        "bk": scale * jax.random.normal(ks[3], (E,), jnp.float32),
        "wv": scale * jax.random.normal(ks[4], (E, E), jnp.float32),
        "bv": scale * jax.random.normal(ks[5], (E,), jnp.float32),
        "wm": scale * jax.random.normal(ks[6], (E, E), jnp.float32),
        "w_mlp1": scale * jax.random.normal(ks[7], (2 * E, 2 * E), jnp.float32),
        "w_mlp2": scale * jax.random.normal(jax.random.fold_in(key, 99),
                                            (E, 2 * E), jnp.float32),
        "g1": jnp.ones((E,), jnp.float32),
        "b1": jnp.zeros((E,), jnp.float32),
        "g2": jnp.ones((E,), jnp.float32),
        "b2": jnp.zeros((E,), jnp.float32),
    }


def reference_forward(x_nchw, source_nchw, p):
    """Pure-JAX reference mirroring the PyTorch module line by line."""
    b, c, h, w = x_nchw.shape
    n = h * w
    x = jnp.transpose(x_nchw.reshape(b, c, n), (0, 2, 1))
    s = jnp.transpose(source_nchw.reshape(b, c, n), (0, 2, 1))
    q = (x @ p["wq"].T + p["bq"]).reshape(b, n, NUM_HEADS, HEAD_DIM).transpose(0, 2, 1, 3)
    k = (s @ p["wk"].T + p["bk"]).reshape(b, n, NUM_HEADS, HEAD_DIM).transpose(0, 2, 1, 3)
    v = (s @ p["wv"].T + p["bv"]).reshape(b, n, NUM_HEADS, HEAD_DIM).transpose(0, 2, 1, 3)
    scores = jnp.einsum("bhqd,bhkd->bhqk", q, k)
    wts = jax.nn.softmax(scores, axis=-1)
    ao = jnp.einsum("bhqk,bhkd->bhqd", wts, v)
    ao = ao.reshape(b, -1, NUM_HEADS * HEAD_DIM)          # same buggy view
    ao = ao @ p["wm"].T
    mu = ao.mean(-1, keepdims=True)
    var = ((ao - mu) ** 2).mean(-1, keepdims=True)
    ao = (ao - mu) / jnp.sqrt(var + LN_EPS) * p["g1"] + p["b1"]
    cat = jnp.concatenate([x, ao], axis=2)
    hdn = jnp.maximum(cat @ p["w_mlp1"].T, 0.0)
    mlp = hdn @ p["w_mlp2"].T
    mu2 = mlp.mean(-1, keepdims=True)
    var2 = ((mlp - mu2) ** 2).mean(-1, keepdims=True)
    mlp = (mlp - mu2) / jnp.sqrt(var2 + LN_EPS) * p["g2"] + p["b2"]
    return x + mlp


if __name__ == "__main__":
    key = jax.random.PRNGKey(0)
    k_x, k_s, k_p = jax.random.split(key, 3)

    B, C, Hs, Ws = 2, EMBED_DIM, 8, 8            # n = 64 tokens, embed_dim = 32
    x = jax.random.normal(k_x, (B, C, Hs, Ws), jnp.float32)
    source = jax.random.normal(k_s, (B, C, Hs, Ws), jnp.float32)
    params = init_params(k_p)

    out = jax.block_until_ready(multihead_self_attention(x, source, params))
    ref = reference_forward(x, source, params)

    assert out.shape == (B, Hs * Ws, EMBED_DIM)
    max_err = float(jnp.max(jnp.abs(out - ref)))
    # Tolerance covers the MXU's default bf16-pass f32 matmuls plus the EUP
    # approximate reciprocal used for the softmax denominator.
    assert jnp.allclose(out, ref, atol=2e-2, rtol=2e-2), f"max abs diff {max_err}"
    print("KERNEL_OK")
</pallas_src>

<mosaic_0001>
module attributes {stable_mosaic.version = 11 : i64} {
  func.func @_fused_mhsa_kernel(%arg0: i32, %arg1: memref<1x64x32xf32, #tpu.memory_space<vmem>>, %arg2: memref<1x32x64xf32, #tpu.memory_space<vmem>>, %arg3: memref<32x32xf32, #tpu.memory_space<vmem>>, %arg4: memref<32x64xf32, #tpu.memory_space<vmem>>, %arg5: memref<32x32xf32, #tpu.memory_space<vmem>>, %arg6: memref<64x64xf32, #tpu.memory_space<vmem>>, %arg7: memref<64x32xf32, #tpu.memory_space<vmem>>, %arg8: memref<7x1x32xf32, #tpu.memory_space<vmem>>, %arg9: memref<1x64x32xf32, #tpu.memory_space<vmem>>) attributes {dimension_semantics = [#tpu.dimension_semantics<parallel>], iteration_bounds = array<i64: 2>, scalar_prefetch = 0 : i64, scratch_operands = 0 : i64, tpu.core_type = #tpu.core_type<tc>, window_params = [{transform_indices = @transform_0, window_bounds = array<i64: 1, 64, 32>}, {transform_indices = @transform_1, window_bounds = array<i64: 1, 32, 64>}, {pipeline_mode = #tpu.pipeline_mode<synchronous>, transform_indices = @transform_2, window_bounds = array<i64: 32, 32>}, {pipeline_mode = #tpu.pipeline_mode<synchronous>, transform_indices = @transform_3, window_bounds = array<i64: 32, 64>}, {pipeline_mode = #tpu.pipeline_mode<synchronous>, transform_indices = @transform_4, window_bounds = array<i64: 32, 32>}, {pipeline_mode = #tpu.pipeline_mode<synchronous>, transform_indices = @transform_5, window_bounds = array<i64: 64, 64>}, {pipeline_mode = #tpu.pipeline_mode<synchronous>, transform_indices = @transform_6, window_bounds = array<i64: 64, 32>}, {pipeline_mode = #tpu.pipeline_mode<synchronous>, transform_indices = @transform_7, window_bounds = array<i64: 7, 1, 32>}, {transform_indices = @transform_8, window_bounds = array<i64: 1, 64, 32>}]} {
    %c0 = arith.constant 0 : index
    %c0_0 = arith.constant 0 : index
    %c0_1 = arith.constant 0 : index
    %0 = vector.load %arg1[%c0, %c0_0, %c0_1] : memref<1x64x32xf32, #tpu.memory_space<vmem>>, vector<1x64x32xf32>
    %1 = vector.shape_cast %0 : vector<1x64x32xf32> to vector<64x32xf32>
    %c0_2 = arith.constant 0 : index
    %c0_3 = arith.constant 0 : index
    %c0_4 = arith.constant 0 : index
    %2 = vector.load %arg2[%c0_2, %c0_3, %c0_4] : memref<1x32x64xf32, #tpu.memory_space<vmem>>, vector<1x32x64xf32>
    %3 = vector.shape_cast %2 : vector<1x32x64xf32> to vector<32x64xf32>
    %4 = tpu.iota {dimensions = array<i32: 0>} : vector<64x64xi32>
    %5 = tpu.iota {dimensions = array<i32: 1>} : vector<64x64xi32>
    %6 = arith.cmpi eq, %4, %5 : vector<64x64xi32>
    %7 = arith.extui %6 : vector<64x64xi1> to vector<64x64xi32>
    %8 = arith.sitofp %7 : vector<64x64xi32> to vector<64x64xf32>
    %cst = arith.constant dense<0.000000e+00> : vector<64x32xf32>
    %9 = tpu.matmul %8, %3, %cst {dimension_numbers = #tpu.dot_dimension_numbers<[1], [1], [0], [0], [0, 0, 1, 0], [], []>} : vector<64x64xf32>, vector<32x64xf32>, vector<64x32xf32> -> vector<64x32xf32>
    %c0_5 = arith.constant 0 : index
    %c0_6 = arith.constant 0 : index
    %10 = vector.load %arg3[%c0_5, %c0_6] : memref<32x32xf32, #tpu.memory_space<vmem>>, vector<32x32xf32>
    %cst_7 = arith.constant dense<0.000000e+00> : vector<64x32xf32>
    %11 = tpu.matmul %1, %10, %cst_7 {dimension_numbers = #tpu.dot_dimension_numbers<[1], [0], [0], [1], [0, 0, 1, 1], [], []>} : vector<64x32xf32>, vector<32x32xf32>, vector<64x32xf32> -> vector<64x32xf32>
    %c0_8 = arith.constant 0 : index
    %c0_9 = arith.constant 0 : index
    %c0_10 = arith.constant 0 : index
    %12 = vector.load %arg8[%c0_8, %c0_9, %c0_10] : memref<7x1x32xf32, #tpu.memory_space<vmem>>, vector<1x1x32xf32>
    %13 = vector.shape_cast %12 : vector<1x1x32xf32> to vector<1x32xf32>
    %14 = vector.broadcast %13 : vector<1x32xf32> to vector<64x32xf32>
    %15 = arith.addf %11, %14 : vector<64x32xf32>
    %c0_11 = arith.constant 0 : index
    %c0_12 = arith.constant 0 : index
    %16 = vector.load %arg4[%c0_11, %c0_12] : memref<32x64xf32, #tpu.memory_space<vmem>>, vector<32x64xf32>
    %cst_13 = arith.constant dense<0.000000e+00> : vector<64x64xf32>
    %17 = tpu.matmul %9, %16, %cst_13 {dimension_numbers = #tpu.dot_dimension_numbers<[1], [0], [0], [1], [0, 0, 1, 1], [], []>} : vector<64x32xf32>, vector<32x64xf32>, vector<64x64xf32> -> vector<64x64xf32>
    %18 = vector.extract_strided_slice %17 {offsets = [0, 0], sizes = [64, 32], strides = [1, 1]} : vector<64x64xf32> to vector<64x32xf32>
    %c1 = arith.constant 1 : index
    %c0_14 = arith.constant 0 : index
    %c0_15 = arith.constant 0 : index
    %19 = vector.load %arg8[%c1, %c0_14, %c0_15] : memref<7x1x32xf32, #tpu.memory_space<vmem>>, vector<1x1x32xf32>
    %20 = vector.shape_cast %19 : vector<1x1x32xf32> to vector<1x32xf32>
    %21 = vector.broadcast %20 : vector<1x32xf32> to vector<64x32xf32>
    %22 = arith.addf %18, %21 : vector<64x32xf32>
    %23 = vector.extract_strided_slice %17 {offsets = [0, 32], sizes = [64, 32], strides = [1, 1]} : vector<64x64xf32> to vector<64x32xf32>
    %c2 = arith.constant 2 : index
    %c0_16 = arith.constant 0 : index
    %c0_17 = arith.constant 0 : index
    %24 = vector.load %arg8[%c2, %c0_16, %c0_17] : memref<7x1x32xf32, #tpu.memory_space<vmem>>, vector<1x1x32xf32>
    %25 = vector.shape_cast %24 : vector<1x1x32xf32> to vector<1x32xf32>
    %26 = vector.broadcast %25 : vector<1x32xf32> to vector<64x32xf32>
    %27 = arith.addf %23, %26 : vector<64x32xf32>
    %28 = vector.extract_strided_slice %15 {offsets = [0, 0], sizes = [64, 8], strides = [1, 1]} : vector<64x32xf32> to vector<64x8xf32>
    %29 = vector.extract_strided_slice %22 {offsets = [0, 0], sizes = [64, 8], strides = [1, 1]} : vector<64x32xf32> to vector<64x8xf32>
    %30 = vector.extract_strided_slice %27 {offsets = [0, 0], sizes = [64, 8], strides = [1, 1]} : vector<64x32xf32> to vector<64x8xf32>
    %cst_18 = arith.constant dense<0.000000e+00> : vector<64x64xf32>
    %31 = tpu.matmul %28, %29, %cst_18 {dimension_numbers = #tpu.dot_dimension_numbers<[1], [1], [0], [0], [0, 0, 1, 0], [], []>} : vector<64x8xf32>, vector<64x8xf32>, vector<64x64xf32> -> vector<64x64xf32>
    %cst_19 = arith.constant dense<0xFF800000> : vector<64xf32>
    %32 = vector.multi_reduction <maximumf>, %31, %cst_19 [1] : vector<64x64xf32> to vector<64xf32>
    %33 = vector.shape_cast %32 : vector<64xf32> to vector<64x1xf32>
    %34 = vector.broadcast %33 : vector<64x1xf32> to vector<64x64xf32>
    %35 = arith.subf %31, %34 : vector<64x64xf32>
    %36 = math.exp %35 : vector<64x64xf32>
    %cst_20 = arith.constant dense<0.000000e+00> : vector<64xf32>
    %37 = vector.multi_reduction <add>, %36, %cst_20 [1] : vector<64x64xf32> to vector<64xf32>
    %38 = vector.shape_cast %37 : vector<64xf32> to vector<64x1xf32>
    %39 = tpu.reciprocal %38 {approx = true} : vector<64x1xf32> -> vector<64x1xf32>
    %40 = vector.broadcast %39 : vector<64x1xf32> to vector<64x64xf32>
    %41 = arith.mulf %36, %40 : vector<64x64xf32>
    %cst_21 = arith.constant dense<0.000000e+00> : vector<64x8xf32>
    %42 = tpu.matmul %41, %30, %cst_21 {dimension_numbers = #tpu.dot_dimension_numbers<[1], [0], [0], [1], [0, 0, 1, 1], [], []>} : vector<64x64xf32>, vector<64x8xf32>, vector<64x8xf32> -> vector<64x8xf32>
    %43 = vector.extract_strided_slice %15 {offsets = [0, 8], sizes = [64, 8], strides = [1, 1]} : vector<64x32xf32> to vector<64x8xf32>
    %44 = vector.extract_strided_slice %22 {offsets = [0, 8], sizes = [64, 8], strides = [1, 1]} : vector<64x32xf32> to vector<64x8xf32>
    %45 = vector.extract_strided_slice %27 {offsets = [0, 8], sizes = [64, 8], strides = [1, 1]} : vector<64x32xf32> to vector<64x8xf32>
    %cst_22 = arith.constant dense<0.000000e+00> : vector<64x64xf32>
    %46 = tpu.matmul %43, %44, %cst_22 {dimension_numbers = #tpu.dot_dimension_numbers<[1], [1], [0], [0], [0, 0, 1, 0], [], []>} : vector<64x8xf32>, vector<64x8xf32>, vector<64x64xf32> -> vector<64x64xf32>
    %cst_23 = arith.constant dense<0xFF800000> : vector<64xf32>
    %47 = vector.multi_reduction <maximumf>, %46, %cst_23 [1] : vector<64x64xf32> to vector<64xf32>
    %48 = vector.shape_cast %47 : vector<64xf32> to vector<64x1xf32>
    %49 = vector.broadcast %48 : vector<64x1xf32> to vector<64x64xf32>
    %50 = arith.subf %46, %49 : vector<64x64xf32>
    %51 = math.exp %50 : vector<64x64xf32>
    %cst_24 = arith.constant dense<0.000000e+00> : vector<64xf32>
    %52 = vector.multi_reduction <add>, %51, %cst_24 [1] : vector<64x64xf32> to vector<64xf32>
    %53 = vector.shape_cast %52 : vector<64xf32> to vector<64x1xf32>
    %54 = tpu.reciprocal %53 {approx = true} : vector<64x1xf32> -> vector<64x1xf32>
    %55 = vector.broadcast %54 : vector<64x1xf32> to vector<64x64xf32>
    %56 = arith.mulf %51, %55 : vector<64x64xf32>
    %cst_25 = arith.constant dense<0.000000e+00> : vector<64x8xf32>
    %57 = tpu.matmul %56, %45, %cst_25 {dimension_numbers = #tpu.dot_dimension_numbers<[1], [0], [0], [1], [0, 0, 1, 1], [], []>} : vector<64x64xf32>, vector<64x8xf32>, vector<64x8xf32> -> vector<64x8xf32>
    %58 = vector.extract_strided_slice %15 {offsets = [0, 16], sizes = [64, 8], strides = [1, 1]} : vector<64x32xf32> to vector<64x8xf32>
    %59 = vector.extract_strided_slice %22 {offsets = [0, 16], sizes = [64, 8], strides = [1, 1]} : vector<64x32xf32> to vector<64x8xf32>
    %60 = vector.extract_strided_slice %27 {offsets = [0, 16], sizes = [64, 8], strides = [1, 1]} : vector<64x32xf32> to vector<64x8xf32>
    %cst_26 = arith.constant dense<0.000000e+00> : vector<64x64xf32>
    %61 = tpu.matmul %58, %59, %cst_26 {dimension_numbers = #tpu.dot_dimension_numbers<[1], [1], [0], [0], [0, 0, 1, 0], [], []>} : vector<64x8xf32>, vector<64x8xf32>, vector<64x64xf32> -> vector<64x64xf32>
    %cst_27 = arith.constant dense<0xFF800000> : vector<64xf32>
    %62 = vector.multi_reduction <maximumf>, %61, %cst_27 [1] : vector<64x64xf32> to vector<64xf32>
    %63 = vector.shape_cast %62 : vector<64xf32> to vector<64x1xf32>
    %64 = vector.broadcast %63 : vector<64x1xf32> to vector<64x64xf32>
    %65 = arith.subf %61, %64 : vector<64x64xf32>
    %66 = math.exp %65 : vector<64x64xf32>
    %cst_28 = arith.constant dense<0.000000e+00> : vector<64xf32>
    %67 = vector.multi_reduction <add>, %66, %cst_28 [1] : vector<64x64xf32> to vector<64xf32>
    %68 = vector.shape_cast %67 : vector<64xf32> to vector<64x1xf32>
    %69 = tpu.reciprocal %68 {approx = true} : vector<64x1xf32> -> vector<64x1xf32>
    %70 = vector.broadcast %69 : vector<64x1xf32> to vector<64x64xf32>
    %71 = arith.mulf %66, %70 : vector<64x64xf32>
    %cst_29 = arith.constant dense<0.000000e+00> : vector<64x8xf32>
    %72 = tpu.matmul %71, %60, %cst_29 {dimension_numbers = #tpu.dot_dimension_numbers<[1], [0], [0], [1], [0, 0, 1, 1], [], []>} : vector<64x64xf32>, vector<64x8xf32>, vector<64x8xf32> -> vector<64x8xf32>
    %73 = vector.extract_strided_slice %15 {offsets = [0, 24], sizes = [64, 8], strides = [1, 1]} : vector<64x32xf32> to vector<64x8xf32>
    %74 = vector.extract_strided_slice %22 {offsets = [0, 24], sizes = [64, 8], strides = [1, 1]} : vector<64x32xf32> to vector<64x8xf32>
    %75 = vector.extract_strided_slice %27 {offsets = [0, 24], sizes = [64, 8], strides = [1, 1]} : vector<64x32xf32> to vector<64x8xf32>
    %cst_30 = arith.constant dense<0.000000e+00> : vector<64x64xf32>
    %76 = tpu.matmul %73, %74, %cst_30 {dimension_numbers = #tpu.dot_dimension_numbers<[1], [1], [0], [0], [0, 0, 1, 0], [], []>} : vector<64x8xf32>, vector<64x8xf32>, vector<64x64xf32> -> vector<64x64xf32>
    %cst_31 = arith.constant dense<0xFF800000> : vector<64xf32>
    %77 = vector.multi_reduction <maximumf>, %76, %cst_31 [1] : vector<64x64xf32> to vector<64xf32>
    %78 = vector.shape_cast %77 : vector<64xf32> to vector<64x1xf32>
    %79 = vector.broadcast %78 : vector<64x1xf32> to vector<64x64xf32>
    %80 = arith.subf %76, %79 : vector<64x64xf32>
    %81 = math.exp %80 : vector<64x64xf32>
    %cst_32 = arith.constant dense<0.000000e+00> : vector<64xf32>
    %82 = vector.multi_reduction <add>, %81, %cst_32 [1] : vector<64x64xf32> to vector<64xf32>
    %83 = vector.shape_cast %82 : vector<64xf32> to vector<64x1xf32>
    %84 = tpu.reciprocal %83 {approx = true} : vector<64x1xf32> -> vector<64x1xf32>
    %85 = vector.broadcast %84 : vector<64x1xf32> to vector<64x64xf32>
    %86 = arith.mulf %81, %85 : vector<64x64xf32>
    %cst_33 = arith.constant dense<0.000000e+00> : vector<64x8xf32>
    %87 = tpu.matmul %86, %75, %cst_33 {dimension_numbers = #tpu.dot_dimension_numbers<[1], [0], [0], [1], [0, 0, 1, 1], [], []>} : vector<64x64xf32>, vector<64x8xf32>, vector<64x8xf32> -> vector<64x8xf32>
    %c0_34 = arith.constant 0 : index
    %c0_35 = arith.constant 0 : index
    %88 = vector.load %arg5[%c0_34, %c0_35] : memref<32x32xf32, #tpu.memory_space<vmem>>, vector<32x32xf32>
    %89 = tpu.iota {dimensions = array<i32: 0>} : vector<16x64xi32>
    %90 = tpu.iota {dimensions = array<i32: 1>} : vector<16x64xi32>
    %c4_i32 = arith.constant 4 : i32
    %91 = vector.broadcast %c4_i32 : i32 to vector<16x64xi32>
    %92 = arith.muli %91, %89 : vector<16x64xi32>
    %c0_i32 = arith.constant 0 : i32
    %93 = vector.broadcast %c0_i32 : i32 to vector<16x64xi32>
    %94 = arith.addi %92, %93 : vector<16x64xi32>
    %95 = arith.cmpi eq, %90, %94 : vector<16x64xi32>
    %96 = arith.extui %95 : vector<16x64xi1> to vector<16x64xi32>
    %97 = arith.sitofp %96 : vector<16x64xi32> to vector<16x64xf32>
    %c4_i32_36 = arith.constant 4 : i32
    %98 = vector.broadcast %c4_i32_36 : i32 to vector<16x64xi32>
    %99 = arith.muli %98, %89 : vector<16x64xi32>
    %c1_i32 = arith.constant 1 : i32
    %100 = vector.broadcast %c1_i32 : i32 to vector<16x64xi32>
    %101 = arith.addi %99, %100 : vector<16x64xi32>
    %102 = arith.cmpi eq, %90, %101 : vector<16x64xi32>
    %103 = arith.extui %102 : vector<16x64xi1> to vector<16x64xi32>
    %104 = arith.sitofp %103 : vector<16x64xi32> to vector<16x64xf32>
    %c4_i32_37 = arith.constant 4 : i32
    %105 = vector.broadcast %c4_i32_37 : i32 to vector<16x64xi32>
    %106 = arith.muli %105, %89 : vector<16x64xi32>
    %c2_i32 = arith.constant 2 : i32
    %107 = vector.broadcast %c2_i32 : i32 to vector<16x64xi32>
    %108 = arith.addi %106, %107 : vector<16x64xi32>
    %109 = arith.cmpi eq, %90, %108 : vector<16x64xi32>
    %110 = arith.extui %109 : vector<16x64xi1> to vector<16x64xi32>
    %111 = arith.sitofp %110 : vector<16x64xi32> to vector<16x64xf32>
    %c4_i32_38 = arith.constant 4 : i32
    %112 = vector.broadcast %c4_i32_38 : i32 to vector<16x64xi32>
    %113 = arith.muli %112, %89 : vector<16x64xi32>
    %c3_i32 = arith.constant 3 : i32
    %114 = vector.broadcast %c3_i32 : i32 to vector<16x64xi32>
    %115 = arith.addi %113, %114 : vector<16x64xi32>
    %116 = arith.cmpi eq, %90, %115 : vector<16x64xi32>
    %117 = arith.extui %116 : vector<16x64xi1> to vector<16x64xi32>
    %118 = arith.sitofp %117 : vector<16x64xi32> to vector<16x64xf32>
    %cst_39 = arith.constant dense<0.000000e+00> : vector<16x8xf32>
    %119 = tpu.matmul %97, %42, %cst_39 {dimension_numbers = #tpu.dot_dimension_numbers<[1], [0], [0], [1], [0, 0, 1, 1], [], []>} : vector<16x64xf32>, vector<64x8xf32>, vector<16x8xf32> -> vector<16x8xf32>
    %120 = vector.extract_strided_slice %88 {offsets = [0, 0], sizes = [8, 32], strides = [1, 1]} : vector<32x32xf32> to vector<8x32xf32>
    %cst_40 = arith.constant dense<0.000000e+00> : vector<16x32xf32>
    %121 = tpu.matmul %119, %120, %cst_40 {dimension_numbers = #tpu.dot_dimension_numbers<[1], [0], [0], [1], [0, 0, 1, 1], [], []>} : vector<16x8xf32>, vector<8x32xf32>, vector<16x32xf32> -> vector<16x32xf32>
    %cst_41 = arith.constant dense<0.000000e+00> : vector<16x8xf32>
    %122 = tpu.matmul %104, %42, %cst_41 {dimension_numbers = #tpu.dot_dimension_numbers<[1], [0], [0], [1], [0, 0, 1, 1], [], []>} : vector<16x64xf32>, vector<64x8xf32>, vector<16x8xf32> -> vector<16x8xf32>
    %123 = vector.extract_strided_slice %88 {offsets = [8, 0], sizes = [8, 32], strides = [1, 1]} : vector<32x32xf32> to vector<8x32xf32>
    %cst_42 = arith.constant dense<0.000000e+00> : vector<16x32xf32>
    %124 = tpu.matmul %122, %123, %cst_42 {dimension_numbers = #tpu.dot_dimension_numbers<[1], [0], [0], [1], [0, 0, 1, 1], [], []>} : vector<16x8xf32>, vector<8x32xf32>, vector<16x32xf32> -> vector<16x32xf32>
    %125 = arith.addf %121, %124 : vector<16x32xf32>
    %cst_43 = arith.constant dense<0.000000e+00> : vector<16x8xf32>
    %126 = tpu.matmul %111, %42, %cst_43 {dimension_numbers = #tpu.dot_dimension_numbers<[1], [0], [0], [1], [0, 0, 1, 1], [], []>} : vector<16x64xf32>, vector<64x8xf32>, vector<16x8xf32> -> vector<16x8xf32>
    %127 = vector.extract_strided_slice %88 {offsets = [16, 0], sizes = [8, 32], strides = [1, 1]} : vector<32x32xf32> to vector<8x32xf32>
    %cst_44 = arith.constant dense<0.000000e+00> : vector<16x32xf32>
    %128 = tpu.matmul %126, %127, %cst_44 {dimension_numbers = #tpu.dot_dimension_numbers<[1], [0], [0], [1], [0, 0, 1, 1], [], []>} : vector<16x8xf32>, vector<8x32xf32>, vector<16x32xf32> -> vector<16x32xf32>
    %129 = arith.addf %125, %128 : vector<16x32xf32>
    %cst_45 = arith.constant dense<0.000000e+00> : vector<16x8xf32>
    %130 = tpu.matmul %118, %42, %cst_45 {dimension_numbers = #tpu.dot_dimension_numbers<[1], [0], [0], [1], [0, 0, 1, 1], [], []>} : vector<16x64xf32>, vector<64x8xf32>, vector<16x8xf32> -> vector<16x8xf32>
    %131 = vector.extract_strided_slice %88 {offsets = [24, 0], sizes = [8, 32], strides = [1, 1]} : vector<32x32xf32> to vector<8x32xf32>
    %cst_46 = arith.constant dense<0.000000e+00> : vector<16x32xf32>
    %132 = tpu.matmul %130, %131, %cst_46 {dimension_numbers = #tpu.dot_dimension_numbers<[1], [0], [0], [1], [0, 0, 1, 1], [], []>} : vector<16x8xf32>, vector<8x32xf32>, vector<16x32xf32> -> vector<16x32xf32>
    %133 = arith.addf %129, %132 : vector<16x32xf32>
    %cst_47 = arith.constant dense<0.000000e+00> : vector<16x8xf32>
    %134 = tpu.matmul %97, %57, %cst_47 {dimension_numbers = #tpu.dot_dimension_numbers<[1], [0], [0], [1], [0, 0, 1, 1], [], []>} : vector<16x64xf32>, vector<64x8xf32>, vector<16x8xf32> -> vector<16x8xf32>
    %135 = vector.extract_strided_slice %88 {offsets = [0, 0], sizes = [8, 32], strides = [1, 1]} : vector<32x32xf32> to vector<8x32xf32>
    %cst_48 = arith.constant dense<0.000000e+00> : vector<16x32xf32>
    %136 = tpu.matmul %134, %135, %cst_48 {dimension_numbers = #tpu.dot_dimension_numbers<[1], [0], [0], [1], [0, 0, 1, 1], [], []>} : vector<16x8xf32>, vector<8x32xf32>, vector<16x32xf32> -> vector<16x32xf32>
    %cst_49 = arith.constant dense<0.000000e+00> : vector<16x8xf32>
    %137 = tpu.matmul %104, %57, %cst_49 {dimension_numbers = #tpu.dot_dimension_numbers<[1], [0], [0], [1], [0, 0, 1, 1], [], []>} : vector<16x64xf32>, vector<64x8xf32>, vector<16x8xf32> -> vector<16x8xf32>
    %138 = vector.extract_strided_slice %88 {offsets = [8, 0], sizes = [8, 32], strides = [1, 1]} : vector<32x32xf32> to vector<8x32xf32>
    %cst_50 = arith.constant dense<0.000000e+00> : vector<16x32xf32>
    %139 = tpu.matmul %137, %138, %cst_50 {dimension_numbers = #tpu.dot_dimension_numbers<[1], [0], [0], [1], [0, 0, 1, 1], [], []>} : vector<16x8xf32>, vector<8x32xf32>, vector<16x32xf32> -> vector<16x32xf32>
    %140 = arith.addf %136, %139 : vector<16x32xf32>
    %cst_51 = arith.constant dense<0.000000e+00> : vector<16x8xf32>
    %141 = tpu.matmul %111, %57, %cst_51 {dimension_numbers = #tpu.dot_dimension_numbers<[1], [0], [0], [1], [0, 0, 1, 1], [], []>} : vector<16x64xf32>, vector<64x8xf32>, vector<16x8xf32> -> vector<16x8xf32>
    %142 = vector.extract_strided_slice %88 {offsets = [16, 0], sizes = [8, 32], strides = [1, 1]} : vector<32x32xf32> to vector<8x32xf32>
    %cst_52 = arith.constant dense<0.000000e+00> : vector<16x32xf32>
    %143 = tpu.matmul %141, %142, %cst_52 {dimension_numbers = #tpu.dot_dimension_numbers<[1], [0], [0], [1], [0, 0, 1, 1], [], []>} : vector<16x8xf32>, vector<8x32xf32>, vector<16x32xf32> -> vector<16x32xf32>
    %144 = arith.addf %140, %143 : vector<16x32xf32>
    %cst_53 = arith.constant dense<0.000000e+00> : vector<16x8xf32>
    %145 = tpu.matmul %118, %57, %cst_53 {dimension_numbers = #tpu.dot_dimension_numbers<[1], [0], [0], [1], [0, 0, 1, 1], [], []>} : vector<16x64xf32>, vector<64x8xf32>, vector<16x8xf32> -> vector<16x8xf32>
    %146 = vector.extract_strided_slice %88 {offsets = [24, 0], sizes = [8, 32], strides = [1, 1]} : vector<32x32xf32> to vector<8x32xf32>
    %cst_54 = arith.constant dense<0.000000e+00> : vector<16x32xf32>
    %147 = tpu.matmul %145, %146, %cst_54 {dimension_numbers = #tpu.dot_dimension_numbers<[1], [0], [0], [1], [0, 0, 1, 1], [], []>} : vector<16x8xf32>, vector<8x32xf32>, vector<16x32xf32> -> vector<16x32xf32>
    %148 = arith.addf %144, %147 : vector<16x32xf32>
    %cst_55 = arith.constant dense<0.000000e+00> : vector<16x8xf32>
    %149 = tpu.matmul %97, %72, %cst_55 {dimension_numbers = #tpu.dot_dimension_numbers<[1], [0], [0], [1], [0, 0, 1, 1], [], []>} : vector<16x64xf32>, vector<64x8xf32>, vector<16x8xf32> -> vector<16x8xf32>
    %150 = vector.extract_strided_slice %88 {offsets = [0, 0], sizes = [8, 32], strides = [1, 1]} : vector<32x32xf32> to vector<8x32xf32>
    %cst_56 = arith.constant dense<0.000000e+00> : vector<16x32xf32>
    %151 = tpu.matmul %149, %150, %cst_56 {dimension_numbers = #tpu.dot_dimension_numbers<[1], [0], [0], [1], [0, 0, 1, 1], [], []>} : vector<16x8xf32>, vector<8x32xf32>, vector<16x32xf32> -> vector<16x32xf32>
    %cst_57 = arith.constant dense<0.000000e+00> : vector<16x8xf32>
    %152 = tpu.matmul %104, %72, %cst_57 {dimension_numbers = #tpu.dot_dimension_numbers<[1], [0], [0], [1], [0, 0, 1, 1], [], []>} : vector<16x64xf32>, vector<64x8xf32>, vector<16x8xf32> -> vector<16x8xf32>
    %153 = vector.extract_strided_slice %88 {offsets = [8, 0], sizes = [8, 32], strides = [1, 1]} : vector<32x32xf32> to vector<8x32xf32>
    %cst_58 = arith.constant dense<0.000000e+00> : vector<16x32xf32>
    %154 = tpu.matmul %152, %153, %cst_58 {dimension_numbers = #tpu.dot_dimension_numbers<[1], [0], [0], [1], [0, 0, 1, 1], [], []>} : vector<16x8xf32>, vector<8x32xf32>, vector<16x32xf32> -> vector<16x32xf32>
    %155 = arith.addf %151, %154 : vector<16x32xf32>
    %cst_59 = arith.constant dense<0.000000e+00> : vector<16x8xf32>
    %156 = tpu.matmul %111, %72, %cst_59 {dimension_numbers = #tpu.dot_dimension_numbers<[1], [0], [0], [1], [0, 0, 1, 1], [], []>} : vector<16x64xf32>, vector<64x8xf32>, vector<16x8xf32> -> vector<16x8xf32>
    %157 = vector.extract_strided_slice %88 {offsets = [16, 0], sizes = [8, 32], strides = [1, 1]} : vector<32x32xf32> to vector<8x32xf32>
    %cst_60 = arith.constant dense<0.000000e+00> : vector<16x32xf32>
    %158 = tpu.matmul %156, %157, %cst_60 {dimension_numbers = #tpu.dot_dimension_numbers<[1], [0], [0], [1], [0, 0, 1, 1], [], []>} : vector<16x8xf32>, vector<8x32xf32>, vector<16x32xf32> -> vector<16x32xf32>
    %159 = arith.addf %155, %158 : vector<16x32xf32>
    %cst_61 = arith.constant dense<0.000000e+00> : vector<16x8xf32>
    %160 = tpu.matmul %118, %72, %cst_61 {dimension_numbers = #tpu.dot_dimension_numbers<[1], [0], [0], [1], [0, 0, 1, 1], [], []>} : vector<16x64xf32>, vector<64x8xf32>, vector<16x8xf32> -> vector<16x8xf32>
    %161 = vector.extract_strided_slice %88 {offsets = [24, 0], sizes = [8, 32], strides = [1, 1]} : vector<32x32xf32> to vector<8x32xf32>
    %cst_62 = arith.constant dense<0.000000e+00> : vector<16x32xf32>
    %162 = tpu.matmul %160, %161, %cst_62 {dimension_numbers = #tpu.dot_dimension_numbers<[1], [0], [0], [1], [0, 0, 1, 1], [], []>} : vector<16x8xf32>, vector<8x32xf32>, vector<16x32xf32> -> vector<16x32xf32>
    %163 = arith.addf %159, %162 : vector<16x32xf32>
    %cst_63 = arith.constant dense<0.000000e+00> : vector<16x8xf32>
    %164 = tpu.matmul %97, %87, %cst_63 {dimension_numbers = #tpu.dot_dimension_numbers<[1], [0], [0], [1], [0, 0, 1, 1], [], []>} : vector<16x64xf32>, vector<64x8xf32>, vector<16x8xf32> -> vector<16x8xf32>
    %165 = vector.extract_strided_slice %88 {offsets = [0, 0], sizes = [8, 32], strides = [1, 1]} : vector<32x32xf32> to vector<8x32xf32>
    %cst_64 = arith.constant dense<0.000000e+00> : vector<16x32xf32>
    %166 = tpu.matmul %164, %165, %cst_64 {dimension_numbers = #tpu.dot_dimension_numbers<[1], [0], [0], [1], [0, 0, 1, 1], [], []>} : vector<16x8xf32>, vector<8x32xf32>, vector<16x32xf32> -> vector<16x32xf32>
    %cst_65 = arith.constant dense<0.000000e+00> : vector<16x8xf32>
    %167 = tpu.matmul %104, %87, %cst_65 {dimension_numbers = #tpu.dot_dimension_numbers<[1], [0], [0], [1], [0, 0, 1, 1], [], []>} : vector<16x64xf32>, vector<64x8xf32>, vector<16x8xf32> -> vector<16x8xf32>
    %168 = vector.extract_strided_slice %88 {offsets = [8, 0], sizes = [8, 32], strides = [1, 1]} : vector<32x32xf32> to vector<8x32xf32>
    %cst_66 = arith.constant dense<0.000000e+00> : vector<16x32xf32>
    %169 = tpu.matmul %167, %168, %cst_66 {dimension_numbers = #tpu.dot_dimension_numbers<[1], [0], [0], [1], [0, 0, 1, 1], [], []>} : vector<16x8xf32>, vector<8x32xf32>, vector<16x32xf32> -> vector<16x32xf32>
    %170 = arith.addf %166, %169 : vector<16x32xf32>
    %cst_67 = arith.constant dense<0.000000e+00> : vector<16x8xf32>
    %171 = tpu.matmul %111, %87, %cst_67 {dimension_numbers = #tpu.dot_dimension_numbers<[1], [0], [0], [1], [0, 0, 1, 1], [], []>} : vector<16x64xf32>, vector<64x8xf32>, vector<16x8xf32> -> vector<16x8xf32>
    %172 = vector.extract_strided_slice %88 {offsets = [16, 0], sizes = [8, 32], strides = [1, 1]} : vector<32x32xf32> to vector<8x32xf32>
    %cst_68 = arith.constant dense<0.000000e+00> : vector<16x32xf32>
    %173 = tpu.matmul %171, %172, %cst_68 {dimension_numbers = #tpu.dot_dimension_numbers<[1], [0], [0], [1], [0, 0, 1, 1], [], []>} : vector<16x8xf32>, vector<8x32xf32>, vector<16x32xf32> -> vector<16x32xf32>
    %174 = arith.addf %170, %173 : vector<16x32xf32>
    %cst_69 = arith.constant dense<0.000000e+00> : vector<16x8xf32>
    %175 = tpu.matmul %118, %87, %cst_69 {dimension_numbers = #tpu.dot_dimension_numbers<[1], [0], [0], [1], [0, 0, 1, 1], [], []>} : vector<16x64xf32>, vector<64x8xf32>, vector<16x8xf32> -> vector<16x8xf32>
    %176 = vector.extract_strided_slice %88 {offsets = [24, 0], sizes = [8, 32], strides = [1, 1]} : vector<32x32xf32> to vector<8x32xf32>
    %cst_70 = arith.constant dense<0.000000e+00> : vector<16x32xf32>
    %177 = tpu.matmul %175, %176, %cst_70 {dimension_numbers = #tpu.dot_dimension_numbers<[1], [0], [0], [1], [0, 0, 1, 1], [], []>} : vector<16x8xf32>, vector<8x32xf32>, vector<16x32xf32> -> vector<16x32xf32>
    %178 = arith.addf %174, %177 : vector<16x32xf32>
    %179 = tpu.concatenate %133, %148, %163, %178 in 0 : vector<16x32xf32>, vector<16x32xf32>, vector<16x32xf32>, vector<16x32xf32> -> vector<64x32xf32>
    %cst_71 = arith.constant dense<0.000000e+00> : vector<64xf32>
    %180 = vector.multi_reduction <add>, %179, %cst_71 [1] : vector<64x32xf32> to vector<64xf32>
    %181 = vector.shape_cast %180 : vector<64xf32> to vector<64x1xf32>
    %cst_72 = arith.constant 3.200000e+01 : f32
    %182 = vector.broadcast %cst_72 : f32 to vector<64x1xf32>
    %183 = arith.divf %181, %182 : vector<64x1xf32>
    %184 = vector.broadcast %183 : vector<64x1xf32> to vector<64x32xf32>
    %185 = arith.subf %179, %184 : vector<64x32xf32>
    %186 = arith.mulf %185, %185 : vector<64x32xf32>
    %cst_73 = arith.constant dense<0.000000e+00> : vector<64xf32>
    %187 = vector.multi_reduction <add>, %186, %cst_73 [1] : vector<64x32xf32> to vector<64xf32>
    %188 = vector.shape_cast %187 : vector<64xf32> to vector<64x1xf32>
    %cst_74 = arith.constant 3.200000e+01 : f32
    %189 = vector.broadcast %cst_74 : f32 to vector<64x1xf32>
    %190 = arith.divf %188, %189 : vector<64x1xf32>
    %191 = vector.broadcast %183 : vector<64x1xf32> to vector<64x32xf32>
    %192 = arith.subf %179, %191 : vector<64x32xf32>
    %cst_75 = arith.constant 9.99999974E-6 : f32
    %193 = vector.broadcast %cst_75 : f32 to vector<64x1xf32>
    %194 = arith.addf %190, %193 : vector<64x1xf32>
    %195 = math.rsqrt %194 : vector<64x1xf32>
    %196 = vector.broadcast %195 : vector<64x1xf32> to vector<64x32xf32>
    %197 = arith.mulf %192, %196 : vector<64x32xf32>
    %c3 = arith.constant 3 : index
    %c0_76 = arith.constant 0 : index
    %c0_77 = arith.constant 0 : index
    %198 = vector.load %arg8[%c3, %c0_76, %c0_77] : memref<7x1x32xf32, #tpu.memory_space<vmem>>, vector<1x1x32xf32>
    %199 = vector.shape_cast %198 : vector<1x1x32xf32> to vector<1x32xf32>
    %200 = vector.broadcast %199 : vector<1x32xf32> to vector<64x32xf32>
    %201 = arith.mulf %197, %200 : vector<64x32xf32>
    %c4 = arith.constant 4 : index
    %c0_78 = arith.constant 0 : index
    %c0_79 = arith.constant 0 : index
    %202 = vector.load %arg8[%c4, %c0_78, %c0_79] : memref<7x1x32xf32, #tpu.memory_space<vmem>>, vector<1x1x32xf32>
    %203 = vector.shape_cast %202 : vector<1x1x32xf32> to vector<1x32xf32>
    %204 = vector.broadcast %203 : vector<1x32xf32> to vector<64x32xf32>
    %205 = arith.addf %201, %204 : vector<64x32xf32>
    %206 = tpu.concatenate %1, %205 in 1 : vector<64x32xf32>, vector<64x32xf32> -> vector<64x64xf32>
    %c0_80 = arith.constant 0 : index
    %c0_81 = arith.constant 0 : index
    %207 = vector.load %arg6[%c0_80, %c0_81] : memref<64x64xf32, #tpu.memory_space<vmem>>, vector<64x64xf32>
    %cst_82 = arith.constant dense<0.000000e+00> : vector<64x64xf32>
    %208 = tpu.matmul %206, %207, %cst_82 {dimension_numbers = #tpu.dot_dimension_numbers<[1], [0], [0], [1], [0, 0, 1, 1], [], []>} : vector<64x64xf32>, vector<64x64xf32>, vector<64x64xf32> -> vector<64x64xf32>
    %cst_83 = arith.constant 0.000000e+00 : f32
    %209 = vector.broadcast %cst_83 : f32 to vector<64x64xf32>
    %210 = arith.maximumf %208, %209 : vector<64x64xf32>
    %c0_84 = arith.constant 0 : index
    %c0_85 = arith.constant 0 : index
    %211 = vector.load %arg7[%c0_84, %c0_85] : memref<64x32xf32, #tpu.memory_space<vmem>>, vector<64x32xf32>
    %cst_86 = arith.constant dense<0.000000e+00> : vector<64x32xf32>
    %212 = tpu.matmul %210, %211, %cst_86 {dimension_numbers = #tpu.dot_dimension_numbers<[1], [0], [0], [1], [0, 0, 1, 1], [], []>} : vector<64x64xf32>, vector<64x32xf32>, vector<64x32xf32> -> vector<64x32xf32>
    %cst_87 = arith.constant dense<0.000000e+00> : vector<64xf32>
    %213 = vector.multi_reduction <add>, %212, %cst_87 [1] : vector<64x32xf32> to vector<64xf32>
    %214 = vector.shape_cast %213 : vector<64xf32> to vector<64x1xf32>
    %cst_88 = arith.constant 3.200000e+01 : f32
    %215 = vector.broadcast %cst_88 : f32 to vector<64x1xf32>
    %216 = arith.divf %214, %215 : vector<64x1xf32>
    %217 = vector.broadcast %216 : vector<64x1xf32> to vector<64x32xf32>
    %218 = arith.subf %212, %217 : vector<64x32xf32>
    %219 = arith.mulf %218, %218 : vector<64x32xf32>
    %cst_89 = arith.constant dense<0.000000e+00> : vector<64xf32>
    %220 = vector.multi_reduction <add>, %219, %cst_89 [1] : vector<64x32xf32> to vector<64xf32>
    %221 = vector.shape_cast %220 : vector<64xf32> to vector<64x1xf32>
    %cst_90 = arith.constant 3.200000e+01 : f32
    %222 = vector.broadcast %cst_90 : f32 to vector<64x1xf32>
    %223 = arith.divf %221, %222 : vector<64x1xf32>
    %224 = vector.broadcast %216 : vector<64x1xf32> to vector<64x32xf32>
    %225 = arith.subf %212, %224 : vector<64x32xf32>
    %cst_91 = arith.constant 9.99999974E-6 : f32
    %226 = vector.broadcast %cst_91 : f32 to vector<64x1xf32>
    %227 = arith.addf %223, %226 : vector<64x1xf32>
    %228 = math.rsqrt %227 : vector<64x1xf32>
    %229 = vector.broadcast %228 : vector<64x1xf32> to vector<64x32xf32>
    %230 = arith.mulf %225, %229 : vector<64x32xf32>
    %c5 = arith.constant 5 : index
    %c0_92 = arith.constant 0 : index
    %c0_93 = arith.constant 0 : index
    %231 = vector.load %arg8[%c5, %c0_92, %c0_93] : memref<7x1x32xf32, #tpu.memory_space<vmem>>, vector<1x1x32xf32>
    %232 = vector.shape_cast %231 : vector<1x1x32xf32> to vector<1x32xf32>
    %233 = vector.broadcast %232 : vector<1x32xf32> to vector<64x32xf32>
    %234 = arith.mulf %230, %233 : vector<64x32xf32>
    %c6 = arith.constant 6 : index
    %c0_94 = arith.constant 0 : index
    %c0_95 = arith.constant 0 : index
    %235 = vector.load %arg8[%c6, %c0_94, %c0_95] : memref<7x1x32xf32, #tpu.memory_space<vmem>>, vector<1x1x32xf32>
    %236 = vector.shape_cast %235 : vector<1x1x32xf32> to vector<1x32xf32>
    %237 = vector.broadcast %236 : vector<1x32xf32> to vector<64x32xf32>
    %238 = arith.addf %234, %237 : vector<64x32xf32>
    %239 = arith.addf %1, %238 : vector<64x32xf32>
    %c0_96 = arith.constant 0 : index
    %c0_97 = arith.constant 0 : index
    %c0_98 = arith.constant 0 : index
    %240 = vector.load %arg9[%c0_96, %c0_97, %c0_98] : memref<1x64x32xf32, #tpu.memory_space<vmem>>, vector<1x64x32xf32>
    %241 = vector.shape_cast %240 : vector<1x64x32xf32> to vector<64x32xf32>
    %242 = vector.shape_cast %239 : vector<64x32xf32> to vector<1x64x32xf32>
    tpu.vector_store %arg9[%c0_96, %c0_97, %c0_98], %242 {strides = array<i32>} : memref<1x64x32xf32, #tpu.memory_space<vmem>>, vector<1x64x32xf32>,
    return
  }
  func.func @transform_0(%arg0: i32) -> (i32, i32, i32) {
    %c0_i32 = arith.constant 0 : i32
    %c0_i32_0 = arith.constant 0 : i32
    %c0_i32_1 = arith.constant 0 : i32
    return %arg0, %c0_i32, %c0_i32_0 : i32, i32, i32
  }
  func.func @transform_1(%arg0: i32) -> (i32, i32, i32) {
    %c0_i32 = arith.constant 0 : i32
    %c0_i32_0 = arith.constant 0 : i32
    %c0_i32_1 = arith.constant 0 : i32
    return %arg0, %c0_i32, %c0_i32_0 : i32, i32, i32
  }
  func.func @transform_2(%arg0: i32) -> (i32, i32) {
    %c0_i32 = arith.constant 0 : i32
    %c0_i32_0 = arith.constant 0 : i32
    %c0_i32_1 = arith.constant 0 : i32
    return %c0_i32, %c0_i32_0 : i32, i32
  }
  func.func @transform_3(%arg0: i32) -> (i32, i32) {
    %c0_i32 = arith.constant 0 : i32
    %c0_i32_0 = arith.constant 0 : i32
    %c0_i32_1 = arith.constant 0 : i32
    return %c0_i32, %c0_i32_0 : i32, i32
  }
  func.func @transform_4(%arg0: i32) -> (i32, i32) {
    %c0_i32 = arith.constant 0 : i32
    %c0_i32_0 = arith.constant 0 : i32
    %c0_i32_1 = arith.constant 0 : i32
    return %c0_i32, %c0_i32_0 : i32, i32
  }
  func.func @transform_5(%arg0: i32) -> (i32, i32) {
    %c0_i32 = arith.constant 0 : i32
    %c0_i32_0 = arith.constant 0 : i32
    %c0_i32_1 = arith.constant 0 : i32
    return %c0_i32, %c0_i32_0 : i32, i32
  }
  func.func @transform_6(%arg0: i32) -> (i32, i32) {
    %c0_i32 = arith.constant 0 : i32
    %c0_i32_0 = arith.constant 0 : i32
    %c0_i32_1 = arith.constant 0 : i32
    return %c0_i32, %c0_i32_0 : i32, i32
  }
  func.func @transform_7(%arg0: i32) -> (i32, i32, i32) {
    %c0_i32 = arith.constant 0 : i32
    %c0_i32_0 = arith.constant 0 : i32
    %c0_i32_1 = arith.constant 0 : i32
    %c0_i32_2 = arith.constant 0 : i32
    return %c0_i32, %c0_i32_0, %c0_i32_1 : i32, i32, i32
  }
  func.func @transform_8(%arg0: i32) -> (i32, i32, i32) {
    %c0_i32 = arith.constant 0 : i32
    %c0_i32_0 = arith.constant 0 : i32
    %c0_i32_1 = arith.constant 0 : i32
    return %arg0, %c0_i32, %c0_i32_0 : i32, i32, i32
  }
}

</mosaic_0001>

<llo_original>
// kernel: multihead_self_attention.1
$region0: #{multihead_self_attention.1}
  #allocation0 [shape = 'u32[]', space=smem, size = 0x4, offset = 0x4, fixed_abs, tag = 'smem constant byte address 0x4 - core index']
  #allocation1 [shape = 'u32[144,128]{1,0:T(1,128)}', space=vmem, size = 0x12000, scoped, tag = 'internal scratch']
  %s0 = inlined_call_operand.vmem [shape: f32[2,64,32], index: 0, kind: input, shape index: {}]
  %s1 = inlined_call_operand.vmem [shape: f32[2,32,64], index: 1, kind: input, shape index: {}]
  %s2 = inlined_call_operand.vmem [shape: f32[32,32], index: 2, kind: input, shape index: {}]
  %s3 = inlined_call_operand.vmem [shape: f32[32,64], index: 3, kind: input, shape index: {}]
  %s4 = inlined_call_operand.vmem [shape: f32[32,32], index: 4, kind: input, shape index: {}]
  %s5 = inlined_call_operand.vmem [shape: f32[64,64], index: 5, kind: input, shape index: {}]
  %s6 = inlined_call_operand.vmem [shape: f32[64,32], index: 6, kind: input, shape index: {}]
  %s7 = inlined_call_operand.vmem [shape: f32[7,1,32], index: 7, kind: input, shape index: {}]
  %s8 = inlined_call_operand.vmem [shape: f32[2,64,32], index: 8, kind: output, shape index: {}]
  %s9 = sld [smem:[#allocation0]]
  $region65: #{multihead_self_attention.1} parent=0
    _
  %s11 = ssub.s32 1, %s9
  %s12 = scalar_select 0, %s11, %s9
  loop: start=0, step=1, limit=4
  $region2: #{multihead_self_attention.1} parent=0 // loop_pre_header
    _
  $region3: #{multihead_self_attention.1} parent=0 // loop_header
    %s14 = sphi 0, %s18
    %p15 = scmp.ge.s32.totalorder %s14, 4
    %s24 = sphi 0, %s26
    %s27 = sphi 0, %s24
    %s28 = sphi 0, %s27
    %s44 = sphi 0, %s28
    %s50 = sphi 0, %s52
    %s53 = sphi 0, %s50
    %s54 = sphi 0, %s53
    %s70 = sphi 0, %s54
    %s74 = sphi 0, %s74
    %s76 = sphi 0, %s74
    %s77 = sphi 0, %s76
    %s91 = sphi 0, %s77
    %s95 = sphi 0, %s95
    %s97 = sphi 0, %s95
    %s98 = sphi 0, %s97
    %s112 = sphi 0, %s98
    %s116 = sphi 0, %s116
    %s118 = sphi 0, %s116
    %s119 = sphi 0, %s118
    %s133 = sphi 0, %s119
    %s137 = sphi 0, %s137
    %s139 = sphi 0, %s137
    %s140 = sphi 0, %s139
    %s154 = sphi 0, %s140
    %s158 = sphi 0, %s158
    %s160 = sphi 0, %s158
    %s161 = sphi 0, %s160
    %s175 = sphi 0, %s161
    %s179 = sphi 0, %s179
    %s181 = sphi 0, %s179
    %s182 = sphi 0, %s181
    %s196 = sphi 0, %s182
    %s202 = sphi 0, %s204
    %s205 = sphi 0, %s202
    %s206 = sphi 0, %s205
    %s222 = sphi 0, %s206
  $region4: #{multihead_self_attention.1} parent=0 // loop_header_branch
    %17 = sbr.rel (%p15) target = $region8
  $region5: #{multihead_self_attention.1} parent=0 // loop_body
    %s19 = ssub.s32 %s14, 1
    %s20 = ssub.s32 %s14, 2
    %s21 = sadd.s32 %s14, 1
    %s22 = ssub.s32 %s14, %s21
    %p23 = scmp.eq.s32.totalorder %s22, 0
    %s25 = sadd.s32 %s24, 1
    %s26 = scalar_select %p23, %s24, %s25
    %p29 = pneg %p23
    %p30 = scmp.eq.s32.totalorder %s14, 1
    %p31 = por %p29, %p30
    %p32 = scmp.ne.s32.totalorder %s24, %s27
    %p33 = scmp.eq.s32.totalorder %s14, 0
    %p34 = por %p32, %p33
    %p35 = scmp.ne.s32.totalorder %s24, %s27
    %p36 = scmp.eq.s32.totalorder %s19, 1
    %p37 = por %p35, %p36
    %p38 = scmp.ne.s32.totalorder %s27, %s28
    %p39 = scmp.eq.s32.totalorder %s19, 0
    %p40 = por %p38, %p39
    %p41 = scmp.ne.s32.totalorder %s27, %s28
    %p42 = scmp.eq.s32.totalorder %s20, 1
    %p43 = por %p41, %p42
    %p45 = scmp.ne.s32.totalorder %s28, %s44
    %p46 = scmp.eq.s32.totalorder %s20, 0
    %p47 = por %p45, %p46
    %s48 = ssub.s32 %s14, %s21
    %p49 = scmp.eq.s32.totalorder %s48, 0
    %s51 = sadd.s32 %s50, 1
    %s52 = scalar_select %p49, %s50, %s51
    %p55 = pneg %p49
    %p56 = scmp.eq.s32.totalorder %s14, 1
    %p57 = por %p55, %p56
    %p58 = scmp.ne.s32.totalorder %s50, %s53
    %p59 = scmp.eq.s32.totalorder %s14, 0
    %p60 = por %p58, %p59
    %p61 = scmp.ne.s32.totalorder %s50, %s53
    %p62 = scmp.eq.s32.totalorder %s19, 1
    %p63 = por %p61, %p62
    %p64 = scmp.ne.s32.totalorder %s53, %s54
    %p65 = scmp.eq.s32.totalorder %s19, 0
    %p66 = por %p64, %p65
    %p67 = scmp.ne.s32.totalorder %s53, %s54
    %p68 = scmp.eq.s32.totalorder %s20, 1
    %p69 = por %p67, %p68
    %p71 = scmp.ne.s32.totalorder %s54, %s70
    %p72 = scmp.eq.s32.totalorder %s20, 0
    %p73 = por %p71, %p72
    %s75 = sadd.s32 %s74, 1
    %p78 = scmp.eq.s32.totalorder %s14, 1
    %p79 = scmp.ne.s32.totalorder %s74, %s76
    %p80 = scmp.eq.s32.totalorder %s14, 0
    %p81 = por %p79, %p80
    %p82 = scmp.ne.s32.totalorder %s74, %s76
    %p83 = scmp.eq.s32.totalorder %s19, 1
    %p84 = por %p82, %p83
    %p85 = scmp.ne.s32.totalorder %s76, %s77
    %p86 = scmp.eq.s32.totalorder %s19, 0
    %p87 = por %p85, %p86
    %p88 = scmp.ne.s32.totalorder %s76, %s77
    %p89 = scmp.eq.s32.totalorder %s20, 1
    %p90 = por %p88, %p89
    %p92 = scmp.ne.s32.totalorder %s77, %s91
    %p93 = scmp.eq.s32.totalorder %s20, 0
    %p94 = por %p92, %p93
    %s96 = sadd.s32 %s95, 1
    %p99 = scmp.eq.s32.totalorder %s14, 1
    %p100 = scmp.ne.s32.totalorder %s95, %s97
    %p101 = scmp.eq.s32.totalorder %s14, 0
    %p102 = por %p100, %p101
    %p103 = scmp.ne.s32.totalorder %s95, %s97
    %p104 = scmp.eq.s32.totalorder %s19, 1
    %p105 = por %p103, %p104
    %p106 = scmp.ne.s32.totalorder %s97, %s98
    %p107 = scmp.eq.s32.totalorder %s19, 0
    %p108 = por %p106, %p107
    %p109 = scmp.ne.s32.totalorder %s97, %s98
    %p110 = scmp.eq.s32.totalorder %s20, 1
    %p111 = por %p109, %p110
    %p113 = scmp.ne.s32.totalorder %s98, %s112
    %p114 = scmp.eq.s32.totalorder %s20, 0
    %p115 = por %p113, %p114
    %s117 = sadd.s32 %s116, 1
    %p120 = scmp.eq.s32.totalorder %s14, 1
    %p121 = scmp.ne.s32.totalorder %s116, %s118
    %p122 = scmp.eq.s32.totalorder %s14, 0
    %p123 = por %p121, %p122
    %p124 = scmp.ne.s32.totalorder %s116, %s118
    %p125 = scmp.eq.s32.totalorder %s19, 1
    %p126 = por %p124, %p125
    %p127 = scmp.ne.s32.totalorder %s118, %s119
    %p128 = scmp.eq.s32.totalorder %s19, 0
    %p129 = por %p127, %p128
    %p130 = scmp.ne.s32.totalorder %s118, %s119
    %p131 = scmp.eq.s32.totalorder %s20, 1
    %p132 = por %p130, %p131
    %p134 = scmp.ne.s32.totalorder %s119, %s133
    %p135 = scmp.eq.s32.totalorder %s20, 0
    %p136 = por %p134, %p135
    %s138 = sadd.s32 %s137, 1
    %p141 = scmp.eq.s32.totalorder %s14, 1
    %p142 = scmp.ne.s32.totalorder %s137, %s139
    %p143 = scmp.eq.s32.totalorder %s14, 0
    %p144 = por %p142, %p143
    %p145 = scmp.ne.s32.totalorder %s137, %s139
    %p146 = scmp.eq.s32.totalorder %s19, 1
    %p147 = por %p145, %p146
    %p148 = scmp.ne.s32.totalorder %s139, %s140
    %p149 = scmp.eq.s32.totalorder %s19, 0
    %p150 = por %p148, %p149
    %p151 = scmp.ne.s32.totalorder %s139, %s140
    %p152 = scmp.eq.s32.totalorder %s20, 1
    %p153 = por %p151, %p152
    %p155 = scmp.ne.s32.totalorder %s140, %s154
    %p156 = scmp.eq.s32.totalorder %s20, 0
    %p157 = por %p155, %p156
    %s159 = sadd.s32 %s158, 1
    %p162 = scmp.eq.s32.totalorder %s14, 1
    %p163 = scmp.ne.s32.totalorder %s158, %s160
    %p164 = scmp.eq.s32.totalorder %s14, 0
    %p165 = por %p163, %p164
    %p166 = scmp.ne.s32.totalorder %s158, %s160
    %p167 = scmp.eq.s32.totalorder %s19, 1
    %p168 = por %p166, %p167
    %p169 = scmp.ne.s32.totalorder %s160, %s161
    %p170 = scmp.eq.s32.totalorder %s19, 0
    %p171 = por %p169, %p170
    %p172 = scmp.ne.s32.totalorder %s160, %s161
    %p173 = scmp.eq.s32.totalorder %s20, 1
    %p174 = por %p172, %p173
    %p176 = scmp.ne.s32.totalorder %s161, %s175
    %p177 = scmp.eq.s32.totalorder %s20, 0
    %p178 = por %p176, %p177
    %s180 = sadd.s32 %s179, 1
    %p183 = scmp.eq.s32.totalorder %s14, 1
    %p184 = scmp.ne.s32.totalorder %s179, %s181
    %p185 = scmp.eq.s32.totalorder %s14, 0
    %p186 = por %p184, %p185
    %p187 = scmp.ne.s32.totalorder %s179, %s181
    %p188 = scmp.eq.s32.totalorder %s19, 1
    %p189 = por %p187, %p188
    %p190 = scmp.ne.s32.totalorder %s181, %s182
    %p191 = scmp.eq.s32.totalorder %s19, 0
    %p192 = por %p190, %p191
    %p193 = scmp.ne.s32.totalorder %s181, %s182
    %p194 = scmp.eq.s32.totalorder %s20, 1
    %p195 = por %p193, %p194
    %p197 = scmp.ne.s32.totalorder %s182, %s196
    %p198 = scmp.eq.s32.totalorder %s20, 0
    %p199 = por %p197, %p198
    %s200 = ssub.s32 %s14, %s21
    %p201 = scmp.eq.s32.totalorder %s200, 0
    %s203 = sadd.s32 %s202, 1
    %s204 = scalar_select %p201, %s202, %s203
    %p207 = pneg %p201
    %p208 = scmp.eq.s32.totalorder %s14, 1
    %p209 = por %p207, %p208
    %p210 = scmp.ne.s32.totalorder %s202, %s205
    %p211 = scmp.eq.s32.totalorder %s14, 0
    %p212 = por %p210, %p211
    %p213 = scmp.ne.s32.totalorder %s202, %s205
    %p214 = scmp.eq.s32.totalorder %s19, 1
    %p215 = por %p213, %p214
    %p216 = scmp.ne.s32.totalorder %s205, %s206
    %p217 = scmp.eq.s32.totalorder %s19, 0
    %p218 = por %p216, %p217
    %p219 = scmp.ne.s32.totalorder %s205, %s206
    %p220 = scmp.eq.s32.totalorder %s20, 1
    %p221 = por %p219, %p220
    %p223 = scmp.ne.s32.totalorder %s206, %s222
    %p224 = scmp.eq.s32.totalorder %s20, 0
    %p225 = por %p223, %p224
    %p226 = scmp.le.s32.totalorder 1, %s14
    %p227 = scmp.lt.s32.totalorder %s14, 3
    %p228 = pnand %p226, %p227
    %p229 = pneg %p228
    // Predicated region
    $region9: #{multihead_self_attention.1} parent=5 // pred_check
      _
    $region10: #{multihead_self_attention.1} parent=5 // pred_check_branch
      %231 = sbr.rel (%p228) target = $region12
    $region11: #{multihead_self_attention.1} parent=5 // pred_region
      %s232 = ssub.s32 %s14, 1
      // Predicated region
      $region13: #{multihead_self_attention.1} parent=11 // pred_check
        %p233 = pneg %p87
      $region14: #{multihead_self_attention.1} parent=11 // pred_check_branch
        %235 = sbr.rel (%p233) target = $region16
      $region15: #{multihead_self_attention.1} parent=11 // pred_region
        _
      $region16: #{multihead_self_attention.1} parent=11 // pred_fallthru
        _
      // Predicated region
      $region17: #{multihead_self_attention.1} parent=11 // pred_check
        %p236 = pneg %p108
      $region18: #{multihead_self_attention.1} parent=11 // pred_check_branch
        %238 = sbr.rel (%p236) target = $region20
      $region19: #{multihead_self_attention.1} parent=11 // pred_region
        _
      $region20: #{multihead_self_attention.1} parent=11 // pred_fallthru
        _
      // Predicated region
      $region21: #{multihead_self_attention.1} parent=11 // pred_check
        %p239 = pneg %p129
      $region22: #{multihead_self_attention.1} parent=11 // pred_check_branch
        %241 = sbr.rel (%p239) target = $region24
      $region23: #{multihead_self_attention.1} parent=11 // pred_region
        _
      $region24: #{multihead_self_attention.1} parent=11 // pred_fallthru
        _
      // Predicated region
      $region25: #{multihead_self_attention.1} parent=11 // pred_check
        %p242 = pneg %p150
      $region26: #{multihead_self_attention.1} parent=11 // pred_check_branch
        %244 = sbr.rel (%p242) target = $region28
      $region27: #{multihead_self_attention.1} parent=11 // pred_region
        _
      $region28: #{multihead_self_attention.1} parent=11 // pred_fallthru
        _
      // Predicated region
      $region29: #{multihead_self_attention.1} parent=11 // pred_check
        %p245 = pneg %p171
      $region30: #{multihead_self_attention.1} parent=11 // pred_check_branch
        %247 = sbr.rel (%p245) target = $region32
      $region31: #{multihead_self_attention.1} parent=11 // pred_region
        _
      $region32: #{multihead_self_attention.1} parent=11 // pred_fallthru
        _
      // Predicated region
      $region33: #{multihead_self_attention.1} parent=11 // pred_check
        %p248 = pneg %p192
      $region34: #{multihead_self_attention.1} parent=11 // pred_check_branch
        %250 = sbr.rel (%p248) target = $region36
      $region35: #{multihead_self_attention.1} parent=11 // pred_region
        _
      $region36: #{multihead_self_attention.1} parent=11 // pred_fallthru
        _
    $region12: #{multihead_self_attention.1} parent=5 // pred_fallthru
      _
    %p251 = scmp.lt.s32.totalorder %s14, 2
    // Predicated region
    $region37: #{multihead_self_attention.1} parent=5 // pred_check
      %p252 = pneg %p251
    $region38: #{multihead_self_attention.1} parent=5 // pred_check_branch
      %254 = sbr.rel (%p252) target = $region40
    $region39: #{multihead_self_attention.1} parent=5 // pred_region
      // Predicated region
      $region41: #{multihead_self_attention.1} parent=39 // pred_check
        %p255 = pneg %p34
      $region42: #{multihead_self_attention.1} parent=39 // pred_check_branch
        %257 = sbr.rel (%p255) target = $region44
      $region43: #{multihead_self_attention.1} parent=39 // pred_region
        %p258 = scmp.lt.s32.totalorder %s14, 1
        %s259 = scalar_select %p258, %s14, 1
        %s260 = smul.addr %s259, 8
        %s261 = smul.addr %s260, 8
        %s262 = scalar_lea.vmem %s0, %s261
      $region44: #{multihead_self_attention.1} parent=39 // pred_fallthru
        _
      // Predicated region
      $region45: #{multihead_self_attention.1} parent=39 // pred_check
        %p263 = pneg %p60
      $region46: #{multihead_self_attention.1} parent=39 // pred_check_branch
        %265 = sbr.rel (%p263) target = $region48
      $region47: #{multihead_self_attention.1} parent=39 // pred_region
        %p266 = scmp.lt.s32.totalorder %s14, 1
        %s267 = scalar_select %p266, %s14, 1
        %s268 = smul.addr %s267, 4
        %s269 = smul.addr %s268, 8
        %s270 = scalar_lea.vmem %s1, %s269
      $region48: #{multihead_self_attention.1} parent=39 // pred_fallthru
        _
    $region40: #{multihead_self_attention.1} parent=5 // pred_fallthru
      _
    %p271 = scmp.le.s32.totalorder 1, %s14
    %p272 = scmp.lt.s32.totalorder %s14, 3
    %p273 = pnand %p271, %p272
    %p274 = pneg %p273
    // Predicated region
    $region49: #{multihead_self_attention.1} parent=5 // pred_check
      _
    $region50: #{multihead_self_attention.1} parent=5 // pred_check_branch
      %276 = sbr.rel (%p273) target = $region52
    $region51: #{multihead_self_attention.1} parent=5 // pred_region
      %s277 = ssub.s32 %s14, 1
      %p278 = scmp.lt.s32.totalorder %s19, 1
      %s279 = scalar_select %p278, %s19, 1
      %s280 = smul.addr %s279, 8
      %s281 = smul.addr %s280, 8
      %s282 = scalar_lea.vmem %s0, %s281
      %p283 = pneg %p40
      %p284 = pneg %p37
      %p285 = scmp.lt.s32.totalorder %s19, 1
      %s286 = scalar_select %p285, %s19, 1
      %s287 = smul.addr %s286, 4
      %s288 = smul.addr %s287, 8
      %s289 = scalar_lea.vmem %s1, %s288
      %p290 = pneg %p66
      %p291 = pneg %p63
      %p292 = pneg %p87
      %p293 = pneg %p84
      %p294 = pneg %p108
      %p295 = pneg %p105
      %p296 = pneg %p129
      %p297 = pneg %p126
      %p298 = pneg %p150
      %p299 = pneg %p147
      %p300 = pneg %p171
      %p301 = pneg %p168
      %p302 = pneg %p192
      %p303 = pneg %p189
      %p304 = pneg %p218
      %p305 = pneg %p215
      %p306 = scmp.lt.s32.totalorder %s19, 1
      %s307 = scalar_select %p306, %s19, 1
      %s308 = smul.addr %s307, 8
      %s309 = smul.addr %s308, 8
      %s310 = scalar_lea.vmem %s8, %s309
      %p311 = scmp.lt.s32.totalorder %s19, 1
      %s312 = scalar_select %p311, %s19, 1
      %s313 = smul.addr %s312, 8
      %s314 = smul.addr %s313, 8
      %s315 = scalar_lea.vmem %s0, %s314
      %p316 = scmp.lt.s32.totalorder %s19, 1
      %s317 = scalar_select %p316, %s19, 1
      %s318 = smul.addr %s317, 4
      %s319 = smul.addr %s318, 8
      %s320 = scalar_lea.vmem %s1, %s319
      %p321 = scmp.lt.s32.totalorder %s19, 1
      %s322 = scalar_select %p321, %s19, 1
      %s323 = smul.addr %s322, 8
      %s324 = smul.addr %s323, 8
      %s325 = scalar_lea.vmem %s8, %s324
      %v326 = vld [vmem:[%s315] sm:$0xff]
      %v327 = vld [vmem:[%s315 + $0x8] sm:$0xff]
      %v328 = vld [vmem:[%s315 + $0x10] sm:$0xff]
      %v329 = vld [vmem:[%s315 + $0x18] sm:$0xff]
      %v330 = vld [vmem:[%s315 + $0x20] sm:$0xff]
      %v331 = vld [vmem:[%s315 + $0x28] sm:$0xff]
      %v332 = vld [vmem:[%s315 + $0x30] sm:$0xff]
      %v333 = vld [vmem:[%s315 + $0x38] sm:$0xff]
      %v334 = vld [vmem:[%s320] sm:$0xff]
      %v335 = vld [vmem:[%s320 + $0x8] sm:$0xff]
      %v336 = vld [vmem:[%s320 + $0x10] sm:$0xff]
      %v337 = vld [vmem:[%s320 + $0x18] sm:$0xff]
      %v338 = vlaneseq
      %v339 = vshrl.u32 %v338, 7
      %v340 = vadd.s32 %v339, 8
      %v341 = vadd.s32 %v339, 16
      %v342 = vadd.s32 %v339, 24
      %v343 = vadd.s32 %v339, 32
      %v344 = vadd.s32 %v339, 40
      %v345 = vadd.s32 %v339, 48
      %v346 = vadd.s32 %v339, 56
      %v347 = vlaneseq
      %v348 = vand.u32 %v347, 127
      %vm349 = vcmp.eq.s32.totalorder %v339, %v348
      %vm350 = vcmp.eq.s32.totalorder %v340, %v348
      %vm351 = vcmp.eq.s32.totalorder %v341, %v348
      %vm352 = vcmp.eq.s32.totalorder %v342, %v348
      %vm353 = vcmp.eq.s32.totalorder %v343, %v348
      %vm354 = vcmp.eq.s32.totalorder %v344, %v348
      %vm355 = vcmp.eq.s32.totalorder %v345, %v348
      %vm356 = vcmp.eq.s32.totalorder %v346, %v348
      %v357 = vsel %vm349, 1, 0
      %v358 = vsel %vm350, 1, 0
      %v359 = vsel %vm351, 1, 0
      %v360 = vsel %vm352, 1, 0
      %v361 = vsel %vm353, 1, 0
      %v362 = vsel %vm354, 1, 0
      %v363 = vsel %vm355, 1, 0
      %v364 = vsel %vm356, 1, 0
      %v365 = vcvt.s32.f32 %v357
      %v366 = vcvt.s32.f32 %v358
      %v367 = vcvt.s32.f32 %v359
      %v368 = vcvt.s32.f32 %v360
      %v369 = vcvt.s32.f32 %v361
      %v370 = vcvt.s32.f32 %v362
      %v371 = vcvt.s32.f32 %v363
      %v372 = vcvt.s32.f32 %v364
      %vm373 = vcmask 523264
      %v375 = vsel %vm373, %v365, 0
      %v378 = vsel %vm373, %v366, 0
      %v381 = vsel %vm373, %v367, 0
      %v384 = vsel %vm373, %v368, 0
      %v387 = vsel %vm373, %v369, 0
      %v390 = vsel %vm373, %v370, 0
      %v393 = vsel %vm373, %v371, 0
      %v396 = vsel %vm373, %v372, 0
      %v399 = vsel %vm373, %v334, 0
      %v402 = vsel %vm373, %v335, 0
      %v405 = vsel %vm373, %v336, 0
      %v408 = vsel %vm373, %v337, 0
      %410 = vmatprep.subr.mxu0 0.0
      %411 = vmatpush1.xpose.msra.mxu0 %v399
      %412 = vmatprep.subr.mxu0 0.0
      %413 = vmatpush1.xpose.msra.mxu0 %v402
      %414 = vmatprep.subr.mxu0 0.0
      %415 = vmatpush1.xpose.msra.mxu0 %v405
      %416 = vmatprep.subr.mxu0 0.0
      %417 = vmatpush1.xpose.msra.mxu0 %v408
      %418 = vmatprep.subr.mxu0 0.0
      %419 = vmatpush1.xpose.msra.mxu0 0.0
      %420 = vmatprep.subr.mxu0 0.0
      %421 = vmatpush1.xpose.msra.mxu0 0.0
      %422 = vmatprep.subr.mxu0 0.0
      %423 = vmatpush1.xpose.msra.mxu0 0.0
      %424 = vmatprep.subr.mxu0 0.0
      %425 = vmatpush1.xpose.msra.mxu0 0.0
      %426 = vmatprep.subr.mxu0 0.0
      %427 = vmatpush1.xpose.msra.mxu0 0.0
      %428 = vmatprep.subr.mxu0 0.0
      %429 = vmatpush1.xpose.msra.mxu0 0.0
      %430 = vmatprep.subr.mxu0 0.0
      %431 = vmatpush1.xpose.msra.mxu0 0.0
      %432 = vmatprep.subr.mxu0 0.0
      %433 = vmatpush1.xpose.msra.mxu0 0.0
      %434 = vmatprep.subr.mxu0 0.0
      %435 = vmatpush1.xpose.msra.mxu0 0.0
      %436 = vmatprep.subr.mxu0 0.0
      %437 = vmatpush1.xpose.msra.mxu0 0.0
      %438 = vmatprep.subr.mxu0 0.0
      %439 = vmatpush1.xpose.msra.mxu0 0.0
      %440 = vmatprep.subr.mxu0 0.0
      %441 = vmatpush1.xpose.msra.mxu0 0.0
      %442 = vmatprep.subr.mxu0 0.0
      %443 = vmatpush1.xpose.msra.mxu0 0.0
      %444 = vmatprep.subr.mxu0 0.0
      %445 = vmatpush1.xpose.msra.mxu0 0.0
      %446 = vmatprep.subr.mxu0 0.0
      %447 = vmatpush1.xpose.msra.mxu0 0.0
      %448 = vmatprep.subr.mxu0 0.0
      %449 = vmatpush1.xpose.msra.mxu0 0.0
      %450 = vmatprep.subr.mxu0 0.0
      %451 = vmatpush1.xpose.msra.mxu0 0.0
      %452 = vmatprep.subr.mxu0 0.0
      %453 = vmatpush1.xpose.msra.mxu0 0.0
      %454 = vmatprep.subr.mxu0 0.0
      %455 = vmatpush1.xpose.msra.mxu0 0.0
      %456 = vmatprep.subr.mxu0 0.0
      %457 = vmatpush1.xpose.msra.mxu0 0.0
      %458 = vmatprep.subr.mxu0 0.0
      %459 = vmatpush1.xpose.msra.mxu0 0.0
      %460 = vmatprep.subr.mxu0 0.0
      %461 = vmatpush1.xpose.msra.mxu0 0.0
      %462 = vmatprep.subr.mxu0 0.0
      %463 = vmatpush1.xpose.msra.mxu0 0.0
      %464 = vmatprep.subr.mxu0 0.0
      %465 = vmatpush1.xpose.msra.mxu0 0.0
      %466 = vmatprep.subr.mxu0 0.0
      %467 = vmatpush1.xpose.msra.mxu0 0.0
      %468 = vmatprep.subr.mxu0 0.0
      %469 = vmatpush1.xpose.msra.mxu0 0.0
      %470 = vmatprep.subr.mxu0 0.0
      %471 = vmatpush1.xpose.msra.mxu0 0.0
      %472 = vmatprep.subr.mxu0 0.0
      %473 = vmatpush1.xpose.msra.mxu0 0.0
      %474 = vmatprep.mubr.f32.mxu0 0.0
      %475 = vmatmul.mubr.f32.gmra.mrb[0].mxu0 %v375
      %v476 = vpop.f32.mrb[0].mxu0
      %v477 = vadd.f32 0.0, %v476
      %v478 = vpop.f32.mrb[0].mxu0
      %479 = vmatprep.mubr.f32.mxu0 0.0
      %480 = vmatmul.mubr.f32.gmra.mrb[0].mxu0 %v378
      %v481 = vpop.f32.mrb[0].mxu0
      %v482 = vadd.f32 0.0, %v481
      %v483 = vpop.f32.mrb[0].mxu0
      %484 = vmatprep.mubr.f32.mxu0 0.0
      %485 = vmatmul.mubr.f32.gmra.mrb[0].mxu0 %v381
      %v486 = vpop.f32.mrb[0].mxu0
      %v487 = vadd.f32 0.0, %v486
      %v488 = vpop.f32.mrb[0].mxu0
      %489 = vmatprep.mubr.f32.mxu0 0.0
      %490 = vmatmul.mubr.f32.gmra.mrb[0].mxu0 %v384
      %v491 = vpop.f32.mrb[0].mxu0
      %v492 = vadd.f32 0.0, %v491
      %v493 = vpop.f32.mrb[0].mxu0
      %494 = vmatprep.mubr.f32.mxu0 0.0
      %495 = vmatmul.mubr.f32.gmra.mrb[0].mxu0 %v387
      %v496 = vpop.f32.mrb[0].mxu0
      %v497 = vadd.f32 0.0, %v496
      %v498 = vpop.f32.mrb[0].mxu0
      %499 = vmatprep.mubr.f32.mxu0 0.0
      %500 = vmatmul.mubr.f32.gmra.mrb[0].mxu0 %v390
      %v501 = vpop.f32.mrb[0].mxu0
      %v502 = vadd.f32 0.0, %v501
      %v503 = vpop.f32.mrb[0].mxu0
      %504 = vmatprep.mubr.f32.mxu0 0.0
      %505 = vmatmul.mubr.f32.gmra.mrb[0].mxu0 %v393
      %v506 = vpop.f32.mrb[0].mxu0
      %v507 = vadd.f32 0.0, %v506
      %v508 = vpop.f32.mrb[0].mxu0
      %509 = vmatprep.mubr.f32.mxu0 0.0
      %510 = vmatmul.mubr.f32.gmra.mrb[0].mxu0 %v396
      %v511 = vpop.f32.mrb[0].mxu0
      %v512 = vadd.f32 0.0, %v511
      %v513 = vpop.f32.mrb[0].mxu0
      %514 = vdwg.mxu0
      %v515 = vld [vmem:[%s2] sm:$0xff]
      %v516 = vld [vmem:[%s2 + $0x8] sm:$0xff]
      %v517 = vld [vmem:[%s2 + $0x10] sm:$0xff]
      %v518 = vld [vmem:[%s2 + $0x18] sm:$0xff]
      %v519 = vld [vmem:[%s7] sm:$0x1]
      %v521 = vlaneseq
      %v522 = vshrl.u32 %v521, 7
      %v523 = vsub.s32 0, %v522
      %v524 = vrot.slane %v519, %v523
      %vm526 = vcmask 261120
      %v528 = vsel %vm526, %v326, 0
      %v531 = vsel %vm526, %v327, 0
      %v534 = vsel %vm526, %v328, 0
      %v537 = vsel %vm526, %v329, 0
      %v540 = vsel %vm526, %v330, 0
      %v543 = vsel %vm526, %v331, 0
      %v546 = vsel %vm526, %v332, 0
      %v549 = vsel %vm526, %v333, 0
      %551 = vmatprep.subr.mxu0 0.0
      %552 = vmatpush1.msra.mxu0 %v515
      %553 = vmatprep.subr.mxu0 0.0
      %554 = vmatpush1.msra.mxu0 %v516
      %555 = vmatprep.subr.mxu0 0.0
      %556 = vmatpush1.msra.mxu0 %v517
      %557 = vmatprep.subr.mxu0 0.0
      %558 = vmatpush1.msra.mxu0 %v518
      %559 = vmatprep.subr.mxu0 0.0
      %560 = vmatpush1.msra.mxu0 0.0
      %561 = vmatprep.subr.mxu0 0.0
      %562 = vmatpush1.msra.mxu0 0.0
      %563 = vmatprep.subr.mxu0 0.0
      %564 = vmatpush1.msra.mxu0 0.0
      %565 = vmatprep.subr.mxu0 0.0
      %566 = vmatpush1.msra.mxu0 0.0
      %567 = vmatprep.subr.mxu0 0.0
      %568 = vmatpush1.msra.mxu0 0.0
      %569 = vmatprep.subr.mxu0 0.0
      %570 = vmatpush1.msra.mxu0 0.0
      %571 = vmatprep.subr.mxu0 0.0
      %572 = vmatpush1.msra.mxu0 0.0
      %573 = vmatprep.subr.mxu0 0.0
      %574 = vmatpush1.msra.mxu0 0.0
      %575 = vmatprep.subr.mxu0 0.0
      %576 = vmatpush1.msra.mxu0 0.0
      %577 = vmatprep.subr.mxu0 0.0
      %578 = vmatpush1.msra.mxu0 0.0
      %579 = vmatprep.subr.mxu0 0.0
      %580 = vmatpush1.msra.mxu0 0.0
      %581 = vmatprep.subr.mxu0 0.0
      %582 = vmatpush1.msra.mxu0 0.0
      %583 = vmatprep.subr.mxu0 0.0
      %584 = vmatpush1.msra.mxu0 0.0
      %585 = vmatprep.subr.mxu0 0.0
      %586 = vmatpush1.msra.mxu0 0.0
      %587 = vmatprep.subr.mxu0 0.0
      %588 = vmatpush1.msra.mxu0 0.0
      %589 = vmatprep.subr.mxu0 0.0
      %590 = vmatpush1.msra.mxu0 0.0
      %591 = vmatprep.subr.mxu0 0.0
      %592 = vmatpush1.msra.mxu0 0.0
      %593 = vmatprep.subr.mxu0 0.0
      %594 = vmatpush1.msra.mxu0 0.0
      %595 = vmatprep.subr.mxu0 0.0
      %596 = vmatpush1.msra.mxu0 0.0
      %597 = vmatprep.subr.mxu0 0.0
      %598 = vmatpush1.msra.mxu0 0.0
      %599 = vmatprep.subr.mxu0 0.0
      %600 = vmatpush1.msra.mxu0 0.0
      %601 = vmatprep.subr.mxu0 0.0
      %602 = vmatpush1.msra.mxu0 0.0
      %603 = vmatprep.subr.mxu0 0.0
      %604 = vmatpush1.msra.mxu0 0.0
      %605 = vmatprep.subr.mxu0 0.0
      %606 = vmatpush1.msra.mxu0 0.0
      %607 = vmatprep.subr.mxu0 0.0
      %608 = vmatpush1.msra.mxu0 0.0
      %609 = vmatprep.subr.mxu0 0.0
      %610 = vmatpush1.msra.mxu0 0.0
      %611 = vmatprep.subr.mxu0 0.0
      %612 = vmatpush1.msra.mxu0 0.0
      %613 = vmatprep.subr.mxu0 0.0
      %614 = vmatpush1.msra.mxu0 0.0
      %615 = vmatprep.mubr.f32.mxu0 0.0
      %616 = vmatmul.mubr.f32.gmra.mrb[0].mxu0 %v528
      %v617 = vpop.f32.mrb[0].mxu0
      %v618 = vadd.f32 %v524, %v617
      %v619 = vpop.f32.mrb[0].mxu0
      %620 = vmatprep.mubr.f32.mxu0 0.0
      %621 = vmatmul.mubr.f32.gmra.mrb[0].mxu0 %v531
      %v622 = vpop.f32.mrb[0].mxu0
      %v623 = vadd.f32 %v524, %v622
      %v624 = vpop.f32.mrb[0].mxu0
      %625 = vmatprep.mubr.f32.mxu0 0.0
      %626 = vmatmul.mubr.f32.gmra.mrb[0].mxu0 %v534
      %v627 = vpop.f32.mrb[0].mxu0
      %v628 = vadd.f32 %v524, %v627
      %v629 = vpop.f32.mrb[0].mxu0
      %630 = vmatprep.mubr.f32.mxu0 0.0
      %631 = vmatmul.mubr.f32.gmra.mrb[0].mxu0 %v537
      %v632 = vpop.f32.mrb[0].mxu0
      %v633 = vadd.f32 %v524, %v632
      %v634 = vpop.f32.mrb[0].mxu0
      %635 = vmatprep.mubr.f32.mxu0 0.0
      %636 = vmatmul.mubr.f32.gmra.mrb[0].mxu0 %v540
      %v637 = vpop.f32.mrb[0].mxu0
      %v638 = vadd.f32 %v524, %v637
      %v639 = vpop.f32.mrb[0].mxu0
      %640 = vmatprep.mubr.f32.mxu0 0.0
      %641 = vmatmul.mubr.f32.gmra.mrb[0].mxu0 %v543
      %v642 = vpop.f32.mrb[0].mxu0
      %v643 = vadd.f32 %v524, %v642
      %v644 = vpop.f32.mrb[0].mxu0
      %645 = vmatprep.mubr.f32.mxu0 0.0
      %646 = vmatmul.mubr.f32.gmra.mrb[0].mxu0 %v546
      %v647 = vpop.f32.mrb[0].mxu0
      %v648 = vadd.f32 %v524, %v647
      %v649 = vpop.f32.mrb[0].mxu0
      %650 = vmatprep.mubr.f32.mxu0 0.0
      %651 = vmatmul.mubr.f32.gmra.mrb[0].mxu0 %v549
      %v652 = vpop.f32.mrb[0].mxu0
      %v653 = vadd.f32 %v524, %v652
      %v654 = vpop.f32.mrb[0].mxu0
      %655 = vdwg.mxu0
      %v656 = vld [vmem:[%s3] sm:$0xff]
      %v657 = vld [vmem:[%s3 + $0x8] sm:$0xff]
      %v658 = vld [vmem:[%s3 + $0x10] sm:$0xff]
      %v659 = vld [vmem:[%s3 + $0x18] sm:$0xff]
      %v661 = vsel %vm526, %v477, 0
      %v664 = vsel %vm526, %v482, 0
      %v667 = vsel %vm526, %v487, 0
      %v670 = vsel %vm526, %v492, 0
      %v673 = vsel %vm526, %v497, 0
      %v676 = vsel %vm526, %v502, 0
      %v679 = vsel %vm526, %v507, 0
      %v682 = vsel %vm526, %v512, 0
      %684 = vmatprep.subr.mxu0 0.0
      %685 = vmatpush1.msra.mxu0 %v656
      %686 = vmatprep.subr.mxu0 0.0
      %687 = vmatpush1.msra.mxu0 %v657
      %688 = vmatprep.subr.mxu0 0.0
      %689 = vmatpush1.msra.mxu0 %v658
      %690 = vmatprep.subr.mxu0 0.0
      %691 = vmatpush1.msra.mxu0 %v659
      %692 = vmatprep.subr.mxu0 0.0
      %693 = vmatpush1.msra.mxu0 0.0
      %694 = vmatprep.subr.mxu0 0.0
      %695 = vmatpush1.msra.mxu0 0.0
      %696 = vmatprep.subr.mxu0 0.0
      %697 = vmatpush1.msra.mxu0 0.0
      %698 = vmatprep.subr.mxu0 0.0
      %699 = vmatpush1.msra.mxu0 0.0
      %700 = vmatprep.subr.mxu0 0.0
      %701 = vmatpush1.msra.mxu0 0.0
      %702 = vmatprep.subr.mxu0 0.0
      %703 = vmatpush1.msra.mxu0 0.0
      %704 = vmatprep.subr.mxu0 0.0
      %705 = vmatpush1.msra.mxu0 0.0
      %706 = vmatprep.subr.mxu0 0.0
      %707 = vmatpush1.msra.mxu0 0.0
      %708 = vmatprep.subr.mxu0 0.0
      %709 = vmatpush1.msra.mxu0 0.0
      %710 = vmatprep.subr.mxu0 0.0
      %711 = vmatpush1.msra.mxu0 0.0
      %712 = vmatprep.subr.mxu0 0.0
      %713 = vmatpush1.msra.mxu0 0.0
      %714 = vmatprep.subr.mxu0 0.0
      %715 = vmatpush1.msra.mxu0 0.0
      %716 = vmatprep.subr.mxu0 0.0
      %717 = vmatpush1.msra.mxu0 0.0
      %718 = vmatprep.subr.mxu0 0.0
      %719 = vmatpush1.msra.mxu0 0.0
      %720 = vmatprep.subr.mxu0 0.0
      %721 = vmatpush1.msra.mxu0 0.0
      %722 = vmatprep.subr.mxu0 0.0
      %723 = vmatpush1.msra.mxu0 0.0
      %724 = vmatprep.subr.mxu0 0.0
      %725 = vmatpush1.msra.mxu0 0.0
      %726 = vmatprep.subr.mxu0 0.0
      %727 = vmatpush1.msra.mxu0 0.0
      %728 = vmatprep.subr.mxu0 0.0
      %729 = vmatpush1.msra.mxu0 0.0
      %730 = vmatprep.subr.mxu0 0.0
      %731 = vmatpush1.msra.mxu0 0.0
      %732 = vmatprep.subr.mxu0 0.0
      %733 = vmatpush1.msra.mxu0 0.0
      %734 = vmatprep.subr.mxu0 0.0
      %735 = vmatpush1.msra.mxu0 0.0
      %736 = vmatprep.subr.mxu0 0.0
      %737 = vmatpush1.msra.mxu0 0.0
      %738 = vmatprep.subr.mxu0 0.0
      %739 = vmatpush1.msra.mxu0 0.0
      %740 = vmatprep.subr.mxu0 0.0
      %741 = vmatpush1.msra.mxu0 0.0
      %742 = vmatprep.subr.mxu0 0.0
      %743 = vmatpush1.msra.mxu0 0.0
      %744 = vmatprep.subr.mxu0 0.0
      %745 = vmatpush1.msra.mxu0 0.0
      %746 = vmatprep.subr.mxu0 0.0
      %747 = vmatpush1.msra.mxu0 0.0
      %748 = vmatprep.mubr.f32.mxu0 0.0
      %749 = vmatmul.mubr.f32.gmra.mrb[0].mxu0 %v661
      %v750 = vpop.f32.mrb[0].mxu0
      %v751 = vadd.f32 0.0, %v750
      %v752 = vpop.f32.mrb[0].mxu0
      %753 = vmatprep.mubr.f32.mxu0 0.0
      %754 = vmatmul.mubr.f32.gmra.mrb[0].mxu0 %v664
      %v755 = vpop.f32.mrb[0].mxu0
      %v756 = vadd.f32 0.0, %v755
      %v757 = vpop.f32.mrb[0].mxu0
      %758 = vmatprep.mubr.f32.mxu0 0.0
      %759 = vmatmul.mubr.f32.gmra.mrb[0].mxu0 %v667
      %v760 = vpop.f32.mrb[0].mxu0
      %v761 = vadd.f32 0.0, %v760
      %v762 = vpop.f32.mrb[0].mxu0
      %763 = vmatprep.mubr.f32.mxu0 0.0
      %764 = vmatmul.mubr.f32.gmra.mrb[0].mxu0 %v670
      %v765 = vpop.f32.mrb[0].mxu0
      %v766 = vadd.f32 0.0, %v765
      %v767 = vpop.f32.mrb[0].mxu0
      %768 = vmatprep.mubr.f32.mxu0 0.0
      %769 = vmatmul.mubr.f32.gmra.mrb[0].mxu0 %v673
      %v770 = vpop.f32.mrb[0].mxu0
      %v771 = vadd.f32 0.0, %v770
      %v772 = vpop.f32.mrb[0].mxu0
      %773 = vmatprep.mubr.f32.mxu0 0.0
      %774 = vmatmul.mubr.f32.gmra.mrb[0].mxu0 %v676
      %v775 = vpop.f32.mrb[0].mxu0
      %v776 = vadd.f32 0.0, %v775
      %v777 = vpop.f32.mrb[0].mxu0
      %778 = vmatprep.mubr.f32.mxu0 0.0
      %779 = vmatmul.mubr.f32.gmra.mrb[0].mxu0 %v679
      %v780 = vpop.f32.mrb[0].mxu0
      %v781 = vadd.f32 0.0, %v780
      %v782 = vpop.f32.mrb[0].mxu0
      %783 = vmatprep.mubr.f32.mxu0 0.0
      %784 = vmatmul.mubr.f32.gmra.mrb[0].mxu0 %v682
      %v785 = vpop.f32.mrb[0].mxu0
      %v786 = vadd.f32 0.0, %v785
      %v787 = vpop.f32.mrb[0].mxu0
      %788 = vdwg.mxu0
      %s789 = scalar_lea.vmem %s7, 1
      %v790 = vld [vmem:[%s789] sm:$0x1]
      %v792 = vlaneseq
      %v793 = vshrl.u32 %v792, 7
      %v794 = vsub.s32 0, %v793
      %v795 = vrot.slane %v790, %v794
      %v797 = vadd.f32 %v751, %v795
      %v798 = vadd.f32 %v756, %v795
      %v799 = vadd.f32 %v761, %v795
      %v800 = vadd.f32 %v766, %v795
      %v801 = vadd.f32 %v771, %v795
      %v802 = vadd.f32 %v776, %v795
      %v803 = vadd.f32 %v781, %v795
      %v804 = vadd.f32 %v786, %v795
      %s805 = scalar_lea.vmem %s7, 2
      %v806 = vld [vmem:[%s805] sm:$0x1]
      %v808 = vlaneseq
      %v809 = vshrl.u32 %v808, 7
      %v810 = vsub.s32 0, %v809
      %v811 = vrot.slane %v806, %v810
      %812 = vrot.lane.b32.xlu0 %v811, 32
      %v813 = vpop.permute.xlu0 %812
      %v815 = vadd.f32 %v751, %v813
      %v816 = vadd.f32 %v756, %v813
      %v817 = vadd.f32 %v761, %v813
      %v818 = vadd.f32 %v766, %v813
      %v819 = vadd.f32 %v771, %v813
      %v820 = vadd.f32 %v776, %v813
      %v821 = vadd.f32 %v781, %v813
      %v822 = vadd.f32 %v786, %v813
      %vm823 = vcmask 64512
      %v825 = vsel %vm823, %v618, 0
      %v828 = vsel %vm823, %v623, 0
      %v831 = vsel %vm823, %v628, 0
      %v834 = vsel %vm823, %v633, 0
      %v837 = vsel %vm823, %v638, 0
      %v840 = vsel %vm823, %v643, 0
      %v843 = vsel %vm823, %v648, 0
      %v846 = vsel %vm823, %v653, 0
      %v849 = vsel %vm823, %v797, 0
      %v852 = vsel %vm823, %v798, 0
      %v855 = vsel %vm823, %v799, 0
      %v858 = vsel %vm823, %v800, 0
      %v861 = vsel %vm823, %v801, 0
      %v864 = vsel %vm823, %v802, 0
      %v867 = vsel %vm823, %v803, 0
      %v870 = vsel %vm823, %v804, 0
      %872 = vmatprep.subr.mxu0 0.0
      %873 = vmatpush1.xpose.msra.mxu0 %v849
      %874 = vmatprep.subr.mxu0 0.0
      %875 = vmatpush1.xpose.msra.mxu0 %v852
      %876 = vmatprep.subr.mxu0 0.0
      %877 = vmatpush1.xpose.msra.mxu0 %v855
      %878 = vmatprep.subr.mxu0 0.0
      %879 = vmatpush1.xpose.msra.mxu0 %v858
      %880 = vmatprep.subr.mxu0 0.0
      %881 = vmatpush1.xpose.msra.mxu0 %v861
      %882 = vmatprep.subr.mxu0 0.0
      %883 = vmatpush1.xpose.msra.mxu0 %v864
      %884 = vmatprep.subr.mxu0 0.0
      %885 = vmatpush1.xpose.msra.mxu0 %v867
      %886 = vmatprep.subr.mxu0 0.0
      %887 = vmatpush1.xpose.msra.mxu0 %v870
      %888 = vmatprep.subr.mxu0 0.0
      %889 = vmatpush1.xpose.msra.mxu0 0.0
      %890 = vmatprep.subr.mxu0 0.0
      %891 = vmatpush1.xpose.msra.mxu0 0.0
      %892 = vmatprep.subr.mxu0 0.0
      %893 = vmatpush1.xpose.msra.mxu0 0.0
      %894 = vmatprep.subr.mxu0 0.0
      %895 = vmatpush1.xpose.msra.mxu0 0.0
      %896 = vmatprep.subr.mxu0 0.0
      %897 = vmatpush1.xpose.msra.mxu0 0.0
      %898 = vmatprep.subr.mxu0 0.0
      %899 = vmatpush1.xpose.msra.mxu0 0.0
      %900 = vmatprep.subr.mxu0 0.0
      %901 = vmatpush1.xpose.msra.mxu0 0.0
      %902 = vmatprep.subr.mxu0 0.0
      %903 = vmatpush1.xpose.msra.mxu0 0.0
      %904 = vmatprep.subr.mxu0 0.0
      %905 = vmatpush1.xpose.msra.mxu0 0.0
      %906 = vmatprep.subr.mxu0 0.0
      %907 = vmatpush1.xpose.msra.mxu0 0.0
      %908 = vmatprep.subr.mxu0 0.0
      %909 = vmatpush1.xpose.msra.mxu0 0.0
      %910 = vmatprep.subr.mxu0 0.0
      %911 = vmatpush1.xpose.msra.mxu0 0.0
      %912 = vmatprep.subr.mxu0 0.0
      %913 = vmatpush1.xpose.msra.mxu0 0.0
      %914 = vmatprep.subr.mxu0 0.0
      %915 = vmatpush1.xpose.msra.mxu0 0.0
      %916 = vmatprep.subr.mxu0 0.0
      %917 = vmatpush1.xpose.msra.mxu0 0.0
      %918 = vmatprep.subr.mxu0 0.0
      %919 = vmatpush1.xpose.msra.mxu0 0.0
      %920 = vmatprep.subr.mxu0 0.0
      %921 = vmatpush1.xpose.msra.mxu0 0.0
      %922 = vmatprep.subr.mxu0 0.0
      %923 = vmatpush1.xpose.msra.mxu0 0.0
      %924 = vmatprep.subr.mxu0 0.0
      %925 = vmatpush1.xpose.msra.mxu0 0.0
      %926 = vmatprep.subr.mxu0 0.0
      %927 = vmatpush1.xpose.msra.mxu0 0.0
      %928 = vmatprep.subr.mxu0 0.0
      %929 = vmatpush1.xpose.msra.mxu0 0.0
      %930 = vmatprep.subr.mxu0 0.0
      %931 = vmatpush1.xpose.msra.mxu0 0.0
      %932 = vmatprep.subr.mxu0 0.0
      %933 = vmatpush1.xpose.msra.mxu0 0.0
      %934 = vmatprep.subr.mxu0 0.0
      %935 = vmatpush1.xpose.msra.mxu0 0.0
      %936 = vmatprep.mubr.f32.mxu0 0.0
      %937 = vmatmul.mubr.f32.gmra.mrb[0].mxu0 %v825
      %v938 = vpop.f32.mrb[0].mxu0
      %v939 = vadd.f32 0.0, %v938
      %v940 = vpop.f32.mrb[0].mxu0
      %941 = vmatprep.mubr.f32.mxu0 0.0
      %942 = vmatmul.mubr.f32.gmra.mrb[0].mxu0 %v828
      %v943 = vpop.f32.mrb[0].mxu0
      %v944 = vadd.f32 0.0, %v943
      %v945 = vpop.f32.mrb[0].mxu0
      %946 = vmatprep.mubr.f32.mxu0 0.0
      %947 = vmatmul.mubr.f32.gmra.mrb[0].mxu0 %v831
      %v948 = vpop.f32.mrb[0].mxu0
      %v949 = vadd.f32 0.0, %v948
      %v950 = vpop.f32.mrb[0].mxu0
      %951 = vmatprep.mubr.f32.mxu0 0.0
      %952 = vmatmul.mubr.f32.gmra.mrb[0].mxu0 %v834
      %v953 = vpop.f32.mrb[0].mxu0
      %v954 = vadd.f32 0.0, %v953
      %v955 = vpop.f32.mrb[0].mxu0
      %956 = vmatprep.mubr.f32.mxu0 0.0
      %957 = vmatmul.mubr.f32.gmra.mrb[0].mxu0 %v837
      %v958 = vpop.f32.mrb[0].mxu0
      %v959 = vadd.f32 0.0, %v958
      %v960 = vpop.f32.mrb[0].mxu0
      %961 = vmatprep.mubr.f32.mxu0 0.0
      %962 = vmatmul.mubr.f32.gmra.mrb[0].mxu0 %v840
      %v963 = vpop.f32.mrb[0].mxu0
      %v964 = vadd.f32 0.0, %v963
      %v965 = vpop.f32.mrb[0].mxu0
      %966 = vmatprep.mubr.f32.mxu0 0.0
      %967 = vmatmul.mubr.f32.gmra.mrb[0].mxu0 %v843
      %v968 = vpop.f32.mrb[0].mxu0
      %v969 = vadd.f32 0.0, %v968
      %v970 = vpop.f32.mrb[0].mxu0
      %971 = vmatprep.mubr.f32.mxu0 0.0
      %972 = vmatmul.mubr.f32.gmra.mrb[0].mxu0 %v846
      %v973 = vpop.f32.mrb[0].mxu0
      %v974 = vadd.f32 0.0, %v973
      %v975 = vpop.f32.mrb[0].mxu0
      %976 = vdwg.mxu0
      %v977 = vsel %vm373, %v939, -inf
      %978 = vmax.xlane.f32.xlu0 %v977
      %v979 = vpop.xlane.xlu0 %978
      %v980 = vsel %vm373, %v944, -inf
      %981 = vmax.xlane.f32.xlu0 %v980
      %v982 = vpop.xlane.xlu0 %981
      %v983 = vsel %vm373, %v949, -inf
      %984 = vmax.xlane.f32.xlu0 %v983
      %v985 = vpop.xlane.xlu0 %984
      %v986 = vsel %vm373, %v954, -inf
      %987 = vmax.xlane.f32.xlu0 %v986
      %v988 = vpop.xlane.xlu0 %987
      %v989 = vsel %vm373, %v959, -inf
      %990 = vmax.xlane.f32.xlu0 %v989
      %v991 = vpop.xlane.xlu0 %990
      %v992 = vsel %vm373, %v964, -inf
      %993 = vmax.xlane.f32.xlu0 %v992
      %v994 = vpop.xlane.xlu0 %993
      %v995 = vsel %vm373, %v969, -inf
      %996 = vmax.xlane.f32.xlu0 %v995
      %v997 = vpop.xlane.xlu0 %996
      %v998 = vsel %vm373, %v974, -inf
      %999 = vmax.xlane.f32.xlu0 %v998
      %v1000 = vpop.xlane.xlu0 %999
      %v1001 = vsub.f32 %v939, %v979
      %v1002 = vsub.f32 %v944, %v982
      %v1003 = vsub.f32 %v949, %v985
      %v1004 = vsub.f32 %v954, %v988
      %v1005 = vsub.f32 %v959, %v991
      %v1006 = vsub.f32 %v964, %v994
      %v1007 = vsub.f32 %v969, %v997
      %v1008 = vsub.f32 %v974, %v1000
      %v1009 = vmul.f32 %v1001, 1.442695
      %v1010 = vpow.pop %v1009
      %v1011 = vmul.f32 %v1002, 1.442695
      %v1012 = vpow.pop %v1011
      %v1013 = vmul.f32 %v1003, 1.442695
      %v1014 = vpow.pop %v1013
      %v1015 = vmul.f32 %v1004, 1.442695
      %v1016 = vpow.pop %v1015
      %v1017 = vmul.f32 %v1005, 1.442695
      %v1018 = vpow.pop %v1017
      %v1019 = vmul.f32 %v1006, 1.442695
      %v1020 = vpow.pop %v1019
      %v1021 = vmul.f32 %v1007, 1.442695
      %v1022 = vpow.pop %v1021
      %v1023 = vmul.f32 %v1008, 1.442695
      %v1024 = vpow.pop %v1023
      %v1025 = vsel %vm373, %v1010, 0.0
      %1026 = vadd.xlane.f32.xlu0 %v1025
      %v1027 = vpop.xlane.xlu0 %1026
      %v1028 = vsel %vm373, %v1012, 0.0
      %1029 = vadd.xlane.f32.xlu0 %v1028
      %v1030 = vpop.xlane.xlu0 %1029
      %v1031 = vsel %vm373, %v1014, 0.0
      %1032 = vadd.xlane.f32.xlu0 %v1031
      %v1033 = vpop.xlane.xlu0 %1032
      %v1034 = vsel %vm373, %v1016, 0.0
      %1035 = vadd.xlane.f32.xlu0 %v1034
      %v1036 = vpop.xlane.xlu0 %1035
      %v1037 = vsel %vm373, %v1018, 0.0
      %1038 = vadd.xlane.f32.xlu0 %v1037
      %v1039 = vpop.xlane.xlu0 %1038
      %v1040 = vsel %vm373, %v1020, 0.0
      %1041 = vadd.xlane.f32.xlu0 %v1040
      %v1042 = vpop.xlane.xlu0 %1041
      %v1043 = vsel %vm373, %v1022, 0.0
      %1044 = vadd.xlane.f32.xlu0 %v1043
      %v1045 = vpop.xlane.xlu0 %1044
      %v1046 = vsel %vm373, %v1024, 0.0
      %1047 = vadd.xlane.f32.xlu0 %v1046
      %v1048 = vpop.xlane.xlu0 %1047
      %v1049 = vrcp.pop %v1027
      %v1050 = vrcp.pop %v1030
      %v1051 = vrcp.pop %v1033
      %v1052 = vrcp.pop %v1036
      %v1053 = vrcp.pop %v1039
      %v1054 = vrcp.pop %v1042
      %v1055 = vrcp.pop %v1045
      %v1056 = vrcp.pop %v1048
      %v1057 = vmul.f32 %v1010, %v1049
      %v1058 = vmul.f32 %v1012, %v1050
      %v1059 = vmul.f32 %v1014, %v1051
      %v1060 = vmul.f32 %v1016, %v1052
      %v1061 = vmul.f32 %v1018, %v1053
      %v1062 = vmul.f32 %v1020, %v1054
      %v1063 = vmul.f32 %v1022, %v1055
      %v1064 = vmul.f32 %v1024, %v1056
      %1073 = vrot.lane.b32.xlu0 %v815, 96
      %v1074 = vpop.permute.xlu0 %1073
      %1075 = vrot.lane.b32.xlu0 %v816, 96
      %v1076 = vpop.permute.xlu0 %1075
      %1077 = vrot.lane.b32.xlu0 %v817, 96
      %v1078 = vpop.permute.xlu0 %1077
      %1079 = vrot.lane.b32.xlu0 %v818, 96
      %v1080 = vpop.permute.xlu0 %1079
      %1081 = vrot.lane.b32.xlu0 %v819, 96
      %v1082 = vpop.permute.xlu0 %1081
      %1083 = vrot.lane.b32.xlu0 %v820, 96
      %v1084 = vpop.permute.xlu0 %1083
      %1085 = vrot.lane.b32.xlu0 %v821, 96
      %v1086 = vpop.permute.xlu0 %1085
      %1087 = vrot.lane.b32.xlu0 %v822, 96
      %v1088 = vpop.permute.xlu0 %1087
      %v1098 = vsel %vm373, %v1057, 0
      %v1101 = vsel %vm373, %v1058, 0
      %v1104 = vsel %vm373, %v1059, 0
      %v1107 = vsel %vm373, %v1060, 0
      %v1110 = vsel %vm373, %v1061, 0
      %v1113 = vsel %vm373, %v1062, 0
      %v1116 = vsel %vm373, %v1063, 0
      %v1119 = vsel %vm373, %v1064, 0
      %1121 = vmatprep.subr.mxu0 0.0
      %1122 = vmatpush1.msra.mxu0 %v1074
      %1123 = vmatprep.subr.mxu0 0.0
      %1124 = vmatpush1.msra.mxu0 %v1076
      %1125 = vmatprep.subr.mxu0 0.0
      %1126 = vmatpush1.msra.mxu0 %v1078
      %1127 = vmatprep.subr.mxu0 0.0
      %1128 = vmatpush1.msra.mxu0 %v1080
      %1129 = vmatprep.subr.mxu0 0.0
      %1130 = vmatpush1.msra.mxu0 %v1082
      %1131 = vmatprep.subr.mxu0 0.0
      %1132 = vmatpush1.msra.mxu0 %v1084
      %1133 = vmatprep.subr.mxu0 0.0
      %1134 = vmatpush1.msra.mxu0 %v1086
      %1135 = vmatprep.subr.mxu0 0.0
      %1136 = vmatpush1.msra.mxu0 %v1088
      %1137 = vmatprep.subr.mxu0 0.0
      %1138 = vmatpush1.msra.mxu0 0.0
      %1139 = vmatprep.subr.mxu0 0.0
      %1140 = vmatpush1.msra.mxu0 0.0
      %1141 = vmatprep.subr.mxu0 0.0
      %1142 = vmatpush1.msra.mxu0 0.0
      %1143 = vmatprep.subr.mxu0 0.0
      %1144 = vmatpush1.msra.mxu0 0.0
      %1145 = vmatprep.subr.mxu0 0.0
      %1146 = vmatpush1.msra.mxu0 0.0
      %1147 = vmatprep.subr.mxu0 0.0
      %1148 = vmatpush1.msra.mxu0 0.0
      %1149 = vmatprep.subr.mxu0 0.0
      %1150 = vmatpush1.msra.mxu0 0.0
      %1151 = vmatprep.subr.mxu0 0.0
      %1152 = vmatpush1.msra.mxu0 0.0
      %1153 = vmatprep.subr.mxu0 0.0
      %1154 = vmatpush1.msra.mxu0 0.0
      %1155 = vmatprep.subr.mxu0 0.0
      %1156 = vmatpush1.msra.mxu0 0.0
      %1157 = vmatprep.subr.mxu0 0.0
      %1158 = vmatpush1.msra.mxu0 0.0
      %1159 = vmatprep.subr.mxu0 0.0
      %1160 = vmatpush1.msra.mxu0 0.0
      %1161 = vmatprep.subr.mxu0 0.0
      %1162 = vmatpush1.msra.mxu0 0.0
      %1163 = vmatprep.subr.mxu0 0.0
      %1164 = vmatpush1.msra.mxu0 0.0
      %1165 = vmatprep.subr.mxu0 0.0
      %1166 = vmatpush1.msra.mxu0 0.0
      %1167 = vmatprep.subr.mxu0 0.0
      %1168 = vmatpush1.msra.mxu0 0.0
      %1169 = vmatprep.subr.mxu0 0.0
      %1170 = vmatpush1.msra.mxu0 0.0
      %1171 = vmatprep.subr.mxu0 0.0
      %1172 = vmatpush1.msra.mxu0 0.0
      %1173 = vmatprep.subr.mxu0 0.0
      %1174 = vmatpush1.msra.mxu0 0.0
      %1175 = vmatprep.subr.mxu0 0.0
      %1176 = vmatpush1.msra.mxu0 0.0
      %1177 = vmatprep.subr.mxu0 0.0
      %1178 = vmatpush1.msra.mxu0 0.0
      %1179 = vmatprep.subr.mxu0 0.0
      %1180 = vmatpush1.msra.mxu0 0.0
      %1181 = vmatprep.subr.mxu0 0.0
      %1182 = vmatpush1.msra.mxu0 0.0
      %1183 = vmatprep.subr.mxu0 0.0
      %1184 = vmatpush1.msra.mxu0 0.0
      %1185 = vmatprep.mubr.f32.mxu0 0.0
      %1186 = vmatmul.mubr.f32.gmra.mrb[0].mxu0 %v1098
      %v1187 = vpop.f32.mrb[0].mxu0
      %v1188 = vadd.f32 0.0, %v1187
      %v1189 = vpop.f32.mrb[0].mxu0
      %1190 = vmatprep.mubr.f32.mxu0 0.0
      %1191 = vmatmul.mubr.f32.gmra.mrb[0].mxu0 %v1101
      %v1192 = vpop.f32.mrb[0].mxu0
      %v1193 = vadd.f32 0.0, %v1192
      %v1194 = vpop.f32.mrb[0].mxu0
      %1195 = vmatprep.mubr.f32.mxu0 0.0
      %1196 = vmatmul.mubr.f32.gmra.mrb[0].mxu0 %v1104
      %v1197 = vpop.f32.mrb[0].mxu0
      %v1198 = vadd.f32 0.0, %v1197
      %v1199 = vpop.f32.mrb[0].mxu0
      %1200 = vmatprep.mubr.f32.mxu0 0.0
      %1201 = vmatmul.mubr.f32.gmra.mrb[0].mxu0 %v1107
      %v1202 = vpop.f32.mrb[0].mxu0
      %v1203 = vadd.f32 0.0, %v1202
      %v1204 = vpop.f32.mrb[0].mxu0
      %1205 = vmatprep.mubr.f32.mxu0 0.0
      %1206 = vmatmul.mubr.f32.gmra.mrb[0].mxu0 %v1110
      %v1207 = vpop.f32.mrb[0].mxu0
      %v1208 = vadd.f32 0.0, %v1207
      %v1209 = vpop.f32.mrb[0].mxu0
      %1210 = vmatprep.mubr.f32.mxu0 0.0
      %1211 = vmatmul.mubr.f32.gmra.mrb[0].mxu0 %v1113
      %v1212 = vpop.f32.mrb[0].mxu0
      %v1213 = vadd.f32 0.0, %v1212
      %v1214 = vpop.f32.mrb[0].mxu0
      %1215 = vmatprep.mubr.f32.mxu0 0.0
      %1216 = vmatmul.mubr.f32.gmra.mrb[0].mxu0 %v1116
      %v1217 = vpop.f32.mrb[0].mxu0
      %v1218 = vadd.f32 0.0, %v1217
      %v1219 = vpop.f32.mrb[0].mxu0
      %1220 = vmatprep.mubr.f32.mxu0 0.0
      %1221 = vmatmul.mubr.f32.gmra.mrb[0].mxu0 %v1119
      %v1222 = vpop.f32.mrb[0].mxu0
      %v1223 = vadd.f32 0.0, %v1222
      %v1224 = vpop.f32.mrb[0].mxu0
      %1225 = vdwg.mxu0
      %1226 = vrot.lane.b32.xlu0 %v618, 120
      %v1227 = vpop.permute.xlu0 %1226
      %1228 = vrot.lane.b32.xlu0 %v623, 120
      %v1229 = vpop.permute.xlu0 %1228
      %1230 = vrot.lane.b32.xlu0 %v628, 120
      %v1231 = vpop.permute.xlu0 %1230
      %1232 = vrot.lane.b32.xlu0 %v633, 120
      %v1233 = vpop.permute.xlu0 %1232
      %1234 = vrot.lane.b32.xlu0 %v638, 120
      %v1235 = vpop.permute.xlu0 %1234
      %1236 = vrot.lane.b32.xlu0 %v643, 120
      %v1237 = vpop.permute.xlu0 %1236
      %1238 = vrot.lane.b32.xlu0 %v648, 120
      %v1239 = vpop.permute.xlu0 %1238
      %1240 = vrot.lane.b32.xlu0 %v653, 120
      %v1241 = vpop.permute.xlu0 %1240
      %1242 = vrot.lane.b32.xlu0 %v797, 120
      %v1243 = vpop.permute.xlu0 %1242
      %1244 = vrot.lane.b32.xlu0 %v798, 120
      %v1245 = vpop.permute.xlu0 %1244
      %1246 = vrot.lane.b32.xlu0 %v799, 120
      %v1247 = vpop.permute.xlu0 %1246
      %1248 = vrot.lane.b32.xlu0 %v800, 120
      %v1249 = vpop.permute.xlu0 %1248
      %1250 = vrot.lane.b32.xlu0 %v801, 120
      %v1251 = vpop.permute.xlu0 %1250
      %1252 = vrot.lane.b32.xlu0 %v802, 120
      %v1253 = vpop.permute.xlu0 %1252
      %1254 = vrot.lane.b32.xlu0 %v803, 120
      %v1255 = vpop.permute.xlu0 %1254
      %1256 = vrot.lane.b32.xlu0 %v804, 120
      %v1257 = vpop.permute.xlu0 %1256
      %v1258 = vsel %vm823, %v1227, 0
      %v1260 = vsel %vm823, %v1229, 0
      %v1262 = vsel %vm823, %v1231, 0
      %v1264 = vsel %vm823, %v1233, 0
      %v1266 = vsel %vm823, %v1235, 0
      %v1268 = vsel %vm823, %v1237, 0
      %v1270 = vsel %vm823, %v1239, 0
      %v1272 = vsel %vm823, %v1241, 0
      %v1274 = vsel %vm823, %v1243, 0
      %v1276 = vsel %vm823, %v1245, 0
      %v1278 = vsel %vm823, %v1247, 0
      %v1280 = vsel %vm823, %v1249, 0
      %v1282 = vsel %vm823, %v1251, 0
      %v1284 = vsel %vm823, %v1253, 0
      %v1286 = vsel %vm823, %v1255, 0
      %v1288 = vsel %vm823, %v1257, 0
      %1290 = vmatprep.subr.mxu0 0.0
      %1291 = vmatpush1.xpose.msra.mxu0 %v1274
      %1292 = vmatprep.subr.mxu0 0.0
      %1293 = vmatpush1.xpose.msra.mxu0 %v1276
      %1294 = vmatprep.subr.mxu0 0.0
      %1295 = vmatpush1.xpose.msra.mxu0 %v1278
      %1296 = vmatprep.subr.mxu0 0.0
      %1297 = vmatpush1.xpose.msra.mxu0 %v1280
      %1298 = vmatprep.subr.mxu0 0.0
      %1299 = vmatpush1.xpose.msra.mxu0 %v1282
      %1300 = vmatprep.subr.mxu0 0.0
      %1301 = vmatpush1.xpose.msra.mxu0 %v1284
      %1302 = vmatprep.subr.mxu0 0.0
      %1303 = vmatpush1.xpose.msra.mxu0 %v1286
      %1304 = vmatprep.subr.mxu0 0.0
      %1305 = vmatpush1.xpose.msra.mxu0 %v1288
      %1306 = vmatprep.subr.mxu0 0.0
      %1307 = vmatpush1.xpose.msra.mxu0 0.0
      %1308 = vmatprep.subr.mxu0 0.0
      %1309 = vmatpush1.xpose.msra.mxu0 0.0
      %1310 = vmatprep.subr.mxu0 0.0
      %1311 = vmatpush1.xpose.msra.mxu0 0.0
      %1312 = vmatprep.subr.mxu0 0.0
      %1313 = vmatpush1.xpose.msra.mxu0 0.0
      %1314 = vmatprep.subr.mxu0 0.0
      %1315 = vmatpush1.xpose.msra.mxu0 0.0
      %1316 = vmatprep.subr.mxu0 0.0
      %1317 = vmatpush1.xpose.msra.mxu0 0.0
      %1318 = vmatprep.subr.mxu0 0.0
      %1319 = vmatpush1.xpose.msra.mxu0 0.0
      %1320 = vmatprep.subr.mxu0 0.0
      %1321 = vmatpush1.xpose.msra.mxu0 0.0
      %1322 = vmatprep.subr.mxu0 0.0
      %1323 = vmatpush1.xpose.msra.mxu0 0.0
      %1324 = vmatprep.subr.mxu0 0.0
      %1325 = vmatpush1.xpose.msra.mxu0 0.0
      %1326 = vmatprep.subr.mxu0 0.0
      %1327 = vmatpush1.xpose.msra.mxu0 0.0
      %1328 = vmatprep.subr.mxu0 0.0
      %1329 = vmatpush1.xpose.msra.mxu0 0.0
      %1330 = vmatprep.subr.mxu0 0.0
      %1331 = vmatpush1.xpose.msra.mxu0 0.0
      %1332 = vmatprep.subr.mxu0 0.0
      %1333 = vmatpush1.xpose.msra.mxu0 0.0
      %1334 = vmatprep.subr.mxu0 0.0
      %1335 = vmatpush1.xpose.msra.mxu0 0.0
      %1336 = vmatprep.subr.mxu0 0.0
      %1337 = vmatpush1.xpose.msra.mxu0 0.0
      %1338 = vmatprep.subr.mxu0 0.0
      %1339 = vmatpush1.xpose.msra.mxu0 0.0
      %1340 = vmatprep.subr.mxu0 0.0
      %1341 = vmatpush1.xpose.msra.mxu0 0.0
      %1342 = vmatprep.subr.mxu0 0.0
      %1343 = vmatpush1.xpose.msra.mxu0 0.0
      %1344 = vmatprep.subr.mxu0 0.0
      %1345 = vmatpush1.xpose.msra.mxu0 0.0
      %1346 = vmatprep.subr.mxu0 0.0
      %1347 = vmatpush1.xpose.msra.mxu0 0.0
      %1348 = vmatprep.subr.mxu0 0.0
      %1349 = vmatpush1.xpose.msra.mxu0 0.0
      %1350 = vmatprep.subr.mxu0 0.0
      %1351 = vmatpush1.xpose.msra.mxu0 0.0
      %1352 = vmatprep.subr.mxu0 0.0
      %1353 = vmatpush1.xpose.msra.mxu0 0.0
      %1354 = vmatprep.mubr.f32.mxu0 0.0
      %1355 = vmatmul.mubr.f32.gmra.mrb[0].mxu0 %v1258
      %v1356 = vpop.f32.mrb[0].mxu0
      %v1357 = vadd.f32 0.0, %v1356
      %v1358 = vpop.f32.mrb[0].mxu0
      %1359 = vmatprep.mubr.f32.mxu0 0.0
      %1360 = vmatmul.mubr.f32.gmra.mrb[0].mxu0 %v1260
      %v1361 = vpop.f32.mrb[0].mxu0
      %v1362 = vadd.f32 0.0, %v1361
      %v1363 = vpop.f32.mrb[0].mxu0
      %1364 = vmatprep.mubr.f32.mxu0 0.0
      %1365 = vmatmul.mubr.f32.gmra.mrb[0].mxu0 %v1262
      %v1366 = vpop.f32.mrb[0].mxu0
      %v1367 = vadd.f32 0.0, %v1366
      %v1368 = vpop.f32.mrb[0].mxu0
      %1369 = vmatprep.mubr.f32.mxu0 0.0
      %1370 = vmatmul.mubr.f32.gmra.mrb[0].mxu0 %v1264
      %v1371 = vpop.f32.mrb[0].mxu0
      %v1372 = vadd.f32 0.0, %v1371
      %v1373 = vpop.f32.mrb[0].mxu0
      %1374 = vmatprep.mubr.f32.mxu0 0.0
      %1375 = vmatmul.mubr.f32.gmra.mrb[0].mxu0 %v1266
      %v1376 = vpop.f32.mrb[0].mxu0
      %v1377 = vadd.f32 0.0, %v1376
      %v1378 = vpop.f32.mrb[0].mxu0
      %1379 = vmatprep.mubr.f32.mxu0 0.0
      %1380 = vmatmul.mubr.f32.gmra.mrb[0].mxu0 %v1268
      %v1381 = vpop.f32.mrb[0].mxu0
      %v1382 = vadd.f32 0.0, %v1381
      %v1383 = vpop.f32.mrb[0].mxu0
      %1384 = vmatprep.mubr.f32.mxu0 0.0
      %1385 = vmatmul.mubr.f32.gmra.mrb[0].mxu0 %v1270
      %v1386 = vpop.f32.mrb[0].mxu0
      %v1387 = vadd.f32 0.0, %v1386
      %v1388 = vpop.f32.mrb[0].mxu0
      %1389 = vmatprep.mubr.f32.mxu0 0.0
      %1390 = vmatmul.mubr.f32.gmra.mrb[0].mxu0 %v1272
      %v1391 = vpop.f32.mrb[0].mxu0
      %v1392 = vadd.f32 0.0, %v1391
      %v1393 = vpop.f32.mrb[0].mxu0
      %1394 = vdwg.mxu0
      %v1395 = vsel %vm373, %v1357, -inf
      %1396 = vmax.xlane.f32.xlu0 %v1395
      %v1397 = vpop.xlane.xlu0 %1396
      %v1398 = vsel %vm373, %v1362, -inf
      %1399 = vmax.xlane.f32.xlu0 %v1398
      %v1400 = vpop.xlane.xlu0 %1399
      %v1401 = vsel %vm373, %v1367, -inf
      %1402 = vmax.xlane.f32.xlu0 %v1401
      %v1403 = vpop.xlane.xlu0 %1402
      %v1404 = vsel %vm373, %v1372, -inf
      %1405 = vmax.xlane.f32.xlu0 %v1404
      %v1406 = vpop.xlane.xlu0 %1405
      %v1407 = vsel %vm373, %v1377, -inf
      %1408 = vmax.xlane.f32.xlu0 %v1407
      %v1409 = vpop.xlane.xlu0 %1408
      %v1410 = vsel %vm373, %v1382, -inf
      %1411 = vmax.xlane.f32.xlu0 %v1410
      %v1412 = vpop.xlane.xlu0 %1411
      %v1413 = vsel %vm373, %v1387, -inf
      %1414 = vmax.xlane.f32.xlu0 %v1413
      %v1415 = vpop.xlane.xlu0 %1414
      %v1416 = vsel %vm373, %v1392, -inf
      %1417 = vmax.xlane.f32.xlu0 %v1416
      %v1418 = vpop.xlane.xlu0 %1417
      %v1419 = vsub.f32 %v1357, %v1397
      %v1420 = vsub.f32 %v1362, %v1400
      %v1421 = vsub.f32 %v1367, %v1403
      %v1422 = vsub.f32 %v1372, %v1406
      %v1423 = vsub.f32 %v1377, %v1409
      %v1424 = vsub.f32 %v1382, %v1412
      %v1425 = vsub.f32 %v1387, %v1415
      %v1426 = vsub.f32 %v1392, %v1418
      %v1427 = vmul.f32 %v1419, 1.442695
      %v1428 = vpow.pop %v1427
      %v1429 = vmul.f32 %v1420, 1.442695
      %v1430 = vpow.pop %v1429
      %v1431 = vmul.f32 %v1421, 1.442695
      %v1432 = vpow.pop %v1431
      %v1433 = vmul.f32 %v1422, 1.442695
      %v1434 = vpow.pop %v1433
      %v1435 = vmul.f32 %v1423, 1.442695
      %v1436 = vpow.pop %v1435
      %v1437 = vmul.f32 %v1424, 1.442695
      %v1438 = vpow.pop %v1437
      %v1439 = vmul.f32 %v1425, 1.442695
      %v1440 = vpow.pop %v1439
      %v1441 = vmul.f32 %v1426, 1.442695
      %v1442 = vpow.pop %v1441
      %v1443 = vsel %vm373, %v1428, 0.0
      %1444 = vadd.xlane.f32.xlu0 %v1443
      %v1445 = vpop.xlane.xlu0 %1444
      %v1446 = vsel %vm373, %v1430, 0.0
      %1447 = vadd.xlane.f32.xlu0 %v1446
      %v1448 = vpop.xlane.xlu0 %1447
      %v1449 = vsel %vm373, %v1432, 0.0
      %1450 = vadd.xlane.f32.xlu0 %v1449
      %v1451 = vpop.xlane.xlu0 %1450
      %v1452 = vsel %vm373, %v1434, 0.0
      %1453 = vadd.xlane.f32.xlu0 %v1452
      %v1454 = vpop.xlane.xlu0 %1453
      %v1455 = vsel %vm373, %v1436, 0.0
      %1456 = vadd.xlane.f32.xlu0 %v1455
      %v1457 = vpop.xlane.xlu0 %1456
      %v1458 = vsel %vm373, %v1438, 0.0
      %1459 = vadd.xlane.f32.xlu0 %v1458
      %v1460 = vpop.xlane.xlu0 %1459
      %v1461 = vsel %vm373, %v1440, 0.0
      %1462 = vadd.xlane.f32.xlu0 %v1461
      %v1463 = vpop.xlane.xlu0 %1462
      %v1464 = vsel %vm373, %v1442, 0.0
      %1465 = vadd.xlane.f32.xlu0 %v1464
      %v1466 = vpop.xlane.xlu0 %1465
      %v1467 = vrcp.pop %v1445
      %v1468 = vrcp.pop %v1448
      %v1469 = vrcp.pop %v1451
      %v1470 = vrcp.pop %v1454
      %v1471 = vrcp.pop %v1457
      %v1472 = vrcp.pop %v1460
      %v1473 = vrcp.pop %v1463
      %v1474 = vrcp.pop %v1466
      %v1475 = vmul.f32 %v1428, %v1467
      %v1476 = vmul.f32 %v1430, %v1468
      %v1477 = vmul.f32 %v1432, %v1469
      %v1478 = vmul.f32 %v1434, %v1470
      %v1479 = vmul.f32 %v1436, %v1471
      %v1480 = vmul.f32 %v1438, %v1472
      %v1481 = vmul.f32 %v1440, %v1473
      %v1482 = vmul.f32 %v1442, %v1474
      %1483 = vrot.lane.b32.xlu0 %v815, 88
      %v1484 = vpop.permute.xlu0 %1483
      %1485 = vrot.lane.b32.xlu0 %v816, 88
      %v1486 = vpop.permute.xlu0 %1485
      %1487 = vrot.lane.b32.xlu0 %v817, 88
      %v1488 = vpop.permute.xlu0 %1487
      %1489 = vrot.lane.b32.xlu0 %v818, 88
      %v1490 = vpop.permute.xlu0 %1489
      %1491 = vrot.lane.b32.xlu0 %v819, 88
      %v1492 = vpop.permute.xlu0 %1491
      %1493 = vrot.lane.b32.xlu0 %v820, 88
      %v1494 = vpop.permute.xlu0 %1493
      %1495 = vrot.lane.b32.xlu0 %v821, 88
      %v1496 = vpop.permute.xlu0 %1495
      %1497 = vrot.lane.b32.xlu0 %v822, 88
      %v1498 = vpop.permute.xlu0 %1497
      %v1508 = vsel %vm373, %v1475, 0
      %v1511 = vsel %vm373, %v1476, 0
      %v1514 = vsel %vm373, %v1477, 0
      %v1517 = vsel %vm373, %v1478, 0
      %v1520 = vsel %vm373, %v1479, 0
      %v1523 = vsel %vm373, %v1480, 0
      %v1526 = vsel %vm373, %v1481, 0
      %v1529 = vsel %vm373, %v1482, 0
      %1531 = vmatprep.subr.mxu0 0.0
      %1532 = vmatpush1.msra.mxu0 %v1484
      %1533 = vmatprep.subr.mxu0 0.0
      %1534 = vmatpush1.msra.mxu0 %v1486
      %1535 = vmatprep.subr.mxu0 0.0
      %1536 = vmatpush1.msra.mxu0 %v1488
      %1537 = vmatprep.subr.mxu0 0.0
      %1538 = vmatpush1.msra.mxu0 %v1490
      %1539 = vmatprep.subr.mxu0 0.0
      %1540 = vmatpush1.msra.mxu0 %v1492
      %1541 = vmatprep.subr.mxu0 0.0
      %1542 = vmatpush1.msra.mxu0 %v1494
      %1543 = vmatprep.subr.mxu0 0.0
      %1544 = vmatpush1.msra.mxu0 %v1496
      %1545 = vmatprep.subr.mxu0 0.0
      %1546 = vmatpush1.msra.mxu0 %v1498
      %1547 = vmatprep.subr.mxu0 0.0
      %1548 = vmatpush1.msra.mxu0 0.0
      %1549 = vmatprep.subr.mxu0 0.0
      %1550 = vmatpush1.msra.mxu0 0.0
      %1551 = vmatprep.subr.mxu0 0.0
      %1552 = vmatpush1.msra.mxu0 0.0
      %1553 = vmatprep.subr.mxu0 0.0
      %1554 = vmatpush1.msra.mxu0 0.0
      %1555 = vmatprep.subr.mxu0 0.0
      %1556 = vmatpush1.msra.mxu0 0.0
      %1557 = vmatprep.subr.mxu0 0.0
      %1558 = vmatpush1.msra.mxu0 0.0
      %1559 = vmatprep.subr.mxu0 0.0
      %1560 = vmatpush1.msra.mxu0 0.0
      %1561 = vmatprep.subr.mxu0 0.0
      %1562 = vmatpush1.msra.mxu0 0.0
      %1563 = vmatprep.subr.mxu0 0.0
      %1564 = vmatpush1.msra.mxu0 0.0
      %1565 = vmatprep.subr.mxu0 0.0
      %1566 = vmatpush1.msra.mxu0 0.0
      %1567 = vmatprep.subr.mxu0 0.0
      %1568 = vmatpush1.msra.mxu0 0.0
      %1569 = vmatprep.subr.mxu0 0.0
      %1570 = vmatpush1.msra.mxu0 0.0
      %1571 = vmatprep.subr.mxu0 0.0
      %1572 = vmatpush1.msra.mxu0 0.0
      %1573 = vmatprep.subr.mxu0 0.0
      %1574 = vmatpush1.msra.mxu0 0.0
      %1575 = vmatprep.subr.mxu0 0.0
      %1576 = vmatpush1.msra.mxu0 0.0
      %1577 = vmatprep.subr.mxu0 0.0
      %1578 = vmatpush1.msra.mxu0 0.0
      %1579 = vmatprep.subr.mxu0 0.0
      %1580 = vmatpush1.msra.mxu0 0.0
      %1581 = vmatprep.subr.mxu0 0.0
      %1582 = vmatpush1.msra.mxu0 0.0
      %1583 = vmatprep.subr.mxu0 0.0
      %1584 = vmatpush1.msra.mxu0 0.0
      %1585 = vmatprep.subr.mxu0 0.0
      %1586 = vmatpush1.msra.mxu0 0.0
      %1587 = vmatprep.subr.mxu0 0.0
      %1588 = vmatpush1.msra.mxu0 0.0
      %1589 = vmatprep.subr.mxu0 0.0
      %1590 = vmatpush1.msra.mxu0 0.0
      %1591 = vmatprep.subr.mxu0 0.0
      %1592 = vmatpush1.msra.mxu0 0.0
      %1593 = vmatprep.subr.mxu0 0.0
      %1594 = vmatpush1.msra.mxu0 0.0
      %1595 = vmatprep.mubr.f32.mxu0 0.0
      %1596 = vmatmul.mubr.f32.gmra.mrb[0].mxu0 %v1508
      %v1597 = vpop.f32.mrb[0].mxu0
      %v1598 = vadd.f32 0.0, %v1597
      %v1599 = vpop.f32.mrb[0].mxu0
      %1600 = vmatprep.mubr.f32.mxu0 0.0
      %1601 = vmatmul.mubr.f32.gmra.mrb[0].mxu0 %v1511
      %v1602 = vpop.f32.mrb[0].mxu0
      %v1603 = vadd.f32 0.0, %v1602
      %v1604 = vpop.f32.mrb[0].mxu0
      %1605 = vmatprep.mubr.f32.mxu0 0.0
      %1606 = vmatmul.mubr.f32.gmra.mrb[0].mxu0 %v1514
      %v1607 = vpop.f32.mrb[0].mxu0
      %v1608 = vadd.f32 0.0, %v1607
      %v1609 = vpop.f32.mrb[0].mxu0
      %1610 = vmatprep.mubr.f32.mxu0 0.0
      %1611 = vmatmul.mubr.f32.gmra.mrb[0].mxu0 %v1517
      %v1612 = vpop.f32.mrb[0].mxu0
      %v1613 = vadd.f32 0.0, %v1612
      %v1614 = vpop.f32.mrb[0].mxu0
      %1615 = vmatprep.mubr.f32.mxu0 0.0
      %1616 = vmatmul.mubr.f32.gmra.mrb[0].mxu0 %v1520
      %v1617 = vpop.f32.mrb[0].mxu0
      %v1618 = vadd.f32 0.0, %v1617
      %v1619 = vpop.f32.mrb[0].mxu0
      %1620 = vmatprep.mubr.f32.mxu0 0.0
      %1621 = vmatmul.mubr.f32.gmra.mrb[0].mxu0 %v1523
      %v1622 = vpop.f32.mrb[0].mxu0
      %v1623 = vadd.f32 0.0, %v1622
      %v1624 = vpop.f32.mrb[0].mxu0
      %1625 = vmatprep.mubr.f32.mxu0 0.0
      %1626 = vmatmul.mubr.f32.gmra.mrb[0].mxu0 %v1526
      %v1627 = vpop.f32.mrb[0].mxu0
      %v1628 = vadd.f32 0.0, %v1627
      %v1629 = vpop.f32.mrb[0].mxu0
      %1630 = vmatprep.mubr.f32.mxu0 0.0
      %1631 = vmatmul.mubr.f32.gmra.mrb[0].mxu0 %v1529
      %v1632 = vpop.f32.mrb[0].mxu0
      %v1633 = vadd.f32 0.0, %v1632
      %v1634 = vpop.f32.mrb[0].mxu0
      %1635 = vdwg.mxu0
      %1636 = vrot.lane.b32.xlu0 %v618, 112
      %v1637 = vpop.permute.xlu0 %1636
      %1638 = vrot.lane.b32.xlu0 %v623, 112
      %v1639 = vpop.permute.xlu0 %1638
      %1640 = vrot.lane.b32.xlu0 %v628, 112
      %v1641 = vpop.permute.xlu0 %1640
      %1642 = vrot.lane.b32.xlu0 %v633, 112
      %v1643 = vpop.permute.xlu0 %1642
      %1644 = vrot.lane.b32.xlu0 %v638, 112
      %v1645 = vpop.permute.xlu0 %1644
      %1646 = vrot.lane.b32.xlu0 %v643, 112
      %v1647 = vpop.permute.xlu0 %1646
      %1648 = vrot.lane.b32.xlu0 %v648, 112
      %v1649 = vpop.permute.xlu0 %1648
      %1650 = vrot.lane.b32.xlu0 %v653, 112
      %v1651 = vpop.permute.xlu0 %1650
      %1652 = vrot.lane.b32.xlu0 %v797, 112
      %v1653 = vpop.permute.xlu0 %1652
      %1654 = vrot.lane.b32.xlu0 %v798, 112
      %v1655 = vpop.permute.xlu0 %1654
      %1656 = vrot.lane.b32.xlu0 %v799, 112
      %v1657 = vpop.permute.xlu0 %1656
      %1658 = vrot.lane.b32.xlu0 %v800, 112
      %v1659 = vpop.permute.xlu0 %1658
      %1660 = vrot.lane.b32.xlu0 %v801, 112
      %v1661 = vpop.permute.xlu0 %1660
      %1662 = vrot.lane.b32.xlu0 %v802, 112
      %v1663 = vpop.permute.xlu0 %1662
      %1664 = vrot.lane.b32.xlu0 %v803, 112
      %v1665 = vpop.permute.xlu0 %1664
      %1666 = vrot.lane.b32.xlu0 %v804, 112
      %v1667 = vpop.permute.xlu0 %1666
      %v1668 = vsel %vm823, %v1637, 0
      %v1670 = vsel %vm823, %v1639, 0
      %v1672 = vsel %vm823, %v1641, 0
      %v1674 = vsel %vm823, %v1643, 0
      %v1676 = vsel %vm823, %v1645, 0
      %v1678 = vsel %vm823, %v1647, 0
      %v1680 = vsel %vm823, %v1649, 0
      %v1682 = vsel %vm823, %v1651, 0
      %v1684 = vsel %vm823, %v1653, 0
      %v1686 = vsel %vm823, %v1655, 0
      %v1688 = vsel %vm823, %v1657, 0
      %v1690 = vsel %vm823, %v1659, 0
      %v1692 = vsel %vm823, %v1661, 0
      %v1694 = vsel %vm823, %v1663, 0
      %v1696 = vsel %vm823, %v1665, 0
      %v1698 = vsel %vm823, %v1667, 0
      %1700 = vmatprep.subr.mxu0 0.0
      %1701 = vmatpush1.xpose.msra.mxu0 %v1684
      %1702 = vmatprep.subr.mxu0 0.0
      %1703 = vmatpush1.xpose.msra.mxu0 %v1686
      %1704 = vmatprep.subr.mxu0 0.0
      %1705 = vmatpush1.xpose.msra.mxu0 %v1688
      %1706 = vmatprep.subr.mxu0 0.0
      %1707 = vmatpush1.xpose.msra.mxu0 %v1690
      %1708 = vmatprep.subr.mxu0 0.0
      %1709 = vmatpush1.xpose.msra.mxu0 %v1692
      %1710 = vmatprep.subr.mxu0 0.0
      %1711 = vmatpush1.xpose.msra.mxu0 %v1694
      %1712 = vmatprep.subr.mxu0 0.0
      %1713 = vmatpush1.xpose.msra.mxu0 %v1696
      %1714 = vmatprep.subr.mxu0 0.0
      %1715 = vmatpush1.xpose.msra.mxu0 %v1698
      %1716 = vmatprep.subr.mxu0 0.0
      %1717 = vmatpush1.xpose.msra.mxu0 0.0
      %1718 = vmatprep.subr.mxu0 0.0
      %1719 = vmatpush1.xpose.msra.mxu0 0.0
      %1720 = vmatprep.subr.mxu0 0.0
      %1721 = vmatpush1.xpose.msra.mxu0 0.0
      %1722 = vmatprep.subr.mxu0 0.0
      %1723 = vmatpush1.xpose.msra.mxu0 0.0
      %1724 = vmatprep.subr.mxu0 0.0
      %1725 = vmatpush1.xpose.msra.mxu0 0.0
      %1726 = vmatprep.subr.mxu0 0.0
      %1727 = vmatpush1.xpose.msra.mxu0 0.0
      %1728 = vmatprep.subr.mxu0 0.0
      %1729 = vmatpush1.xpose.msra.mxu0 0.0
      %1730 = vmatprep.subr.mxu0 0.0
      %1731 = vmatpush1.xpose.msra.mxu0 0.0
      %1732 = vmatprep.subr.mxu0 0.0
      %1733 = vmatpush1.xpose.msra.mxu0 0.0
      %1734 = vmatprep.subr.mxu0 0.0
      %1735 = vmatpush1.xpose.msra.mxu0 0.0
      %1736 = vmatprep.subr.mxu0 0.0
      %1737 = vmatpush1.xpose.msra.mxu0 0.0
      %1738 = vmatprep.subr.mxu0 0.0
      %1739 = vmatpush1.xpose.msra.mxu0 0.0
      %1740 = vmatprep.subr.mxu0 0.0
      %1741 = vmatpush1.xpose.msra.mxu0 0.0
      %1742 = vmatprep.subr.mxu0 0.0
      %1743 = vmatpush1.xpose.msra.mxu0 0.0
      %1744 = vmatprep.subr.mxu0 0.0
      %1745 = vmatpush1.xpose.msra.mxu0 0.0
      %1746 = vmatprep.subr.mxu0 0.0
      %1747 = vmatpush1.xpose.msra.mxu0 0.0
      %1748 = vmatprep.subr.mxu0 0.0
      %1749 = vmatpush1.xpose.msra.mxu0 0.0
      %1750 = vmatprep.subr.mxu0 0.0
      %1751 = vmatpush1.xpose.msra.mxu0 0.0
      %1752 = vmatprep.subr.mxu0 0.0
      %1753 = vmatpush1.xpose.msra.mxu0 0.0
      %1754 = vmatprep.subr.mxu0 0.0
      %1755 = vmatpush1.xpose.msra.mxu0 0.0
      %1756 = vmatprep.subr.mxu0 0.0
      %1757 = vmatpush1.xpose.msra.mxu0 0.0
      %1758 = vmatprep.subr.mxu0 0.0
      %1759 = vmatpush1.xpose.msra.mxu0 0.0
      %1760 = vmatprep.subr.mxu0 0.0
      %1761 = vmatpush1.xpose.msra.mxu0 0.0
      %1762 = vmatprep.subr.mxu0 0.0
      %1763 = vmatpush1.xpose.msra.mxu0 0.0
      %1764 = vmatprep.mubr.f32.mxu0 0.0
      %1765 = vmatmul.mubr.f32.gmra.mrb[0].mxu0 %v1668
      %v1766 = vpop.f32.mrb[0].mxu0
      %v1767 = vadd.f32 0.0, %v1766
      %v1768 = vpop.f32.mrb[0].mxu0
      %1769 = vmatprep.mubr.f32.mxu0 0.0
      %1770 = vmatmul.mubr.f32.gmra.mrb[0].mxu0 %v1670
      %v1771 = vpop.f32.mrb[0].mxu0
      %v1772 = vadd.f32 0.0, %v1771
      %v1773 = vpop.f32.mrb[0].mxu0
      %1774 = vmatprep.mubr.f32.mxu0 0.0
      %1775 = vmatmul.mubr.f32.gmra.mrb[0].mxu0 %v1672
      %v1776 = vpop.f32.mrb[0].mxu0
      %v1777 = vadd.f32 0.0, %v1776
      %v1778 = vpop.f32.mrb[0].mxu0
      %1779 = vmatprep.mubr.f32.mxu0 0.0
      %1780 = vmatmul.mubr.f32.gmra.mrb[0].mxu0 %v1674
      %v1781 = vpop.f32.mrb[0].mxu0
      %v1782 = vadd.f32 0.0, %v1781
      %v1783 = vpop.f32.mrb[0].mxu0
      %1784 = vmatprep.mubr.f32.mxu0 0.0
      %1785 = vmatmul.mubr.f32.gmra.mrb[0].mxu0 %v1676
      %v1786 = vpop.f32.mrb[0].mxu0
      %v1787 = vadd.f32 0.0, %v1786
      %v1788 = vpop.f32.mrb[0].mxu0
      %1789 = vmatprep.mubr.f32.mxu0 0.0
      %1790 = vmatmul.mubr.f32.gmra.mrb[0].mxu0 %v1678
      %v1791 = vpop.f32.mrb[0].mxu0
      %v1792 = vadd.f32 0.0, %v1791
      %v1793 = vpop.f32.mrb[0].mxu0
      %1794 = vmatprep.mubr.f32.mxu0 0.0
      %1795 = vmatmul.mubr.f32.gmra.mrb[0].mxu0 %v1680
      %v1796 = vpop.f32.mrb[0].mxu0
      %v1797 = vadd.f32 0.0, %v1796
      %v1798 = vpop.f32.mrb[0].mxu0
      %1799 = vmatprep.mubr.f32.mxu0 0.0
      %1800 = vmatmul.mubr.f32.gmra.mrb[0].mxu0 %v1682
      %v1801 = vpop.f32.mrb[0].mxu0
      %v1802 = vadd.f32 0.0, %v1801
      %v1803 = vpop.f32.mrb[0].mxu0
      %1804 = vdwg.mxu0
      %v1805 = vsel %vm373, %v1767, -inf
      %1806 = vmax.xlane.f32.xlu0 %v1805
      %v1807 = vpop.xlane.xlu0 %1806
      %v1808 = vsel %vm373, %v1772, -inf
      %1809 = vmax.xlane.f32.xlu0 %v1808
      %v1810 = vpop.xlane.xlu0 %1809
      %v1811 = vsel %vm373, %v1777, -inf
      %1812 = vmax.xlane.f32.xlu0 %v1811
      %v1813 = vpop.xlane.xlu0 %1812
      %v1814 = vsel %vm373, %v1782, -inf
      %1815 = vmax.xlane.f32.xlu0 %v1814
      %v1816 = vpop.xlane.xlu0 %1815
      %v1817 = vsel %vm373, %v1787, -inf
      %1818 = vmax.xlane.f32.xlu0 %v1817
      %v1819 = vpop.xlane.xlu0 %1818
      %v1820 = vsel %vm373, %v1792, -inf
      %1821 = vmax.xlane.f32.xlu0 %v1820
      %v1822 = vpop.xlane.xlu0 %1821
      %v1823 = vsel %vm373, %v1797, -inf
      %1824 = vmax.xlane.f32.xlu0 %v1823
      %v1825 = vpop.xlane.xlu0 %1824
      %v1826 = vsel %vm373, %v1802, -inf
      %1827 = vmax.xlane.f32.xlu0 %v1826
      %v1828 = vpop.xlane.xlu0 %1827
      %v1829 = vsub.f32 %v1767, %v1807
      %v1830 = vsub.f32 %v1772, %v1810
      %v1831 = vsub.f32 %v1777, %v1813
      %v1832 = vsub.f32 %v1782, %v1816
      %v1833 = vsub.f32 %v1787, %v1819
      %v1834 = vsub.f32 %v1792, %v1822
      %v1835 = vsub.f32 %v1797, %v1825
      %v1836 = vsub.f32 %v1802, %v1828
      %v1837 = vmul.f32 %v1829, 1.442695
      %v1838 = vpow.pop %v1837
      %v1839 = vmul.f32 %v1830, 1.442695
      %v1840 = vpow.pop %v1839
      %v1841 = vmul.f32 %v1831, 1.442695
      %v1842 = vpow.pop %v1841
      %v1843 = vmul.f32 %v1832, 1.442695
      %v1844 = vpow.pop %v1843
      %v1845 = vmul.f32 %v1833, 1.442695
      %v1846 = vpow.pop %v1845
      %v1847 = vmul.f32 %v1834, 1.442695
      %v1848 = vpow.pop %v1847
      %v1849 = vmul.f32 %v1835, 1.442695
      %v1850 = vpow.pop %v1849
      %v1851 = vmul.f32 %v1836, 1.442695
      %v1852 = vpow.pop %v1851
      %v1853 = vsel %vm373, %v1838, 0.0
      %1854 = vadd.xlane.f32.xlu0 %v1853
      %v1855 = vpop.xlane.xlu0 %1854
      %v1856 = vsel %vm373, %v1840, 0.0
      %1857 = vadd.xlane.f32.xlu0 %v1856
      %v1858 = vpop.xlane.xlu0 %1857
      %v1859 = vsel %vm373, %v1842, 0.0
      %1860 = vadd.xlane.f32.xlu0 %v1859
      %v1861 = vpop.xlane.xlu0 %1860
      %v1862 = vsel %vm373, %v1844, 0.0
      %1863 = vadd.xlane.f32.xlu0 %v1862
      %v1864 = vpop.xlane.xlu0 %1863
      %v1865 = vsel %vm373, %v1846, 0.0
      %1866 = vadd.xlane.f32.xlu0 %v1865
      %v1867 = vpop.xlane.xlu0 %1866
      %v1868 = vsel %vm373, %v1848, 0.0
      %1869 = vadd.xlane.f32.xlu0 %v1868
      %v1870 = vpop.xlane.xlu0 %1869
      %v1871 = vsel %vm373, %v1850, 0.0
      %1872 = vadd.xlane.f32.xlu0 %v1871
      %v1873 = vpop.xlane.xlu0 %1872
      %v1874 = vsel %vm373, %v1852, 0.0
      %1875 = vadd.xlane.f32.xlu0 %v1874
      %v1876 = vpop.xlane.xlu0 %1875
      %v1877 = vrcp.pop %v1855
      %v1878 = vrcp.pop %v1858
      %v1879 = vrcp.pop %v1861
      %v1880 = vrcp.pop %v1864
      %v1881 = vrcp.pop %v1867
      %v1882 = vrcp.pop %v1870
      %v1883 = vrcp.pop %v1873
      %v1884 = vrcp.pop %v1876
      %v1885 = vmul.f32 %v1838, %v1877
      %v1886 = vmul.f32 %v1840, %v1878
      %v1887 = vmul.f32 %v1842, %v1879
      %v1888 = vmul.f32 %v1844, %v1880
      %v1889 = vmul.f32 %v1846, %v1881
      %v1890 = vmul.f32 %v1848, %v1882
      %v1891 = vmul.f32 %v1850, %v1883
      %v1892 = vmul.f32 %v1852, %v1884
      %1893 = vrot.lane.b32.xlu0 %v815, 80
      %v1894 = vpop.permute.xlu0 %1893
      %1895 = vrot.lane.b32.xlu0 %v816, 80
      %v1896 = vpop.permute.xlu0 %1895
      %1897 = vrot.lane.b32.xlu0 %v817, 80
      %v1898 = vpop.permute.xlu0 %1897
      %1899 = vrot.lane.b32.xlu0 %v818, 80
      %v1900 = vpop.permute.xlu0 %1899
      %1901 = vrot.lane.b32.xlu0 %v819, 80
      %v1902 = vpop.permute.xlu0 %1901
      %1903 = vrot.lane.b32.xlu0 %v820, 80
      %v1904 = vpop.permute.xlu0 %1903
      %1905 = vrot.lane.b32.xlu0 %v821, 80
      %v1906 = vpop.permute.xlu0 %1905
      %1907 = vrot.lane.b32.xlu0 %v822, 80
      %v1908 = vpop.permute.xlu0 %1907
      %v1918 = vsel %vm373, %v1885, 0
      %v1921 = vsel %vm373, %v1886, 0
      %v1924 = vsel %vm373, %v1887, 0
      %v1927 = vsel %vm373, %v1888, 0
      %v1930 = vsel %vm373, %v1889, 0
      %v1933 = vsel %vm373, %v1890, 0
      %v1936 = vsel %vm373, %v1891, 0
      %v1939 = vsel %vm373, %v1892, 0
      %1941 = vmatprep.subr.mxu0 0.0
      %1942 = vmatpush1.msra.mxu0 %v1894
      %1943 = vmatprep.subr.mxu0 0.0
      %1944 = vmatpush1.msra.mxu0 %v1896
      %1945 = vmatprep.subr.mxu0 0.0
      %1946 = vmatpush1.msra.mxu0 %v1898
      %1947 = vmatprep.subr.mxu0 0.0
      %1948 = vmatpush1.msra.mxu0 %v1900
      %1949 = vmatprep.subr.mxu0 0.0
      %1950 = vmatpush1.msra.mxu0 %v1902
      %1951 = vmatprep.subr.mxu0 0.0
      %1952 = vmatpush1.msra.mxu0 %v1904
      %1953 = vmatprep.subr.mxu0 0.0
      %1954 = vmatpush1.msra.mxu0 %v1906
      %1955 = vmatprep.subr.mxu0 0.0
      %1956 = vmatpush1.msra.mxu0 %v1908
      %1957 = vmatprep.subr.mxu0 0.0
      %1958 = vmatpush1.msra.mxu0 0.0
      %1959 = vmatprep.subr.mxu0 0.0
      %1960 = vmatpush1.msra.mxu0 0.0
      %1961 = vmatprep.subr.mxu0 0.0
      %1962 = vmatpush1.msra.mxu0 0.0
      %1963 = vmatprep.subr.mxu0 0.0
      %1964 = vmatpush1.msra.mxu0 0.0
      %1965 = vmatprep.subr.mxu0 0.0
      %1966 = vmatpush1.msra.mxu0 0.0
      %1967 = vmatprep.subr.mxu0 0.0
      %1968 = vmatpush1.msra.mxu0 0.0
      %1969 = vmatprep.subr.mxu0 0.0
      %1970 = vmatpush1.msra.mxu0 0.0
      %1971 = vmatprep.subr.mxu0 0.0
      %1972 = vmatpush1.msra.mxu0 0.0
      %1973 = vmatprep.subr.mxu0 0.0
      %1974 = vmatpush1.msra.mxu0 0.0
      %1975 = vmatprep.subr.mxu0 0.0
      %1976 = vmatpush1.msra.mxu0 0.0
      %1977 = vmatprep.subr.mxu0 0.0
      %1978 = vmatpush1.msra.mxu0 0.0
      %1979 = vmatprep.subr.mxu0 0.0
      %1980 = vmatpush1.msra.mxu0 0.0
      %1981 = vmatprep.subr.mxu0 0.0
      %1982 = vmatpush1.msra.mxu0 0.0
      %1983 = vmatprep.subr.mxu0 0.0
      %1984 = vmatpush1.msra.mxu0 0.0
      %1985 = vmatprep.subr.mxu0 0.0
      %1986 = vmatpush1.msra.mxu0 0.0
      %1987 = vmatprep.subr.mxu0 0.0
      %1988 = vmatpush1.msra.mxu0 0.0
      %1989 = vmatprep.subr.mxu0 0.0
      %1990 = vmatpush1.msra.mxu0 0.0
      %1991 = vmatprep.subr.mxu0 0.0
      %1992 = vmatpush1.msra.mxu0 0.0
      %1993 = vmatprep.subr.mxu0 0.0
      %1994 = vmatpush1.msra.mxu0 0.0
      %1995 = vmatprep.subr.mxu0 0.0
      %1996 = vmatpush1.msra.mxu0 0.0
      %1997 = vmatprep.subr.mxu0 0.0
      %1998 = vmatpush1.msra.mxu0 0.0
      %1999 = vmatprep.subr.mxu0 0.0
      %2000 = vmatpush1.msra.mxu0 0.0
      %2001 = vmatprep.subr.mxu0 0.0
      %2002 = vmatpush1.msra.mxu0 0.0
      %2003 = vmatprep.subr.mxu0 0.0
      %2004 = vmatpush1.msra.mxu0 0.0
      %2005 = vmatprep.mubr.f32.mxu0 0.0
      %2006 = vmatmul.mubr.f32.gmra.mrb[0].mxu0 %v1918
      %v2007 = vpop.f32.mrb[0].mxu0
      %v2008 = vadd.f32 0.0, %v2007
      %v2009 = vpop.f32.mrb[0].mxu0
      %2010 = vmatprep.mubr.f32.mxu0 0.0
      %2011 = vmatmul.mubr.f32.gmra.mrb[0].mxu0 %v1921
      %v2012 = vpop.f32.mrb[0].mxu0
      %v2013 = vadd.f32 0.0, %v2012
      %v2014 = vpop.f32.mrb[0].mxu0
      %2015 = vmatprep.mubr.f32.mxu0 0.0
      %2016 = vmatmul.mubr.f32.gmra.mrb[0].mxu0 %v1924
      %v2017 = vpop.f32.mrb[0].mxu0
      %v2018 = vadd.f32 0.0, %v2017
      %v2019 = vpop.f32.mrb[0].mxu0
      %2020 = vmatprep.mubr.f32.mxu0 0.0
      %2021 = vmatmul.mubr.f32.gmra.mrb[0].mxu0 %v1927
      %v2022 = vpop.f32.mrb[0].mxu0
      %v2023 = vadd.f32 0.0, %v2022
      %v2024 = vpop.f32.mrb[0].mxu0
      %2025 = vmatprep.mubr.f32.mxu0 0.0
      %2026 = vmatmul.mubr.f32.gmra.mrb[0].mxu0 %v1930
      %v2027 = vpop.f32.mrb[0].mxu0
      %v2028 = vadd.f32 0.0, %v2027
      %v2029 = vpop.f32.mrb[0].mxu0
      %2030 = vmatprep.mubr.f32.mxu0 0.0
      %2031 = vmatmul.mubr.f32.gmra.mrb[0].mxu0 %v1933
      %v2032 = vpop.f32.mrb[0].mxu0
      %v2033 = vadd.f32 0.0, %v2032
      %v2034 = vpop.f32.mrb[0].mxu0
      %2035 = vmatprep.mubr.f32.mxu0 0.0
      %2036 = vmatmul.mubr.f32.gmra.mrb[0].mxu0 %v1936
      %v2037 = vpop.f32.mrb[0].mxu0
      %v2038 = vadd.f32 0.0, %v2037
      %v2039 = vpop.f32.mrb[0].mxu0
      %2040 = vmatprep.mubr.f32.mxu0 0.0
      %2041 = vmatmul.mubr.f32.gmra.mrb[0].mxu0 %v1939
      %v2042 = vpop.f32.mrb[0].mxu0
      %v2043 = vadd.f32 0.0, %v2042
      %v2044 = vpop.f32.mrb[0].mxu0
      %2045 = vdwg.mxu0
      %2046 = vrot.lane.b32.xlu0 %v618, 104
      %v2047 = vpop.permute.xlu0 %2046
      %2048 = vrot.lane.b32.xlu0 %v623, 104
      %v2049 = vpop.permute.xlu0 %2048
      %2050 = vrot.lane.b32.xlu0 %v628, 104
      %v2051 = vpop.permute.xlu0 %2050
      %2052 = vrot.lane.b32.xlu0 %v633, 104
      %v2053 = vpop.permute.xlu0 %2052
      %2054 = vrot.lane.b32.xlu0 %v638, 104
      %v2055 = vpop.permute.xlu0 %2054
      %2056 = vrot.lane.b32.xlu0 %v643, 104
      %v2057 = vpop.permute.xlu0 %2056
      %2058 = vrot.lane.b32.xlu0 %v648, 104
      %v2059 = vpop.permute.xlu0 %2058
      %2060 = vrot.lane.b32.xlu0 %v653, 104
      %v2061 = vpop.permute.xlu0 %2060
      %2062 = vrot.lane.b32.xlu0 %v797, 104
      %v2063 = vpop.permute.xlu0 %2062
      %2064 = vrot.lane.b32.xlu0 %v798, 104
      %v2065 = vpop.permute.xlu0 %2064
      %2066 = vrot.lane.b32.xlu0 %v799, 104
      %v2067 = vpop.permute.xlu0 %2066
      %2068 = vrot.lane.b32.xlu0 %v800, 104
      %v2069 = vpop.permute.xlu0 %2068
      %2070 = vrot.lane.b32.xlu0 %v801, 104
      %v2071 = vpop.permute.xlu0 %2070
      %2072 = vrot.lane.b32.xlu0 %v802, 104
      %v2073 = vpop.permute.xlu0 %2072
      %2074 = vrot.lane.b32.xlu0 %v803, 104
      %v2075 = vpop.permute.xlu0 %2074
      %2076 = vrot.lane.b32.xlu0 %v804, 104
      %v2077 = vpop.permute.xlu0 %2076
      %v2078 = vsel %vm823, %v2047, 0
      %v2080 = vsel %vm823, %v2049, 0
      %v2082 = vsel %vm823, %v2051, 0
      %v2084 = vsel %vm823, %v2053, 0
      %v2086 = vsel %vm823, %v2055, 0
      %v2088 = vsel %vm823, %v2057, 0
      %v2090 = vsel %vm823, %v2059, 0
      %v2092 = vsel %vm823, %v2061, 0
      %v2094 = vsel %vm823, %v2063, 0
      %v2096 = vsel %vm823, %v2065, 0
      %v2098 = vsel %vm823, %v2067, 0
      %v2100 = vsel %vm823, %v2069, 0
      %v2102 = vsel %vm823, %v2071, 0
      %v2104 = vsel %vm823, %v2073, 0
      %v2106 = vsel %vm823, %v2075, 0
      %v2108 = vsel %vm823, %v2077, 0
      %2110 = vmatprep.subr.mxu0 0.0
      %2111 = vmatpush1.xpose.msra.mxu0 %v2094
      %2112 = vmatprep.subr.mxu0 0.0
      %2113 = vmatpush1.xpose.msra.mxu0 %v2096
      %2114 = vmatprep.subr.mxu0 0.0
      %2115 = vmatpush1.xpose.msra.mxu0 %v2098
      %2116 = vmatprep.subr.mxu0 0.0
      %2117 = vmatpush1.xpose.msra.mxu0 %v2100
      %2118 = vmatprep.subr.mxu0 0.0
      %2119 = vmatpush1.xpose.msra.mxu0 %v2102
      %2120 = vmatprep.subr.mxu0 0.0
      %2121 = vmatpush1.xpose.msra.mxu0 %v2104
      %2122 = vmatprep.subr.mxu0 0.0
      %2123 = vmatpush1.xpose.msra.mxu0 %v2106
      %2124 = vmatprep.subr.mxu0 0.0
      %2125 = vmatpush1.xpose.msra.mxu0 %v2108
      %2126 = vmatprep.subr.mxu0 0.0
      %2127 = vmatpush1.xpose.msra.mxu0 0.0
      %2128 = vmatprep.subr.mxu0 0.0
      %2129 = vmatpush1.xpose.msra.mxu0 0.0
      %2130 = vmatprep.subr.mxu0 0.0
      %2131 = vmatpush1.xpose.msra.mxu0 0.0
      %2132 = vmatprep.subr.mxu0 0.0
      %2133 = vmatpush1.xpose.msra.mxu0 0.0
      %2134 = vmatprep.subr.mxu0 0.0
      %2135 = vmatpush1.xpose.msra.mxu0 0.0
      %2136 = vmatprep.subr.mxu0 0.0
      %2137 = vmatpush1.xpose.msra.mxu0 0.0
      %2138 = vmatprep.subr.mxu0 0.0
      %2139 = vmatpush1.xpose.msra.mxu0 0.0
      %2140 = vmatprep.subr.mxu0 0.0
      %2141 = vmatpush1.xpose.msra.mxu0 0.0
      %2142 = vmatprep.subr.mxu0 0.0
      %2143 = vmatpush1.xpose.msra.mxu0 0.0
      %2144 = vmatprep.subr.mxu0 0.0
      %2145 = vmatpush1.xpose.msra.mxu0 0.0
      %2146 = vmatprep.subr.mxu0 0.0
      %2147 = vmatpush1.xpose.msra.mxu0 0.0
      %2148 = vmatprep.subr.mxu0 0.0
      %2149 = vmatpush1.xpose.msra.mxu0 0.0
      %2150 = vmatprep.subr.mxu0 0.0
      %2151 = vmatpush1.xpose.msra.mxu0 0.0
      %2152 = vmatprep.subr.mxu0 0.0
      %2153 = vmatpush1.xpose.msra.mxu0 0.0
      %2154 = vmatprep.subr.mxu0 0.0
      %2155 = vmatpush1.xpose.msra.mxu0 0.0
      %2156 = vmatprep.subr.mxu0 0.0
      %2157 = vmatpush1.xpose.msra.mxu0 0.0
      %2158 = vmatprep.subr.mxu0 0.0
      %2159 = vmatpush1.xpose.msra.mxu0 0.0
      %2160 = vmatprep.subr.mxu0 0.0
      %2161 = vmatpush1.xpose.msra.mxu0 0.0
      %2162 = vmatprep.subr.mxu0 0.0
      %2163 = vmatpush1.xpose.msra.mxu0 0.0
      %2164 = vmatprep.subr.mxu0 0.0
      %2165 = vmatpush1.xpose.msra.mxu0 0.0
      %2166 = vmatprep.subr.mxu0 0.0
      %2167 = vmatpush1.xpose.msra.mxu0 0.0
      %2168 = vmatprep.subr.mxu0 0.0
      %2169 = vmatpush1.xpose.msra.mxu0 0.0
      %2170 = vmatprep.subr.mxu0 0.0
      %2171 = vmatpush1.xpose.msra.mxu0 0.0
      %2172 = vmatprep.subr.mxu0 0.0
      %2173 = vmatpush1.xpose.msra.mxu0 0.0
      %2174 = vmatprep.mubr.f32.mxu0 0.0
      %2175 = vmatmul.mubr.f32.gmra.mrb[0].mxu0 %v2078
      %v2176 = vpop.f32.mrb[0].mxu0
      %v2177 = vadd.f32 0.0, %v2176
      %v2178 = vpop.f32.mrb[0].mxu0
      %2179 = vmatprep.mubr.f32.mxu0 0.0
      %2180 = vmatmul.mubr.f32.gmra.mrb[0].mxu0 %v2080
      %v2181 = vpop.f32.mrb[0].mxu0
      %v2182 = vadd.f32 0.0, %v2181
      %v2183 = vpop.f32.mrb[0].mxu0
      %2184 = vmatprep.mubr.f32.mxu0 0.0
      %2185 = vmatmul.mubr.f32.gmra.mrb[0].mxu0 %v2082
      %v2186 = vpop.f32.mrb[0].mxu0
      %v2187 = vadd.f32 0.0, %v2186
      %v2188 = vpop.f32.mrb[0].mxu0
      %2189 = vmatprep.mubr.f32.mxu0 0.0
      %2190 = vmatmul.mubr.f32.gmra.mrb[0].mxu0 %v2084
      %v2191 = vpop.f32.mrb[0].mxu0
      %v2192 = vadd.f32 0.0, %v2191
      %v2193 = vpop.f32.mrb[0].mxu0
      %2194 = vmatprep.mubr.f32.mxu0 0.0
      %2195 = vmatmul.mubr.f32.gmra.mrb[0].mxu0 %v2086
      %v2196 = vpop.f32.mrb[0].mxu0
      %v2197 = vadd.f32 0.0, %v2196
      %v2198 = vpop.f32.mrb[0].mxu0
      %2199 = vmatprep.mubr.f32.mxu0 0.0
      %2200 = vmatmul.mubr.f32.gmra.mrb[0].mxu0 %v2088
      %v2201 = vpop.f32.mrb[0].mxu0
      %v2202 = vadd.f32 0.0, %v2201
      %v2203 = vpop.f32.mrb[0].mxu0
      %2204 = vmatprep.mubr.f32.mxu0 0.0
      %2205 = vmatmul.mubr.f32.gmra.mrb[0].mxu0 %v2090
      %v2206 = vpop.f32.mrb[0].mxu0
      %v2207 = vadd.f32 0.0, %v2206
      %v2208 = vpop.f32.mrb[0].mxu0
      %2209 = vmatprep.mubr.f32.mxu0 0.0
      %2210 = vmatmul.mubr.f32.gmra.mrb[0].mxu0 %v2092
      %v2211 = vpop.f32.mrb[0].mxu0
      %v2212 = vadd.f32 0.0, %v2211
      %v2213 = vpop.f32.mrb[0].mxu0
      %2214 = vdwg.mxu0
      %v2215 = vsel %vm373, %v2177, -inf
      %2216 = vmax.xlane.f32.xlu0 %v2215
      %v2217 = vpop.xlane.xlu0 %2216
      %v2218 = vsel %vm373, %v2182, -inf
      %2219 = vmax.xlane.f32.xlu0 %v2218
      %v2220 = vpop.xlane.xlu0 %2219
      %v2221 = vsel %vm373, %v2187, -inf
      %2222 = vmax.xlane.f32.xlu0 %v2221
      %v2223 = vpop.xlane.xlu0 %2222
      %v2224 = vsel %vm373, %v2192, -inf
      %2225 = vmax.xlane.f32.xlu0 %v2224
      %v2226 = vpop.xlane.xlu0 %2225
      %v2227 = vsel %vm373, %v2197, -inf
      %2228 = vmax.xlane.f32.xlu0 %v2227
      %v2229 = vpop.xlane.xlu0 %2228
      %v2230 = vsel %vm373, %v2202, -inf
      %2231 = vmax.xlane.f32.xlu0 %v2230
      %v2232 = vpop.xlane.xlu0 %2231
      %v2233 = vsel %vm373, %v2207, -inf
      %2234 = vmax.xlane.f32.xlu0 %v2233
      %v2235 = vpop.xlane.xlu0 %2234
      %v2236 = vsel %vm373, %v2212, -inf
      %2237 = vmax.xlane.f32.xlu0 %v2236
      %v2238 = vpop.xlane.xlu0 %2237
      %v2239 = vsub.f32 %v2177, %v2217
      %v2240 = vsub.f32 %v2182, %v2220
      %v2241 = vsub.f32 %v2187, %v2223
      %v2242 = vsub.f32 %v2192, %v2226
      %v2243 = vsub.f32 %v2197, %v2229
      %v2244 = vsub.f32 %v2202, %v2232
      %v2245 = vsub.f32 %v2207, %v2235
      %v2246 = vsub.f32 %v2212, %v2238
      %v2247 = vmul.f32 %v2239, 1.442695
      %v2248 = vpow.pop %v2247
      %v2249 = vmul.f32 %v2240, 1.442695
      %v2250 = vpow.pop %v2249
      %v2251 = vmul.f32 %v2241, 1.442695
      %v2252 = vpow.pop %v2251
      %v2253 = vmul.f32 %v2242, 1.442695
      %v2254 = vpow.pop %v2253
      %v2255 = vmul.f32 %v2243, 1.442695
      %v2256 = vpow.pop %v2255
      %v2257 = vmul.f32 %v2244, 1.442695
      %v2258 = vpow.pop %v2257
      %v2259 = vmul.f32 %v2245, 1.442695
      %v2260 = vpow.pop %v2259
      %v2261 = vmul.f32 %v2246, 1.442695
      %v2262 = vpow.pop %v2261
      %v2263 = vsel %vm373, %v2248, 0.0
      %2264 = vadd.xlane.f32.xlu0 %v2263
      %v2265 = vpop.xlane.xlu0 %2264
      %v2266 = vsel %vm373, %v2250, 0.0
      %2267 = vadd.xlane.f32.xlu0 %v2266
      %v2268 = vpop.xlane.xlu0 %2267
      %v2269 = vsel %vm373, %v2252, 0.0
      %2270 = vadd.xlane.f32.xlu0 %v2269
      %v2271 = vpop.xlane.xlu0 %2270
      %v2272 = vsel %vm373, %v2254, 0.0
      %2273 = vadd.xlane.f32.xlu0 %v2272
      %v2274 = vpop.xlane.xlu0 %2273
      %v2275 = vsel %vm373, %v2256, 0.0
      %2276 = vadd.xlane.f32.xlu0 %v2275
      %v2277 = vpop.xlane.xlu0 %2276
      %v2278 = vsel %vm373, %v2258, 0.0
      %2279 = vadd.xlane.f32.xlu0 %v2278
      %v2280 = vpop.xlane.xlu0 %2279
      %v2281 = vsel %vm373, %v2260, 0.0
      %2282 = vadd.xlane.f32.xlu0 %v2281
      %v2283 = vpop.xlane.xlu0 %2282
      %v2284 = vsel %vm373, %v2262, 0.0
      %2285 = vadd.xlane.f32.xlu0 %v2284
      %v2286 = vpop.xlane.xlu0 %2285
      %v2287 = vrcp.pop %v2265
      %v2288 = vrcp.pop %v2268
      %v2289 = vrcp.pop %v2271
      %v2290 = vrcp.pop %v2274
      %v2291 = vrcp.pop %v2277
      %v2292 = vrcp.pop %v2280
      %v2293 = vrcp.pop %v2283
      %v2294 = vrcp.pop %v2286
      %v2295 = vmul.f32 %v2248, %v2287
      %v2296 = vmul.f32 %v2250, %v2288
      %v2297 = vmul.f32 %v2252, %v2289
      %v2298 = vmul.f32 %v2254, %v2290
      %v2299 = vmul.f32 %v2256, %v2291
      %v2300 = vmul.f32 %v2258, %v2292
      %v2301 = vmul.f32 %v2260, %v2293
      %v2302 = vmul.f32 %v2262, %v2294
      %2303 = vrot.lane.b32.xlu0 %v815, 72
      %v2304 = vpop.permute.xlu0 %2303
      %2305 = vrot.lane.b32.xlu0 %v816, 72
      %v2306 = vpop.permute.xlu0 %2305
      %2307 = vrot.lane.b32.xlu0 %v817, 72
      %v2308 = vpop.permute.xlu0 %2307
      %2309 = vrot.lane.b32.xlu0 %v818, 72
      %v2310 = vpop.permute.xlu0 %2309
      %2311 = vrot.lane.b32.xlu0 %v819, 72
      %v2312 = vpop.permute.xlu0 %2311
      %2313 = vrot.lane.b32.xlu0 %v820, 72
      %v2314 = vpop.permute.xlu0 %2313
      %2315 = vrot.lane.b32.xlu0 %v821, 72
      %v2316 = vpop.permute.xlu0 %2315
      %2317 = vrot.lane.b32.xlu0 %v822, 72
      %v2318 = vpop.permute.xlu0 %2317
      %v2328 = vsel %vm373, %v2295, 0
      %v2331 = vsel %vm373, %v2296, 0
      %v2334 = vsel %vm373, %v2297, 0
      %v2337 = vsel %vm373, %v2298, 0
      %v2340 = vsel %vm373, %v2299, 0
      %v2343 = vsel %vm373, %v2300, 0
      %v2346 = vsel %vm373, %v2301, 0
      %v2349 = vsel %vm373, %v2302, 0
      %2351 = vmatprep.subr.mxu0 0.0
      %2352 = vmatpush1.msra.mxu0 %v2304
      %2353 = vmatprep.subr.mxu0 0.0
      %2354 = vmatpush1.msra.mxu0 %v2306
      %2355 = vmatprep.subr.mxu0 0.0
      %2356 = vmatpush1.msra.mxu0 %v2308
      %2357 = vmatprep.subr.mxu0 0.0
      %2358 = vmatpush1.msra.mxu0 %v2310
      %2359 = vmatprep.subr.mxu0 0.0
      %2360 = vmatpush1.msra.mxu0 %v2312
      %2361 = vmatprep.subr.mxu0 0.0
      %2362 = vmatpush1.msra.mxu0 %v2314
      %2363 = vmatprep.subr.mxu0 0.0
      %2364 = vmatpush1.msra.mxu0 %v2316
      %2365 = vmatprep.subr.mxu0 0.0
      %2366 = vmatpush1.msra.mxu0 %v2318
      %2367 = vmatprep.subr.mxu0 0.0
      %2368 = vmatpush1.msra.mxu0 0.0
      %2369 = vmatprep.subr.mxu0 0.0
      %2370 = vmatpush1.msra.mxu0 0.0
      %2371 = vmatprep.subr.mxu0 0.0
      %2372 = vmatpush1.msra.mxu0 0.0
      %2373 = vmatprep.subr.mxu0 0.0
      %2374 = vmatpush1.msra.mxu0 0.0
      %2375 = vmatprep.subr.mxu0 0.0
      %2376 = vmatpush1.msra.mxu0 0.0
      %2377 = vmatprep.subr.mxu0 0.0
      %2378 = vmatpush1.msra.mxu0 0.0
      %2379 = vmatprep.subr.mxu0 0.0
      %2380 = vmatpush1.msra.mxu0 0.0
      %2381 = vmatprep.subr.mxu0 0.0
      %2382 = vmatpush1.msra.mxu0 0.0
      %2383 = vmatprep.subr.mxu0 0.0
      %2384 = vmatpush1.msra.mxu0 0.0
      %2385 = vmatprep.subr.mxu0 0.0
      %2386 = vmatpush1.msra.mxu0 0.0
      %2387 = vmatprep.subr.mxu0 0.0
      %2388 = vmatpush1.msra.mxu0 0.0
      %2389 = vmatprep.subr.mxu0 0.0
      %2390 = vmatpush1.msra.mxu0 0.0
      %2391 = vmatprep.subr.mxu0 0.0
      %2392 = vmatpush1.msra.mxu0 0.0
      %2393 = vmatprep.subr.mxu0 0.0
      %2394 = vmatpush1.msra.mxu0 0.0
      %2395 = vmatprep.subr.mxu0 0.0
      %2396 = vmatpush1.msra.mxu0 0.0
      %2397 = vmatprep.subr.mxu0 0.0
      %2398 = vmatpush1.msra.mxu0 0.0
      %2399 = vmatprep.subr.mxu0 0.0
      %2400 = vmatpush1.msra.mxu0 0.0
      %2401 = vmatprep.subr.mxu0 0.0
      %2402 = vmatpush1.msra.mxu0 0.0
      %2403 = vmatprep.subr.mxu0 0.0
      %2404 = vmatpush1.msra.mxu0 0.0
      %2405 = vmatprep.subr.mxu0 0.0
      %2406 = vmatpush1.msra.mxu0 0.0
      %2407 = vmatprep.subr.mxu0 0.0
      %2408 = vmatpush1.msra.mxu0 0.0
      %2409 = vmatprep.subr.mxu0 0.0
      %2410 = vmatpush1.msra.mxu0 0.0
      %2411 = vmatprep.subr.mxu0 0.0
      %2412 = vmatpush1.msra.mxu0 0.0
      %2413 = vmatprep.subr.mxu0 0.0
      %2414 = vmatpush1.msra.mxu0 0.0
      %2415 = vmatprep.mubr.f32.mxu0 0.0
      %2416 = vmatmul.mubr.f32.gmra.mrb[0].mxu0 %v2328
      %v2417 = vpop.f32.mrb[0].mxu0
      %v2418 = vadd.f32 0.0, %v2417
      %v2419 = vpop.f32.mrb[0].mxu0
      %2420 = vmatprep.mubr.f32.mxu0 0.0
      %2421 = vmatmul.mubr.f32.gmra.mrb[0].mxu0 %v2331
      %v2422 = vpop.f32.mrb[0].mxu0
      %v2423 = vadd.f32 0.0, %v2422
      %v2424 = vpop.f32.mrb[0].mxu0
      %2425 = vmatprep.mubr.f32.mxu0 0.0
      %2426 = vmatmul.mubr.f32.gmra.mrb[0].mxu0 %v2334
      %v2427 = vpop.f32.mrb[0].mxu0
      %v2428 = vadd.f32 0.0, %v2427
      %v2429 = vpop.f32.mrb[0].mxu0
      %2430 = vmatprep.mubr.f32.mxu0 0.0
      %2431 = vmatmul.mubr.f32.gmra.mrb[0].mxu0 %v2337
      %v2432 = vpop.f32.mrb[0].mxu0
      %v2433 = vadd.f32 0.0, %v2432
      %v2434 = vpop.f32.mrb[0].mxu0
      %2435 = vmatprep.mubr.f32.mxu0 0.0
      %2436 = vmatmul.mubr.f32.gmra.mrb[0].mxu0 %v2340
      %v2437 = vpop.f32.mrb[0].mxu0
      %v2438 = vadd.f32 0.0, %v2437
      %v2439 = vpop.f32.mrb[0].mxu0
      %2440 = vmatprep.mubr.f32.mxu0 0.0
      %2441 = vmatmul.mubr.f32.gmra.mrb[0].mxu0 %v2343
      %v2442 = vpop.f32.mrb[0].mxu0
      %v2443 = vadd.f32 0.0, %v2442
      %v2444 = vpop.f32.mrb[0].mxu0
      %2445 = vmatprep.mubr.f32.mxu0 0.0
      %2446 = vmatmul.mubr.f32.gmra.mrb[0].mxu0 %v2346
      %v2447 = vpop.f32.mrb[0].mxu0
      %v2448 = vadd.f32 0.0, %v2447
      %v2449 = vpop.f32.mrb[0].mxu0
      %2450 = vmatprep.mubr.f32.mxu0 0.0
      %2451 = vmatmul.mubr.f32.gmra.mrb[0].mxu0 %v2349
      %v2452 = vpop.f32.mrb[0].mxu0
      %v2453 = vadd.f32 0.0, %v2452
      %v2454 = vpop.f32.mrb[0].mxu0
      %2455 = vdwg.mxu0
      %v2456 = vld [vmem:[%s4] sm:$0xff]
      %v2457 = vld [vmem:[%s4 + $0x8] sm:$0xff]
      %v2458 = vld [vmem:[%s4 + $0x10] sm:$0xff]
      %v2459 = vld [vmem:[%s4 + $0x18] sm:$0xff]
      %v2460 = vmul.u32 %v339, 4
      %v2461 = vmul.u32 %v340, 4
      %vm2462 = vcmp.eq.s32.totalorder %v348, %v2460
      %vm2463 = vcmp.eq.s32.totalorder %v348, %v2461
      %v2464 = vsel %vm2462, 1, 0
      %v2465 = vsel %vm2463, 1, 0
      %v2466 = vcvt.s32.f32 %v2464
      %v2467 = vcvt.s32.f32 %v2465
      %v2468 = vadd.s32 %v2460, 1
      %v2469 = vadd.s32 %v2461, 1
      %vm2470 = vcmp.eq.s32.totalorder %v348, %v2468
      %vm2471 = vcmp.eq.s32.totalorder %v348, %v2469
      %v2472 = vsel %vm2470, 1, 0
      %v2473 = vsel %vm2471, 1, 0
      %v2474 = vcvt.s32.f32 %v2472
      %v2475 = vcvt.s32.f32 %v2473
      %v2476 = vadd.s32 %v2460, 2
      %v2477 = vadd.s32 %v2461, 2
      %vm2478 = vcmp.eq.s32.totalorder %v348, %v2476
      %vm2479 = vcmp.eq.s32.totalorder %v348, %v2477
      %v2480 = vsel %vm2478, 1, 0
      %v2481 = vsel %vm2479, 1, 0
      %v2482 = vcvt.s32.f32 %v2480
      %v2483 = vcvt.s32.f32 %v2481
      %v2484 = vadd.s32 %v2460, 3
      %v2485 = vadd.s32 %v2461, 3
      %vm2486 = vcmp.eq.s32.totalorder %v348, %v2484
      %vm2487 = vcmp.eq.s32.totalorder %v348, %v2485
      %v2488 = vsel %vm2486, 1, 0
      %v2489 = vsel %vm2487, 1, 0
      %v2490 = vcvt.s32.f32 %v2488
      %v2491 = vcvt.s32.f32 %v2489
      %v2493 = vsel %vm373, %v2466, 0
      %v2496 = vsel %vm373, %v2467, 0
      %2498 = vmatprep.subr.mxu0 0.0
      %2499 = vmatpush1.msra.mxu0 %v1188
      %2500 = vmatprep.subr.mxu0 0.0
      %2501 = vmatpush1.msra.mxu0 %v1193
      %2502 = vmatprep.subr.mxu0 0.0
      %2503 = vmatpush1.msra.mxu0 %v1198
      %2504 = vmatprep.subr.mxu0 0.0
      %2505 = vmatpush1.msra.mxu0 %v1203
      %2506 = vmatprep.subr.mxu0 0.0
      %2507 = vmatpush1.msra.mxu0 %v1208
      %2508 = vmatprep.subr.mxu0 0.0
      %2509 = vmatpush1.msra.mxu0 %v1213
      %2510 = vmatprep.subr.mxu0 0.0
      %2511 = vmatpush1.msra.mxu0 %v1218
      %2512 = vmatprep.subr.mxu0 0.0
      %2513 = vmatpush1.msra.mxu0 %v1223
      %2514 = vmatprep.subr.mxu0 0.0
      %2515 = vmatpush1.msra.mxu0 0.0
      %2516 = vmatprep.subr.mxu0 0.0
      %2517 = vmatpush1.msra.mxu0 0.0
      %2518 = vmatprep.subr.mxu0 0.0
      %2519 = vmatpush1.msra.mxu0 0.0
      %2520 = vmatprep.subr.mxu0 0.0
      %2521 = vmatpush1.msra.mxu0 0.0
      %2522 = vmatprep.subr.mxu0 0.0
      %2523 = vmatpush1.msra.mxu0 0.0
      %2524 = vmatprep.subr.mxu0 0.0
      %2525 = vmatpush1.msra.mxu0 0.0
      %2526 = vmatprep.subr.mxu0 0.0
      %2527 = vmatpush1.msra.mxu0 0.0
      %2528 = vmatprep.subr.mxu0 0.0
      %2529 = vmatpush1.msra.mxu0 0.0
      %2530 = vmatprep.subr.mxu0 0.0
      %2531 = vmatpush1.msra.mxu0 0.0
      %2532 = vmatprep.subr.mxu0 0.0
      %2533 = vmatpush1.msra.mxu0 0.0
      %2534 = vmatprep.subr.mxu0 0.0
      %2535 = vmatpush1.msra.mxu0 0.0
      %2536 = vmatprep.subr.mxu0 0.0
      %2537 = vmatpush1.msra.mxu0 0.0
      %2538 = vmatprep.subr.mxu0 0.0
      %2539 = vmatpush1.msra.mxu0 0.0
      %2540 = vmatprep.subr.mxu0 0.0
      %2541 = vmatpush1.msra.mxu0 0.0
      %2542 = vmatprep.subr.mxu0 0.0
      %2543 = vmatpush1.msra.mxu0 0.0
      %2544 = vmatprep.subr.mxu0 0.0
      %2545 = vmatpush1.msra.mxu0 0.0
      %2546 = vmatprep.subr.mxu0 0.0
      %2547 = vmatpush1.msra.mxu0 0.0
      %2548 = vmatprep.subr.mxu0 0.0
      %2549 = vmatpush1.msra.mxu0 0.0
      %2550 = vmatprep.subr.mxu0 0.0
      %2551 = vmatpush1.msra.mxu0 0.0
      %2552 = vmatprep.subr.mxu0 0.0
      %2553 = vmatpush1.msra.mxu0 0.0
      %2554 = vmatprep.subr.mxu0 0.0
      %2555 = vmatpush1.msra.mxu0 0.0
      %2556 = vmatprep.subr.mxu0 0.0
      %2557 = vmatpush1.msra.mxu0 0.0
      %2558 = vmatprep.subr.mxu0 0.0
      %2559 = vmatpush1.msra.mxu0 0.0
      %2560 = vmatprep.subr.mxu0 0.0
      %2561 = vmatpush1.msra.mxu0 0.0
      %2562 = vmatprep.mubr.f32.mxu0 0.0
      %2563 = vmatmul.mubr.f32.gmra.mrb[0].mxu0 %v2493
      %v2564 = vpop.f32.mrb[0].mxu0
      %v2565 = vadd.f32 0.0, %v2564
      %v2566 = vpop.f32.mrb[0].mxu0
      %2567 = vmatprep.mubr.f32.mxu0 0.0
      %2568 = vmatmul.mubr.f32.gmra.mrb[0].mxu0 %v2496
      %v2569 = vpop.f32.mrb[0].mxu0
      %v2570 = vadd.f32 0.0, %v2569
      %v2571 = vpop.f32.mrb[0].mxu0
      %2572 = vdwg.mxu0
      %v2574 = vsel %vm373, %v2474, 0
      %v2577 = vsel %vm373, %v2475, 0
      %2579 = vmatprep.subr.mxu0 0.0
      %2580 = vmatpush1.msra.mxu0 %v1188
      %2581 = vmatprep.subr.mxu0 0.0
      %2582 = vmatpush1.msra.mxu0 %v1193
      %2583 = vmatprep.subr.mxu0 0.0
      %2584 = vmatpush1.msra.mxu0 %v1198
      %2585 = vmatprep.subr.mxu0 0.0
      %2586 = vmatpush1.msra.mxu0 %v1203
      %2587 = vmatprep.subr.mxu0 0.0
      %2588 = vmatpush1.msra.mxu0 %v1208
      %2589 = vmatprep.subr.mxu0 0.0
      %2590 = vmatpush1.msra.mxu0 %v1213
      %2591 = vmatprep.subr.mxu0 0.0
      %2592 = vmatpush1.msra.mxu0 %v1218
      %2593 = vmatprep.subr.mxu0 0.0
      %2594 = vmatpush1.msra.mxu0 %v1223
      %2595 = vmatprep.subr.mxu0 0.0
      %2596 = vmatpush1.msra.mxu0 0.0
      %2597 = vmatprep.subr.mxu0 0.0
      %2598 = vmatpush1.msra.mxu0 0.0
      %2599 = vmatprep.subr.mxu0 0.0
      %2600 = vmatpush1.msra.mxu0 0.0
      %2601 = vmatprep.subr.mxu0 0.0
      %2602 = vmatpush1.msra.mxu0 0.0
      %2603 = vmatprep.subr.mxu0 0.0
      %2604 = vmatpush1.msra.mxu0 0.0
      %2605 = vmatprep.subr.mxu0 0.0
      %2606 = vmatpush1.msra.mxu0 0.0
      %2607 = vmatprep.subr.mxu0 0.0
      %2608 = vmatpush1.msra.mxu0 0.0
      %2609 = vmatprep.subr.mxu0 0.0
      %2610 = vmatpush1.msra.mxu0 0.0
      %2611 = vmatprep.subr.mxu0 0.0
      %2612 = vmatpush1.msra.mxu0 0.0
      %2613 = vmatprep.subr.mxu0 0.0
      %2614 = vmatpush1.msra.mxu0 0.0
      %2615 = vmatprep.subr.mxu0 0.0
      %2616 = vmatpush1.msra.mxu0 0.0
      %2617 = vmatprep.subr.mxu0 0.0
      %2618 = vmatpush1.msra.mxu0 0.0
      %2619 = vmatprep.subr.mxu0 0.0
      %2620 = vmatpush1.msra.mxu0 0.0
      %2621 = vmatprep.subr.mxu0 0.0
      %2622 = vmatpush1.msra.mxu0 0.0
      %2623 = vmatprep.subr.mxu0 0.0
      %2624 = vmatpush1.msra.mxu0 0.0
      %2625 = vmatprep.subr.mxu0 0.0
      %2626 = vmatpush1.msra.mxu0 0.0
      %2627 = vmatprep.subr.mxu0 0.0
      %2628 = vmatpush1.msra.mxu0 0.0
      %2629 = vmatprep.subr.mxu0 0.0
      %2630 = vmatpush1.msra.mxu0 0.0
      %2631 = vmatprep.subr.mxu0 0.0
      %2632 = vmatpush1.msra.mxu0 0.0
      %2633 = vmatprep.subr.mxu0 0.0
      %2634 = vmatpush1.msra.mxu0 0.0
      %2635 = vmatprep.subr.mxu0 0.0
      %2636 = vmatpush1.msra.mxu0 0.0
      %2637 = vmatprep.subr.mxu0 0.0
      %2638 = vmatpush1.msra.mxu0 0.0
      %2639 = vmatprep.subr.mxu0 0.0
      %2640 = vmatpush1.msra.mxu0 0.0
      %2641 = vmatprep.subr.mxu0 0.0
      %2642 = vmatpush1.msra.mxu0 0.0
      %2643 = vmatprep.mubr.f32.mxu0 0.0
      %2644 = vmatmul.mubr.f32.gmra.mrb[0].mxu0 %v2574
      %v2645 = vpop.f32.mrb[0].mxu0
      %v2646 = vadd.f32 0.0, %v2645
      %v2647 = vpop.f32.mrb[0].mxu0
      %2648 = vmatprep.mubr.f32.mxu0 0.0
      %2649 = vmatmul.mubr.f32.gmra.mrb[0].mxu0 %v2577
      %v2650 = vpop.f32.mrb[0].mxu0
      %v2651 = vadd.f32 0.0, %v2650
      %v2652 = vpop.f32.mrb[0].mxu0
      %2653 = vdwg.mxu0
      %v2655 = vsel %vm823, %v2646, 0
      %v2658 = vsel %vm823, %v2651, 0
      %2660 = vmatprep.subr.mxu0 0.0
      %2661 = vmatpush1.msra.mxu0 %v2457
      %2662 = vmatprep.subr.mxu0 0.0
      %2663 = vmatpush1.msra.mxu0 0.0
      %2664 = vmatprep.subr.mxu0 0.0
      %2665 = vmatpush1.msra.mxu0 0.0
      %2666 = vmatprep.subr.mxu0 0.0
      %2667 = vmatpush1.msra.mxu0 0.0
      %2668 = vmatprep.subr.mxu0 0.0
      %2669 = vmatpush1.msra.mxu0 0.0
      %2670 = vmatprep.subr.mxu0 0.0
      %2671 = vmatpush1.msra.mxu0 0.0
      %2672 = vmatprep.subr.mxu0 0.0
      %2673 = vmatpush1.msra.mxu0 0.0
      %2674 = vmatprep.subr.mxu0 0.0
      %2675 = vmatpush1.msra.mxu0 0.0
      %2676 = vmatprep.subr.mxu0 0.0
      %2677 = vmatpush1.msra.mxu0 0.0
      %2678 = vmatprep.subr.mxu0 0.0
      %2679 = vmatpush1.msra.mxu0 0.0
      %2680 = vmatprep.subr.mxu0 0.0
      %2681 = vmatpush1.msra.mxu0 0.0
      %2682 = vmatprep.subr.mxu0 0.0
      %2683 = vmatpush1.msra.mxu0 0.0
      %2684 = vmatprep.subr.mxu0 0.0
      %2685 = vmatpush1.msra.mxu0 0.0
      %2686 = vmatprep.subr.mxu0 0.0
      %2687 = vmatpush1.msra.mxu0 0.0
      %2688 = vmatprep.subr.mxu0 0.0
      %2689 = vmatpush1.msra.mxu0 0.0
      %2690 = vmatprep.subr.mxu0 0.0
      %2691 = vmatpush1.msra.mxu0 0.0
      %2692 = vmatprep.subr.mxu0 0.0
      %2693 = vmatpush1.msra.mxu0 0.0
      %2694 = vmatprep.subr.mxu0 0.0
      %2695 = vmatpush1.msra.mxu0 0.0
      %2696 = vmatprep.subr.mxu0 0.0
      %2697 = vmatpush1.msra.mxu0 0.0
      %2698 = vmatprep.subr.mxu0 0.0
      %2699 = vmatpush1.msra.mxu0 0.0
      %2700 = vmatprep.subr.mxu0 0.0
      %2701 = vmatpush1.msra.mxu0 0.0
      %2702 = vmatprep.subr.mxu0 0.0
      %2703 = vmatpush1.msra.mxu0 0.0
      %2704 = vmatprep.subr.mxu0 0.0
      %2705 = vmatpush1.msra.mxu0 0.0
      %2706 = vmatprep.subr.mxu0 0.0
      %2707 = vmatpush1.msra.mxu0 0.0
      %2708 = vmatprep.subr.mxu0 0.0
      %2709 = vmatpush1.msra.mxu0 0.0
      %2710 = vmatprep.subr.mxu0 0.0
      %2711 = vmatpush1.msra.mxu0 0.0
      %2712 = vmatprep.subr.mxu0 0.0
      %2713 = vmatpush1.msra.mxu0 0.0
      %2714 = vmatprep.subr.mxu0 0.0
      %2715 = vmatpush1.msra.mxu0 0.0
      %2716 = vmatprep.subr.mxu0 0.0
      %2717 = vmatpush1.msra.mxu0 0.0
      %2718 = vmatprep.subr.mxu0 0.0
      %2719 = vmatpush1.msra.mxu0 0.0
      %2720 = vmatprep.subr.mxu0 0.0
      %2721 = vmatpush1.msra.mxu0 0.0
      %2722 = vmatprep.subr.mxu0 0.0
      %2723 = vmatpush1.msra.mxu0 0.0
      %2724 = vmatprep.mubr.f32.mxu0 0.0
      %2725 = vmatmul.mubr.f32.gmra.mrb[0].mxu0 %v2655
      %v2726 = vpop.f32.mrb[0].mxu0
      %v2727 = vadd.f32 0.0, %v2726
      %v2728 = vpop.f32.mrb[0].mxu0
      %2729 = vmatprep.mubr.f32.mxu0 0.0
      %2730 = vmatmul.mubr.f32.gmra.mrb[0].mxu0 %v2658
      %v2731 = vpop.f32.mrb[0].mxu0
      %v2732 = vadd.f32 0.0, %v2731
      %v2733 = vpop.f32.mrb[0].mxu0
      %2734 = vdwg.mxu0
      %v2736 = vsel %vm823, %v2565, 0
      %v2739 = vsel %vm823, %v2570, 0
      %2741 = vmatprep.subr.mxu0 0.0
      %2742 = vmatpush1.msra.mxu0 %v2456
      %2743 = vmatprep.subr.mxu0 0.0
      %2744 = vmatpush1.msra.mxu0 0.0
      %2745 = vmatprep.subr.mxu0 0.0
      %2746 = vmatpush1.msra.mxu0 0.0
      %2747 = vmatprep.subr.mxu0 0.0
      %2748 = vmatpush1.msra.mxu0 0.0
      %2749 = vmatprep.subr.mxu0 0.0
      %2750 = vmatpush1.msra.mxu0 0.0
      %2751 = vmatprep.subr.mxu0 0.0
      %2752 = vmatpush1.msra.mxu0 0.0
      %2753 = vmatprep.subr.mxu0 0.0
      %2754 = vmatpush1.msra.mxu0 0.0
      %2755 = vmatprep.subr.mxu0 0.0
      %2756 = vmatpush1.msra.mxu0 0.0
      %2757 = vmatprep.subr.mxu0 0.0
      %2758 = vmatpush1.msra.mxu0 0.0
      %2759 = vmatprep.subr.mxu0 0.0
      %2760 = vmatpush1.msra.mxu0 0.0
      %2761 = vmatprep.subr.mxu0 0.0
      %2762 = vmatpush1.msra.mxu0 0.0
      %2763 = vmatprep.subr.mxu0 0.0
      %2764 = vmatpush1.msra.mxu0 0.0
      %2765 = vmatprep.subr.mxu0 0.0
      %2766 = vmatpush1.msra.mxu0 0.0
      %2767 = vmatprep.subr.mxu0 0.0
      %2768 = vmatpush1.msra.mxu0 0.0
      %2769 = vmatprep.subr.mxu0 0.0
      %2770 = vmatpush1.msra.mxu0 0.0
      %2771 = vmatprep.subr.mxu0 0.0
      %2772 = vmatpush1.msra.mxu0 0.0
      %2773 = vmatprep.subr.mxu0 0.0
      %2774 = vmatpush1.msra.mxu0 0.0
      %2775 = vmatprep.subr.mxu0 0.0
      %2776 = vmatpush1.msra.mxu0 0.0
      %2777 = vmatprep.subr.mxu0 0.0
      %2778 = vmatpush1.msra.mxu0 0.0
      %2779 = vmatprep.subr.mxu0 0.0
      %2780 = vmatpush1.msra.mxu0 0.0
      %2781 = vmatprep.subr.mxu0 0.0
      %2782 = vmatpush1.msra.mxu0 0.0
      %2783 = vmatprep.subr.mxu0 0.0
      %2784 = vmatpush1.msra.mxu0 0.0
      %2785 = vmatprep.subr.mxu0 0.0
      %2786 = vmatpush1.msra.mxu0 0.0
      %2787 = vmatprep.subr.mxu0 0.0
      %2788 = vmatpush1.msra.mxu0 0.0
      %2789 = vmatprep.subr.mxu0 0.0
      %2790 = vmatpush1.msra.mxu0 0.0
      %2791 = vmatprep.subr.mxu0 0.0
      %2792 = vmatpush1.msra.mxu0 0.0
      %2793 = vmatprep.subr.mxu0 0.0
      %2794 = vmatpush1.msra.mxu0 0.0
      %2795 = vmatprep.subr.mxu0 0.0
      %2796 = vmatpush1.msra.mxu0 0.0
      %2797 = vmatprep.subr.mxu0 0.0
      %2798 = vmatpush1.msra.mxu0 0.0
      %2799 = vmatprep.subr.mxu0 0.0
      %2800 = vmatpush1.msra.mxu0 0.0
      %2801 = vmatprep.subr.mxu0 0.0
      %2802 = vmatpush1.msra.mxu0 0.0
      %2803 = vmatprep.subr.mxu0 0.0
      %2804 = vmatpush1.msra.mxu0 0.0
      %2805 = vmatprep.mubr.f32.mxu0 0.0
      %2806 = vmatmul.mubr.f32.gmra.mrb[0].mxu0 %v2736
      %v2807 = vpop.f32.mrb[0].mxu0
      %v2808 = vadd.f32 %v2727, %v2807
      %v2809 = vpop.f32.mrb[0].mxu0
      %2810 = vmatprep.mubr.f32.mxu0 0.0
      %2811 = vmatmul.mubr.f32.gmra.mrb[0].mxu0 %v2739
      %v2812 = vpop.f32.mrb[0].mxu0
      %v2813 = vadd.f32 %v2732, %v2812
      %v2814 = vpop.f32.mrb[0].mxu0
      %2815 = vdwg.mxu0
      %v2817 = vsel %vm373, %v2482, 0
      %v2820 = vsel %vm373, %v2483, 0
      %2822 = vmatprep.subr.mxu0 0.0
      %2823 = vmatpush1.msra.mxu0 %v1188
      %2824 = vmatprep.subr.mxu0 0.0
      %2825 = vmatpush1.msra.mxu0 %v1193
      %2826 = vmatprep.subr.mxu0 0.0
      %2827 = vmatpush1.msra.mxu0 %v1198
      %2828 = vmatprep.subr.mxu0 0.0
      %2829 = vmatpush1.msra.mxu0 %v1203
      %2830 = vmatprep.subr.mxu0 0.0
      %2831 = vmatpush1.msra.mxu0 %v1208
      %2832 = vmatprep.subr.mxu0 0.0
      %2833 = vmatpush1.msra.mxu0 %v1213
      %2834 = vmatprep.subr.mxu0 0.0
      %2835 = vmatpush1.msra.mxu0 %v1218
      %2836 = vmatprep.subr.mxu0 0.0
      %2837 = vmatpush1.msra.mxu0 %v1223
      %2838 = vmatprep.subr.mxu0 0.0
      %2839 = vmatpush1.msra.mxu0 0.0
      %2840 = vmatprep.subr.mxu0 0.0
      %2841 = vmatpush1.msra.mxu0 0.0
      %2842 = vmatprep.subr.mxu0 0.0
      %2843 = vmatpush1.msra.mxu0 0.0
      %2844 = vmatprep.subr.mxu0 0.0
      %2845 = vmatpush1.msra.mxu0 0.0
      %2846 = vmatprep.subr.mxu0 0.0
      %2847 = vmatpush1.msra.mxu0 0.0
      %2848 = vmatprep.subr.mxu0 0.0
      %2849 = vmatpush1.msra.mxu0 0.0
      %2850 = vmatprep.subr.mxu0 0.0
      %2851 = vmatpush1.msra.mxu0 0.0
      %2852 = vmatprep.subr.mxu0 0.0
      %2853 = vmatpush1.msra.mxu0 0.0
      %2854 = vmatprep.subr.mxu0 0.0
      %2855 = vmatpush1.msra.mxu0 0.0
      %2856 = vmatprep.subr.mxu0 0.0
      %2857 = vmatpush1.msra.mxu0 0.0
      %2858 = vmatprep.subr.mxu0 0.0
      %2859 = vmatpush1.msra.mxu0 0.0
      %2860 = vmatprep.subr.mxu0 0.0
      %2861 = vmatpush1.msra.mxu0 0.0
      %2862 = vmatprep.subr.mxu0 0.0
      %2863 = vmatpush1.msra.mxu0 0.0
      %2864 = vmatprep.subr.mxu0 0.0
      %2865 = vmatpush1.msra.mxu0 0.0
      %2866 = vmatprep.subr.mxu0 0.0
      %2867 = vmatpush1.msra.mxu0 0.0
      %2868 = vmatprep.subr.mxu0 0.0
      %2869 = vmatpush1.msra.mxu0 0.0
      %2870 = vmatprep.subr.mxu0 0.0
      %2871 = vmatpush1.msra.mxu0 0.0
      %2872 = vmatprep.subr.mxu0 0.0
      %2873 = vmatpush1.msra.mxu0 0.0
      %2874 = vmatprep.subr.mxu0 0.0
      %2875 = vmatpush1.msra.mxu0 0.0
      %2876 = vmatprep.subr.mxu0 0.0
      %2877 = vmatpush1.msra.mxu0 0.0
      %2878 = vmatprep.subr.mxu0 0.0
      %2879 = vmatpush1.msra.mxu0 0.0
      %2880 = vmatprep.subr.mxu0 0.0
      %2881 = vmatpush1.msra.mxu0 0.0
      %2882 = vmatprep.subr.mxu0 0.0
      %2883 = vmatpush1.msra.mxu0 0.0
      %2884 = vmatprep.subr.mxu0 0.0
      %2885 = vmatpush1.msra.mxu0 0.0
      %2886 = vmatprep.mubr.f32.mxu0 0.0
      %2887 = vmatmul.mubr.f32.gmra.mrb[0].mxu0 %v2817
      %v2888 = vpop.f32.mrb[0].mxu0
      %v2889 = vadd.f32 0.0, %v2888
      %v2890 = vpop.f32.mrb[0].mxu0
      %2891 = vmatprep.mubr.f32.mxu0 0.0
      %2892 = vmatmul.mubr.f32.gmra.mrb[0].mxu0 %v2820
      %v2893 = vpop.f32.mrb[0].mxu0
      %v2894 = vadd.f32 0.0, %v2893
      %v2895 = vpop.f32.mrb[0].mxu0
      %2896 = vdwg.mxu0
      %v2898 = vsel %vm823, %v2889, 0
      %v2901 = vsel %vm823, %v2894, 0
      %2903 = vmatprep.subr.mxu0 0.0
      %2904 = vmatpush1.msra.mxu0 %v2458
      %2905 = vmatprep.subr.mxu0 0.0
      %2906 = vmatpush1.msra.mxu0 0.0
      %2907 = vmatprep.subr.mxu0 0.0
      %2908 = vmatpush1.msra.mxu0 0.0
      %2909 = vmatprep.subr.mxu0 0.0
      %2910 = vmatpush1.msra.mxu0 0.0
      %2911 = vmatprep.subr.mxu0 0.0
      %2912 = vmatpush1.msra.mxu0 0.0
      %2913 = vmatprep.subr.mxu0 0.0
      %2914 = vmatpush1.msra.mxu0 0.0
      %2915 = vmatprep.subr.mxu0 0.0
      %2916 = vmatpush1.msra.mxu0 0.0
      %2917 = vmatprep.subr.mxu0 0.0
      %2918 = vmatpush1.msra.mxu0 0.0
      %2919 = vmatprep.subr.mxu0 0.0
      %2920 = vmatpush1.msra.mxu0 0.0
      %2921 = vmatprep.subr.mxu0 0.0
      %2922 = vmatpush1.msra.mxu0 0.0
      %2923 = vmatprep.subr.mxu0 0.0
      %2924 = vmatpush1.msra.mxu0 0.0
      %2925 = vmatprep.subr.mxu0 0.0
      %2926 = vmatpush1.msra.mxu0 0.0
      %2927 = vmatprep.subr.mxu0 0.0
      %2928 = vmatpush1.msra.mxu0 0.0
      %2929 = vmatprep.subr.mxu0 0.0
      %2930 = vmatpush1.msra.mxu0 0.0
      %2931 = vmatprep.subr.mxu0 0.0
      %2932 = vmatpush1.msra.mxu0 0.0
      %2933 = vmatprep.subr.mxu0 0.0
      %2934 = vmatpush1.msra.mxu0 0.0
      %2935 = vmatprep.subr.mxu0 0.0
      %2936 = vmatpush1.msra.mxu0 0.0
      %2937 = vmatprep.subr.mxu0 0.0
      %2938 = vmatpush1.msra.mxu0 0.0
      %2939 = vmatprep.subr.mxu0 0.0
      %2940 = vmatpush1.msra.mxu0 0.0
      %2941 = vmatprep.subr.mxu0 0.0
      %2942 = vmatpush1.msra.mxu0 0.0
      %2943 = vmatprep.subr.mxu0 0.0
      %2944 = vmatpush1.msra.mxu0 0.0
      %2945 = vmatprep.subr.mxu0 0.0
      %2946 = vmatpush1.msra.mxu0 0.0
      %2947 = vmatprep.subr.mxu0 0.0
      %2948 = vmatpush1.msra.mxu0 0.0
      %2949 = vmatprep.subr.mxu0 0.0
      %2950 = vmatpush1.msra.mxu0 0.0
      %2951 = vmatprep.subr.mxu0 0.0
      %2952 = vmatpush1.msra.mxu0 0.0
      %2953 = vmatprep.subr.mxu0 0.0
      %2954 = vmatpush1.msra.mxu0 0.0
      %2955 = vmatprep.subr.mxu0 0.0
      %2956 = vmatpush1.msra.mxu0 0.0
      %2957 = vmatprep.subr.mxu0 0.0
      %2958 = vmatpush1.msra.mxu0 0.0
      %2959 = vmatprep.subr.mxu0 0.0
      %2960 = vmatpush1.msra.mxu0 0.0
      %2961 = vmatprep.subr.mxu0 0.0
      %2962 = vmatpush1.msra.mxu0 0.0
      %2963 = vmatprep.subr.mxu0 0.0
      %2964 = vmatpush1.msra.mxu0 0.0
      %2965 = vmatprep.subr.mxu0 0.0
      %2966 = vmatpush1.msra.mxu0 0.0
      %2967 = vmatprep.mubr.f32.mxu0 0.0
      %2968 = vmatmul.mubr.f32.gmra.mrb[0].mxu0 %v2898
      %v2969 = vpop.f32.mrb[0].mxu0
      %v2970 = vadd.f32 0.0, %v2969
      %v2971 = vpop.f32.mrb[0].mxu0
      %2972 = vmatprep.mubr.f32.mxu0 0.0
      %2973 = vmatmul.mubr.f32.gmra.mrb[0].mxu0 %v2901
      %v2974 = vpop.f32.mrb[0].mxu0
      %v2975 = vadd.f32 0.0, %v2974
      %v2976 = vpop.f32.mrb[0].mxu0
      %2977 = vdwg.mxu0
      %v2978 = vadd.f32 %v2808, %v2970
      %v2979 = vadd.f32 %v2813, %v2975
      %v2981 = vsel %vm373, %v2490, 0
      %v2984 = vsel %vm373, %v2491, 0
      %2986 = vmatprep.subr.mxu0 0.0
      %2987 = vmatpush1.msra.mxu0 %v1188
      %2988 = vmatprep.subr.mxu0 0.0
      %2989 = vmatpush1.msra.mxu0 %v1193
      %2990 = vmatprep.subr.mxu0 0.0
      %2991 = vmatpush1.msra.mxu0 %v1198
      %2992 = vmatprep.subr.mxu0 0.0
      %2993 = vmatpush1.msra.mxu0 %v1203
      %2994 = vmatprep.subr.mxu0 0.0
      %2995 = vmatpush1.msra.mxu0 %v1208
      %2996 = vmatprep.subr.mxu0 0.0
      %2997 = vmatpush1.msra.mxu0 %v1213
      %2998 = vmatprep.subr.mxu0 0.0
      %2999 = vmatpush1.msra.mxu0 %v1218
      %3000 = vmatprep.subr.mxu0 0.0
      %3001 = vmatpush1.msra.mxu0 %v1223
      %3002 = vmatprep.subr.mxu0 0.0
      %3003 = vmatpush1.msra.mxu0 0.0
      %3004 = vmatprep.subr.mxu0 0.0
      %3005 = vmatpush1.msra.mxu0 0.0
      %3006 = vmatprep.subr.mxu0 0.0
      %3007 = vmatpush1.msra.mxu0 0.0
      %3008 = vmatprep.subr.mxu0 0.0
      %3009 = vmatpush1.msra.mxu0 0.0
      %3010 = vmatprep.subr.mxu0 0.0
      %3011 = vmatpush1.msra.mxu0 0.0
      %3012 = vmatprep.subr.mxu0 0.0
      %3013 = vmatpush1.msra.mxu0 0.0
      %3014 = vmatprep.subr.mxu0 0.0
      %3015 = vmatpush1.msra.mxu0 0.0
      %3016 = vmatprep.subr.mxu0 0.0
      %3017 = vmatpush1.msra.mxu0 0.0
      %3018 = vmatprep.subr.mxu0 0.0
      %3019 = vmatpush1.msra.mxu0 0.0
      %3020 = vmatprep.subr.mxu0 0.0
      %3021 = vmatpush1.msra.mxu0 0.0
      %3022 = vmatprep.subr.mxu0 0.0
      %3023 = vmatpush1.msra.mxu0 0.0
      %3024 = vmatprep.subr.mxu0 0.0
      %3025 = vmatpush1.msra.mxu0 0.0
      %3026 = vmatprep.subr.mxu0 0.0
      %3027 = vmatpush1.msra.mxu0 0.0
      %3028 = vmatprep.subr.mxu0 0.0
      %3029 = vmatpush1.msra.mxu0 0.0
      %3030 = vmatprep.subr.mxu0 0.0
      %3031 = vmatpush1.msra.mxu0 0.0
      %3032 = vmatprep.subr.mxu0 0.0
      %3033 = vmatpush1.msra.mxu0 0.0
      %3034 = vmatprep.subr.mxu0 0.0
      %3035 = vmatpush1.msra.mxu0 0.0
      %3036 = vmatprep.subr.mxu0 0.0
      %3037 = vmatpush1.msra.mxu0 0.0
      %3038 = vmatprep.subr.mxu0 0.0
      %3039 = vmatpush1.msra.mxu0 0.0
      %3040 = vmatprep.subr.mxu0 0.0
      %3041 = vmatpush1.msra.mxu0 0.0
      %3042 = vmatprep.subr.mxu0 0.0
      %3043 = vmatpush1.msra.mxu0 0.0
      %3044 = vmatprep.subr.mxu0 0.0
      %3045 = vmatpush1.msra.mxu0 0.0
      %3046 = vmatprep.subr.mxu0 0.0
      %3047 = vmatpush1.msra.mxu0 0.0
      %3048 = vmatprep.subr.mxu0 0.0
      %3049 = vmatpush1.msra.mxu0 0.0
      %3050 = vmatprep.mubr.f32.mxu0 0.0
      %3051 = vmatmul.mubr.f32.gmra.mrb[0].mxu0 %v2981
      %v3052 = vpop.f32.mrb[0].mxu0
      %v3053 = vadd.f32 0.0, %v3052
      %v3054 = vpop.f32.mrb[0].mxu0
      %3055 = vmatprep.mubr.f32.mxu0 0.0
      %3056 = vmatmul.mubr.f32.gmra.mrb[0].mxu0 %v2984
      %v3057 = vpop.f32.mrb[0].mxu0
      %v3058 = vadd.f32 0.0, %v3057
      %v3059 = vpop.f32.mrb[0].mxu0
      %3060 = vdwg.mxu0
      %v3062 = vsel %vm823, %v3053, 0
      %v3065 = vsel %vm823, %v3058, 0
      %3067 = vmatprep.subr.mxu0 0.0
      %3068 = vmatpush1.msra.mxu0 %v2459
      %3069 = vmatprep.subr.mxu0 0.0
      %3070 = vmatpush1.msra.mxu0 0.0
      %3071 = vmatprep.subr.mxu0 0.0
      %3072 = vmatpush1.msra.mxu0 0.0
      %3073 = vmatprep.subr.mxu0 0.0
      %3074 = vmatpush1.msra.mxu0 0.0
      %3075 = vmatprep.subr.mxu0 0.0
      %3076 = vmatpush1.msra.mxu0 0.0
      %3077 = vmatprep.subr.mxu0 0.0
      %3078 = vmatpush1.msra.mxu0 0.0
      %3079 = vmatprep.subr.mxu0 0.0
      %3080 = vmatpush1.msra.mxu0 0.0
      %3081 = vmatprep.subr.mxu0 0.0
      %3082 = vmatpush1.msra.mxu0 0.0
      %3083 = vmatprep.subr.mxu0 0.0
      %3084 = vmatpush1.msra.mxu0 0.0
      %3085 = vmatprep.subr.mxu0 0.0
      %3086 = vmatpush1.msra.mxu0 0.0
      %3087 = vmatprep.subr.mxu0 0.0
      %3088 = vmatpush1.msra.mxu0 0.0
      %3089 = vmatprep.subr.mxu0 0.0
      %3090 = vmatpush1.msra.mxu0 0.0
      %3091 = vmatprep.subr.mxu0 0.0
      %3092 = vmatpush1.msra.mxu0 0.0
      %3093 = vmatprep.subr.mxu0 0.0
      %3094 = vmatpush1.msra.mxu0 0.0
      %3095 = vmatprep.subr.mxu0 0.0
      %3096 = vmatpush1.msra.mxu0 0.0
      %3097 = vmatprep.subr.mxu0 0.0
      %3098 = vmatpush1.msra.mxu0 0.0
      %3099 = vmatprep.subr.mxu0 0.0
      %3100 = vmatpush1.msra.mxu0 0.0
      %3101 = vmatprep.subr.mxu0 0.0
      %3102 = vmatpush1.msra.mxu0 0.0
      %3103 = vmatprep.subr.mxu0 0.0
      %3104 = vmatpush1.msra.mxu0 0.0
      %3105 = vmatprep.subr.mxu0 0.0
      %3106 = vmatpush1.msra.mxu0 0.0
      %3107 = vmatprep.subr.mxu0 0.0
      %3108 = vmatpush1.msra.mxu0 0.0
      %3109 = vmatprep.subr.mxu0 0.0
      %3110 = vmatpush1.msra.mxu0 0.0
      %3111 = vmatprep.subr.mxu0 0.0
      %3112 = vmatpush1.msra.mxu0 0.0
      %3113 = vmatprep.subr.mxu0 0.0
      %3114 = vmatpush1.msra.mxu0 0.0
      %3115 = vmatprep.subr.mxu0 0.0
      %3116 = vmatpush1.msra.mxu0 0.0
      %3117 = vmatprep.subr.mxu0 0.0
      %3118 = vmatpush1.msra.mxu0 0.0
      %3119 = vmatprep.subr.mxu0 0.0
      %3120 = vmatpush1.msra.mxu0 0.0
      %3121 = vmatprep.subr.mxu0 0.0
      %3122 = vmatpush1.msra.mxu0 0.0
      %3123 = vmatprep.subr.mxu0 0.0
      %3124 = vmatpush1.msra.mxu0 0.0
      %3125 = vmatprep.subr.mxu0 0.0
      %3126 = vmatpush1.msra.mxu0 0.0
      %3127 = vmatprep.subr.mxu0 0.0
      %3128 = vmatpush1.msra.mxu0 0.0
      %3129 = vmatprep.subr.mxu0 0.0
      %3130 = vmatpush1.msra.mxu0 0.0
      %3131 = vmatprep.mubr.f32.mxu0 0.0
      %3132 = vmatmul.mubr.f32.gmra.mrb[0].mxu0 %v3062
      %v3133 = vpop.f32.mrb[0].mxu0
      %v3134 = vadd.f32 0.0, %v3133
      %v3135 = vpop.f32.mrb[0].mxu0
      %3136 = vmatprep.mubr.f32.mxu0 0.0
      %3137 = vmatmul.mubr.f32.gmra.mrb[0].mxu0 %v3065
      %v3138 = vpop.f32.mrb[0].mxu0
      %v3139 = vadd.f32 0.0, %v3138
      %v3140 = vpop.f32.mrb[0].mxu0
      %3141 = vdwg.mxu0
      %v3142 = vadd.f32 %v2978, %v3134
      %v3143 = vadd.f32 %v2979, %v3139
      %3144 = vmatprep.subr.mxu0 0.0
      %3145 = vmatpush1.msra.mxu0 %v1598
      %3146 = vmatprep.subr.mxu0 0.0
      %3147 = vmatpush1.msra.mxu0 %v1603
      %3148 = vmatprep.subr.mxu0 0.0
      %3149 = vmatpush1.msra.mxu0 %v1608
      %3150 = vmatprep.subr.mxu0 0.0
      %3151 = vmatpush1.msra.mxu0 %v1613
      %3152 = vmatprep.subr.mxu0 0.0
      %3153 = vmatpush1.msra.mxu0 %v1618
      %3154 = vmatprep.subr.mxu0 0.0
      %3155 = vmatpush1.msra.mxu0 %v1623
      %3156 = vmatprep.subr.mxu0 0.0
      %3157 = vmatpush1.msra.mxu0 %v1628
      %3158 = vmatprep.subr.mxu0 0.0
      %3159 = vmatpush1.msra.mxu0 %v1633
      %3160 = vmatprep.subr.mxu0 0.0
      %3161 = vmatpush1.msra.mxu0 0.0
      %3162 = vmatprep.subr.mxu0 0.0
      %3163 = vmatpush1.msra.mxu0 0.0
      %3164 = vmatprep.subr.mxu0 0.0
      %3165 = vmatpush1.msra.mxu0 0.0
      %3166 = vmatprep.subr.mxu0 0.0
      %3167 = vmatpush1.msra.mxu0 0.0
      %3168 = vmatprep.subr.mxu0 0.0
      %3169 = vmatpush1.msra.mxu0 0.0
      %3170 = vmatprep.subr.mxu0 0.0
      %3171 = vmatpush1.msra.mxu0 0.0
      %3172 = vmatprep.subr.mxu0 0.0
      %3173 = vmatpush1.msra.mxu0 0.0
      %3174 = vmatprep.subr.mxu0 0.0
      %3175 = vmatpush1.msra.mxu0 0.0
      %3176 = vmatprep.subr.mxu0 0.0
      %3177 = vmatpush1.msra.mxu0 0.0
      %3178 = vmatprep.subr.mxu0 0.0
      %3179 = vmatpush1.msra.mxu0 0.0
      %3180 = vmatprep.subr.mxu0 0.0
      %3181 = vmatpush1.msra.mxu0 0.0
      %3182 = vmatprep.subr.mxu0 0.0
      %3183 = vmatpush1.msra.mxu0 0.0
      %3184 = vmatprep.subr.mxu0 0.0
      %3185 = vmatpush1.msra.mxu0 0.0
      %3186 = vmatprep.subr.mxu0 0.0
      %3187 = vmatpush1.msra.mxu0 0.0
      %3188 = vmatprep.subr.mxu0 0.0
      %3189 = vmatpush1.msra.mxu0 0.0
      %3190 = vmatprep.subr.mxu0 0.0
      %3191 = vmatpush1.msra.mxu0 0.0
      %3192 = vmatprep.subr.mxu0 0.0
      %3193 = vmatpush1.msra.mxu0 0.0
      %3194 = vmatprep.subr.mxu0 0.0
      %3195 = vmatpush1.msra.mxu0 0.0
      %3196 = vmatprep.subr.mxu0 0.0
      %3197 = vmatpush1.msra.mxu0 0.0
      %3198 = vmatprep.subr.mxu0 0.0
      %3199 = vmatpush1.msra.mxu0 0.0
      %3200 = vmatprep.subr.mxu0 0.0
      %3201 = vmatpush1.msra.mxu0 0.0
      %3202 = vmatprep.subr.mxu0 0.0
      %3203 = vmatpush1.msra.mxu0 0.0
      %3204 = vmatprep.subr.mxu0 0.0
      %3205 = vmatpush1.msra.mxu0 0.0
      %3206 = vmatprep.subr.mxu0 0.0
      %3207 = vmatpush1.msra.mxu0 0.0
      %3208 = vmatprep.mubr.f32.mxu0 0.0
      %3209 = vmatmul.mubr.f32.gmra.mrb[0].mxu0 %v2493
      %v3210 = vpop.f32.mrb[0].mxu0
      %v3211 = vadd.f32 0.0, %v3210
      %v3212 = vpop.f32.mrb[0].mxu0
      %3213 = vmatprep.mubr.f32.mxu0 0.0
      %3214 = vmatmul.mubr.f32.gmra.mrb[0].mxu0 %v2496
      %v3215 = vpop.f32.mrb[0].mxu0
      %v3216 = vadd.f32 0.0, %v3215
      %v3217 = vpop.f32.mrb[0].mxu0
      %3218 = vdwg.mxu0
      %3219 = vmatprep.subr.mxu0 0.0
      %3220 = vmatpush1.msra.mxu0 %v1598
      %3221 = vmatprep.subr.mxu0 0.0
      %3222 = vmatpush1.msra.mxu0 %v1603
      %3223 = vmatprep.subr.mxu0 0.0
      %3224 = vmatpush1.msra.mxu0 %v1608
      %3225 = vmatprep.subr.mxu0 0.0
      %3226 = vmatpush1.msra.mxu0 %v1613
      %3227 = vmatprep.subr.mxu0 0.0
      %3228 = vmatpush1.msra.mxu0 %v1618
      %3229 = vmatprep.subr.mxu0 0.0
      %3230 = vmatpush1.msra.mxu0 %v1623
      %3231 = vmatprep.subr.mxu0 0.0
      %3232 = vmatpush1.msra.mxu0 %v1628
      %3233 = vmatprep.subr.mxu0 0.0
      %3234 = vmatpush1.msra.mxu0 %v1633
      %3235 = vmatprep.subr.mxu0 0.0
      %3236 = vmatpush1.msra.mxu0 0.0
      %3237 = vmatprep.subr.mxu0 0.0
      %3238 = vmatpush1.msra.mxu0 0.0
      %3239 = vmatprep.subr.mxu0 0.0
      %3240 = vmatpush1.msra.mxu0 0.0
      %3241 = vmatprep.subr.mxu0 0.0
      %3242 = vmatpush1.msra.mxu0 0.0
      %3243 = vmatprep.subr.mxu0 0.0
      %3244 = vmatpush1.msra.mxu0 0.0
      %3245 = vmatprep.subr.mxu0 0.0
      %3246 = vmatpush1.msra.mxu0 0.0
      %3247 = vmatprep.subr.mxu0 0.0
      %3248 = vmatpush1.msra.mxu0 0.0
      %3249 = vmatprep.subr.mxu0 0.0
      %3250 = vmatpush1.msra.mxu0 0.0
      %3251 = vmatprep.subr.mxu0 0.0
      %3252 = vmatpush1.msra.mxu0 0.0
      %3253 = vmatprep.subr.mxu0 0.0
      %3254 = vmatpush1.msra.mxu0 0.0
      %3255 = vmatprep.subr.mxu0 0.0
      %3256 = vmatpush1.msra.mxu0 0.0
      %3257 = vmatprep.subr.mxu0 0.0
      %3258 = vmatpush1.msra.mxu0 0.0
      %3259 = vmatprep.subr.mxu0 0.0
      %3260 = vmatpush1.msra.mxu0 0.0
      %3261 = vmatprep.subr.mxu0 0.0
      %3262 = vmatpush1.msra.mxu0 0.0
      %3263 = vmatprep.subr.mxu0 0.0
      %3264 = vmatpush1.msra.mxu0 0.0
      %3265 = vmatprep.subr.mxu0 0.0
      %3266 = vmatpush1.msra.mxu0 0.0
      %3267 = vmatprep.subr.mxu0 0.0
      %3268 = vmatpush1.msra.mxu0 0.0
      %3269 = vmatprep.subr.mxu0 0.0
      %3270 = vmatpush1.msra.mxu0 0.0
      %3271 = vmatprep.subr.mxu0 0.0
      %3272 = vmatpush1.msra.mxu0 0.0
      %3273 = vmatprep.subr.mxu0 0.0
      %3274 = vmatpush1.msra.mxu0 0.0
      %3275 = vmatprep.subr.mxu0 0.0
      %3276 = vmatpush1.msra.mxu0 0.0
      %3277 = vmatprep.subr.mxu0 0.0
      %3278 = vmatpush1.msra.mxu0 0.0
      %3279 = vmatprep.subr.mxu0 0.0
      %3280 = vmatpush1.msra.mxu0 0.0
      %3281 = vmatprep.subr.mxu0 0.0
      %3282 = vmatpush1.msra.mxu0 0.0
      %3283 = vmatprep.mubr.f32.mxu0 0.0
      %3284 = vmatmul.mubr.f32.gmra.mrb[0].mxu0 %v2574
      %v3285 = vpop.f32.mrb[0].mxu0
      %v3286 = vadd.f32 0.0, %v3285
      %v3287 = vpop.f32.mrb[0].mxu0
      %3288 = vmatprep.mubr.f32.mxu0 0.0
      %3289 = vmatmul.mubr.f32.gmra.mrb[0].mxu0 %v2577
      %v3290 = vpop.f32.mrb[0].mxu0
      %v3291 = vadd.f32 0.0, %v3290
      %v3292 = vpop.f32.mrb[0].mxu0
      %3293 = vdwg.mxu0
      %v3295 = vsel %vm823, %v3286, 0
      %v3298 = vsel %vm823, %v3291, 0
      %3300 = vmatprep.subr.mxu0 0.0
      %3301 = vmatpush1.msra.mxu0 %v2457
      %3302 = vmatprep.subr.mxu0 0.0
      %3303 = vmatpush1.msra.mxu0 0.0
      %3304 = vmatprep.subr.mxu0 0.0
      %3305 = vmatpush1.msra.mxu0 0.0
      %3306 = vmatprep.subr.mxu0 0.0
      %3307 = vmatpush1.msra.mxu0 0.0
      %3308 = vmatprep.subr.mxu0 0.0
      %3309 = vmatpush1.msra.mxu0 0.0
      %3310 = vmatprep.subr.mxu0 0.0
      %3311 = vmatpush1.msra.mxu0 0.0
      %3312 = vmatprep.subr.mxu0 0.0
      %3313 = vmatpush1.msra.mxu0 0.0
      %3314 = vmatprep.subr.mxu0 0.0
      %3315 = vmatpush1.msra.mxu0 0.0
      %3316 = vmatprep.subr.mxu0 0.0
      %3317 = vmatpush1.msra.mxu0 0.0
      %3318 = vmatprep.subr.mxu0 0.0
      %3319 = vmatpush1.msra.mxu0 0.0
      %3320 = vmatprep.subr.mxu0 0.0
      %3321 = vmatpush1.msra.mxu0 0.0
      %3322 = vmatprep.subr.mxu0 0.0
      %3323 = vmatpush1.msra.mxu0 0.0
      %3324 = vmatprep.subr.mxu0 0.0
      %3325 = vmatpush1.msra.mxu0 0.0
      %3326 = vmatprep.subr.mxu0 0.0
      %3327 = vmatpush1.msra.mxu0 0.0
      %3328 = vmatprep.subr.mxu0 0.0
      %3329 = vmatpush1.msra.mxu0 0.0
      %3330 = vmatprep.subr.mxu0 0.0
      %3331 = vmatpush1.msra.mxu0 0.0
      %3332 = vmatprep.subr.mxu0 0.0
      %3333 = vmatpush1.msra.mxu0 0.0
      %3334 = vmatprep.subr.mxu0 0.0
      %3335 = vmatpush1.msra.mxu0 0.0
      %3336 = vmatprep.subr.mxu0 0.0
      %3337 = vmatpush1.msra.mxu0 0.0
      %3338 = vmatprep.subr.mxu0 0.0
      %3339 = vmatpush1.msra.mxu0 0.0
      %3340 = vmatprep.subr.mxu0 0.0
      %3341 = vmatpush1.msra.mxu0 0.0
      %3342 = vmatprep.subr.mxu0 0.0
      %3343 = vmatpush1.msra.mxu0 0.0
      %3344 = vmatprep.subr.mxu0 0.0
      %3345 = vmatpush1.msra.mxu0 0.0
      %3346 = vmatprep.subr.mxu0 0.0
      %3347 = vmatpush1.msra.mxu0 0.0
      %3348 = vmatprep.subr.mxu0 0.0
      %3349 = vmatpush1.msra.mxu0 0.0
      %3350 = vmatprep.subr.mxu0 0.0
      %3351 = vmatpush1.msra.mxu0 0.0
      %3352 = vmatprep.subr.mxu0 0.0
      %3353 = vmatpush1.msra.mxu0 0.0
      %3354 = vmatprep.subr.mxu0 0.0
      %3355 = vmatpush1.msra.mxu0 0.0
      %3356 = vmatprep.subr.mxu0 0.0
      %3357 = vmatpush1.msra.mxu0 0.0
      %3358 = vmatprep.subr.mxu0 0.0
      %3359 = vmatpush1.msra.mxu0 0.0
      %3360 = vmatprep.subr.mxu0 0.0
      %3361 = vmatpush1.msra.mxu0 0.0
      %3362 = vmatprep.subr.mxu0 0.0
      %3363 = vmatpush1.msra.mxu0 0.0
      %3364 = vmatprep.mubr.f32.mxu0 0.0
      %3365 = vmatmul.mubr.f32.gmra.mrb[0].mxu0 %v3295
      %v3366 = vpop.f32.mrb[0].mxu0
      %v3367 = vadd.f32 0.0, %v3366
      %v3368 = vpop.f32.mrb[0].mxu0
      %3369 = vmatprep.mubr.f32.mxu0 0.0
      %3370 = vmatmul.mubr.f32.gmra.mrb[0].mxu0 %v3298
      %v3371 = vpop.f32.mrb[0].mxu0
      %v3372 = vadd.f32 0.0, %v3371
      %v3373 = vpop.f32.mrb[0].mxu0
      %3374 = vdwg.mxu0
      %v3376 = vsel %vm823, %v3211, 0
      %v3379 = vsel %vm823, %v3216, 0
      %3381 = vmatprep.subr.mxu0 0.0
      %3382 = vmatpush1.msra.mxu0 %v2456
      %3383 = vmatprep.subr.mxu0 0.0
      %3384 = vmatpush1.msra.mxu0 0.0
      %3385 = vmatprep.subr.mxu0 0.0
      %3386 = vmatpush1.msra.mxu0 0.0
      %3387 = vmatprep.subr.mxu0 0.0
      %3388 = vmatpush1.msra.mxu0 0.0
      %3389 = vmatprep.subr.mxu0 0.0
      %3390 = vmatpush1.msra.mxu0 0.0
      %3391 = vmatprep.subr.mxu0 0.0
      %3392 = vmatpush1.msra.mxu0 0.0
      %3393 = vmatprep.subr.mxu0 0.0
      %3394 = vmatpush1.msra.mxu0 0.0
      %3395 = vmatprep.subr.mxu0 0.0
      %3396 = vmatpush1.msra.mxu0 0.0
      %3397 = vmatprep.subr.mxu0 0.0
      %3398 = vmatpush1.msra.mxu0 0.0
      %3399 = vmatprep.subr.mxu0 0.0
      %3400 = vmatpush1.msra.mxu0 0.0
      %3401 = vmatprep.subr.mxu0 0.0
      %3402 = vmatpush1.msra.mxu0 0.0
      %3403 = vmatprep.subr.mxu0 0.0
      %3404 = vmatpush1.msra.mxu0 0.0
      %3405 = vmatprep.subr.mxu0 0.0
      %3406 = vmatpush1.msra.mxu0 0.0
      %3407 = vmatprep.subr.mxu0 0.0
      %3408 = vmatpush1.msra.mxu0 0.0
      %3409 = vmatprep.subr.mxu0 0.0
      %3410 = vmatpush1.msra.mxu0 0.0
      %3411 = vmatprep.subr.mxu0 0.0
      %3412 = vmatpush1.msra.mxu0 0.0
      %3413 = vmatprep.subr.mxu0 0.0
      %3414 = vmatpush1.msra.mxu0 0.0
      %3415 = vmatprep.subr.mxu0 0.0
      %3416 = vmatpush1.msra.mxu0 0.0
      %3417 = vmatprep.subr.mxu0 0.0
      %3418 = vmatpush1.msra.mxu0 0.0
      %3419 = vmatprep.subr.mxu0 0.0
      %3420 = vmatpush1.msra.mxu0 0.0
      %3421 = vmatprep.subr.mxu0 0.0
      %3422 = vmatpush1.msra.mxu0 0.0
      %3423 = vmatprep.subr.mxu0 0.0
      %3424 = vmatpush1.msra.mxu0 0.0
      %3425 = vmatprep.subr.mxu0 0.0
      %3426 = vmatpush1.msra.mxu0 0.0
      %3427 = vmatprep.subr.mxu0 0.0
      %3428 = vmatpush1.msra.mxu0 0.0
      %3429 = vmatprep.subr.mxu0 0.0
      %3430 = vmatpush1.msra.mxu0 0.0
      %3431 = vmatprep.subr.mxu0 0.0
      %3432 = vmatpush1.msra.mxu0 0.0
      %3433 = vmatprep.subr.mxu0 0.0
      %3434 = vmatpush1.msra.mxu0 0.0
      %3435 = vmatprep.subr.mxu0 0.0
      %3436 = vmatpush1.msra.mxu0 0.0
      %3437 = vmatprep.subr.mxu0 0.0
      %3438 = vmatpush1.msra.mxu0 0.0
      %3439 = vmatprep.subr.mxu0 0.0
      %3440 = vmatpush1.msra.mxu0 0.0
      %3441 = vmatprep.subr.mxu0 0.0
      %3442 = vmatpush1.msra.mxu0 0.0
      %3443 = vmatprep.subr.mxu0 0.0
      %3444 = vmatpush1.msra.mxu0 0.0
      %3445 = vmatprep.mubr.f32.mxu0 0.0
      %3446 = vmatmul.mubr.f32.gmra.mrb[0].mxu0 %v3376
      %v3447 = vpop.f32.mrb[0].mxu0
      %v3448 = vadd.f32 %v3367, %v3447
      %v3449 = vpop.f32.mrb[0].mxu0
      %3450 = vmatprep.mubr.f32.mxu0 0.0
      %3451 = vmatmul.mubr.f32.gmra.mrb[0].mxu0 %v3379
      %v3452 = vpop.f32.mrb[0].mxu0
      %v3453 = vadd.f32 %v3372, %v3452
      %v3454 = vpop.f32.mrb[0].mxu0
      %3455 = vdwg.mxu0
      %3456 = vmatprep.subr.mxu0 0.0
      %3457 = vmatpush1.msra.mxu0 %v1598
      %3458 = vmatprep.subr.mxu0 0.0
      %3459 = vmatpush1.msra.mxu0 %v1603
      %3460 = vmatprep.subr.mxu0 0.0
      %3461 = vmatpush1.msra.mxu0 %v1608
      %3462 = vmatprep.subr.mxu0 0.0
      %3463 = vmatpush1.msra.mxu0 %v1613
      %3464 = vmatprep.subr.mxu0 0.0
      %3465 = vmatpush1.msra.mxu0 %v1618
      %3466 = vmatprep.subr.mxu0 0.0
      %3467 = vmatpush1.msra.mxu0 %v1623
      %3468 = vmatprep.subr.mxu0 0.0
      %3469 = vmatpush1.msra.mxu0 %v1628
      %3470 = vmatprep.subr.mxu0 0.0
      %3471 = vmatpush1.msra.mxu0 %v1633
      %3472 = vmatprep.subr.mxu0 0.0
      %3473 = vmatpush1.msra.mxu0 0.0
      %3474 = vmatprep.subr.mxu0 0.0
      %3475 = vmatpush1.msra.mxu0 0.0
      %3476 = vmatprep.subr.mxu0 0.0
      %3477 = vmatpush1.msra.mxu0 0.0
      %3478 = vmatprep.subr.mxu0 0.0
      %3479 = vmatpush1.msra.mxu0 0.0
      %3480 = vmatprep.subr.mxu0 0.0
      %3481 = vmatpush1.msra.mxu0 0.0
      %3482 = vmatprep.subr.mxu0 0.0
      %3483 = vmatpush1.msra.mxu0 0.0
      %3484 = vmatprep.subr.mxu0 0.0
      %3485 = vmatpush1.msra.mxu0 0.0
      %3486 = vmatprep.subr.mxu0 0.0
      %3487 = vmatpush1.msra.mxu0 0.0
      %3488 = vmatprep.subr.mxu0 0.0
      %3489 = vmatpush1.msra.mxu0 0.0
      %3490 = vmatprep.subr.mxu0 0.0
      %3491 = vmatpush1.msra.mxu0 0.0
      %3492 = vmatprep.subr.mxu0 0.0
      %3493 = vmatpush1.msra.mxu0 0.0
      %3494 = vmatprep.subr.mxu0 0.0
      %3495 = vmatpush1.msra.mxu0 0.0
      %3496 = vmatprep.subr.mxu0 0.0
      %3497 = vmatpush1.msra.mxu0 0.0
      %3498 = vmatprep.subr.mxu0 0.0
      %3499 = vmatpush1.msra.mxu0 0.0
      %3500 = vmatprep.subr.mxu0 0.0
      %3501 = vmatpush1.msra.mxu0 0.0
      %3502 = vmatprep.subr.mxu0 0.0
      %3503 = vmatpush1.msra.mxu0 0.0
      %3504 = vmatprep.subr.mxu0 0.0
      %3505 = vmatpush1.msra.mxu0 0.0
      %3506 = vmatprep.subr.mxu0 0.0
      %3507 = vmatpush1.msra.mxu0 0.0
      %3508 = vmatprep.subr.mxu0 0.0
      %3509 = vmatpush1.msra.mxu0 0.0
      %3510 = vmatprep.subr.mxu0 0.0
      %3511 = vmatpush1.msra.mxu0 0.0
      %3512 = vmatprep.subr.mxu0 0.0
      %3513 = vmatpush1.msra.mxu0 0.0
      %3514 = vmatprep.subr.mxu0 0.0
      %3515 = vmatpush1.msra.mxu0 0.0
      %3516 = vmatprep.subr.mxu0 0.0
      %3517 = vmatpush1.msra.mxu0 0.0
      %3518 = vmatprep.subr.mxu0 0.0
      %3519 = vmatpush1.msra.mxu0 0.0
      %3520 = vmatprep.mubr.f32.mxu0 0.0
      %3521 = vmatmul.mubr.f32.gmra.mrb[0].mxu0 %v2817
      %v3522 = vpop.f32.mrb[0].mxu0
      %v3523 = vadd.f32 0.0, %v3522
      %v3524 = vpop.f32.mrb[0].mxu0
      %3525 = vmatprep.mubr.f32.mxu0 0.0
      %3526 = vmatmul.mubr.f32.gmra.mrb[0].mxu0 %v2820
      %v3527 = vpop.f32.mrb[0].mxu0
      %v3528 = vadd.f32 0.0, %v3527
      %v3529 = vpop.f32.mrb[0].mxu0
      %3530 = vdwg.mxu0
      %v3532 = vsel %vm823, %v3523, 0
      %v3535 = vsel %vm823, %v3528, 0
      %3537 = vmatprep.subr.mxu0 0.0
      %3538 = vmatpush1.msra.mxu0 %v2458
      %3539 = vmatprep.subr.mxu0 0.0
      %3540 = vmatpush1.msra.mxu0 0.0
      %3541 = vmatprep.subr.mxu0 0.0
      %3542 = vmatpush1.msra.mxu0 0.0
      %3543 = vmatprep.subr.mxu0 0.0
      %3544 = vmatpush1.msra.mxu0 0.0
      %3545 = vmatprep.subr.mxu0 0.0
      %3546 = vmatpush1.msra.mxu0 0.0
      %3547 = vmatprep.subr.mxu0 0.0
      %3548 = vmatpush1.msra.mxu0 0.0
      %3549 = vmatprep.subr.mxu0 0.0
      %3550 = vmatpush1.msra.mxu0 0.0
      %3551 = vmatprep.subr.mxu0 0.0
      %3552 = vmatpush1.msra.mxu0 0.0
      %3553 = vmatprep.subr.mxu0 0.0
      %3554 = vmatpush1.msra.mxu0 0.0
      %3555 = vmatprep.subr.mxu0 0.0
      %3556 = vmatpush1.msra.mxu0 0.0
      %3557 = vmatprep.subr.mxu0 0.0
      %3558 = vmatpush1.msra.mxu0 0.0
      %3559 = vmatprep.subr.mxu0 0.0
      %3560 = vmatpush1.msra.mxu0 0.0
      %3561 = vmatprep.subr.mxu0 0.0
      %3562 = vmatpush1.msra.mxu0 0.0
      %3563 = vmatprep.subr.mxu0 0.0
      %3564 = vmatpush1.msra.mxu0 0.0
      %3565 = vmatprep.subr.mxu0 0.0
      %3566 = vmatpush1.msra.mxu0 0.0
      %3567 = vmatprep.subr.mxu0 0.0
      %3568 = vmatpush1.msra.mxu0 0.0
      %3569 = vmatprep.subr.mxu0 0.0
      %3570 = vmatpush1.msra.mxu0 0.0
      %3571 = vmatprep.subr.mxu0 0.0
      %3572 = vmatpush1.msra.mxu0 0.0
      %3573 = vmatprep.subr.mxu0 0.0
      %3574 = vmatpush1.msra.mxu0 0.0
      %3575 = vmatprep.subr.mxu0 0.0
      %3576 = vmatpush1.msra.mxu0 0.0
      %3577 = vmatprep.subr.mxu0 0.0
      %3578 = vmatpush1.msra.mxu0 0.0
      %3579 = vmatprep.subr.mxu0 0.0
      %3580 = vmatpush1.msra.mxu0 0.0
      %3581 = vmatprep.subr.mxu0 0.0
      %3582 = vmatpush1.msra.mxu0 0.0
      %3583 = vmatprep.subr.mxu0 0.0
      %3584 = vmatpush1.msra.mxu0 0.0
      %3585 = vmatprep.subr.mxu0 0.0
      %3586 = vmatpush1.msra.mxu0 0.0
      %3587 = vmatprep.subr.mxu0 0.0
      %3588 = vmatpush1.msra.mxu0 0.0
      %3589 = vmatprep.subr.mxu0 0.0
      %3590 = vmatpush1.msra.mxu0 0.0
      %3591 = vmatprep.subr.mxu0 0.0
      %3592 = vmatpush1.msra.mxu0 0.0
      %3593 = vmatprep.subr.mxu0 0.0
      %3594 = vmatpush1.msra.mxu0 0.0
      %3595 = vmatprep.subr.mxu0 0.0
      %3596 = vmatpush1.msra.mxu0 0.0
      %3597 = vmatprep.subr.mxu0 0.0
      %3598 = vmatpush1.msra.mxu0 0.0
      %3599 = vmatprep.subr.mxu0 0.0
      %3600 = vmatpush1.msra.mxu0 0.0
      %3601 = vmatprep.mubr.f32.mxu0 0.0
      %3602 = vmatmul.mubr.f32.gmra.mrb[0].mxu0 %v3532
      %v3603 = vpop.f32.mrb[0].mxu0
      %v3604 = vadd.f32 0.0, %v3603
      %v3605 = vpop.f32.mrb[0].mxu0
      %3606 = vmatprep.mubr.f32.mxu0 0.0
      %3607 = vmatmul.mubr.f32.gmra.mrb[0].mxu0 %v3535
      %v3608 = vpop.f32.mrb[0].mxu0
      %v3609 = vadd.f32 0.0, %v3608
      %v3610 = vpop.f32.mrb[0].mxu0
      %3611 = vdwg.mxu0
      %v3612 = vadd.f32 %v3448, %v3604
      %v3613 = vadd.f32 %v3453, %v3609
      %3614 = vmatprep.subr.mxu0 0.0
      %3615 = vmatpush1.msra.mxu0 %v1598
      %3616 = vmatprep.subr.mxu0 0.0
      %3617 = vmatpush1.msra.mxu0 %v1603
      %3618 = vmatprep.subr.mxu0 0.0
      %3619 = vmatpush1.msra.mxu0 %v1608
      %3620 = vmatprep.subr.mxu0 0.0
      %3621 = vmatpush1.msra.mxu0 %v1613
      %3622 = vmatprep.subr.mxu0 0.0
      %3623 = vmatpush1.msra.mxu0 %v1618
      %3624 = vmatprep.subr.mxu0 0.0
      %3625 = vmatpush1.msra.mxu0 %v1623
      %3626 = vmatprep.subr.mxu0 0.0
      %3627 = vmatpush1.msra.mxu0 %v1628
      %3628 = vmatprep.subr.mxu0 0.0
      %3629 = vmatpush1.msra.mxu0 %v1633
      %3630 = vmatprep.subr.mxu0 0.0
      %3631 = vmatpush1.msra.mxu0 0.0
      %3632 = vmatprep.subr.mxu0 0.0
      %3633 = vmatpush1.msra.mxu0 0.0
      %3634 = vmatprep.subr.mxu0 0.0
      %3635 = vmatpush1.msra.mxu0 0.0
      %3636 = vmatprep.subr.mxu0 0.0
      %3637 = vmatpush1.msra.mxu0 0.0
      %3638 = vmatprep.subr.mxu0 0.0
      %3639 = vmatpush1.msra.mxu0 0.0
      %3640 = vmatprep.subr.mxu0 0.0
      %3641 = vmatpush1.msra.mxu0 0.0
      %3642 = vmatprep.subr.mxu0 0.0
      %3643 = vmatpush1.msra.mxu0 0.0
      %3644 = vmatprep.subr.mxu0 0.0
      %3645 = vmatpush1.msra.mxu0 0.0
      %3646 = vmatprep.subr.mxu0 0.0
      %3647 = vmatpush1.msra.mxu0 0.0
      %3648 = vmatprep.subr.mxu0 0.0
      %3649 = vmatpush1.msra.mxu0 0.0
      %3650 = vmatprep.subr.mxu0 0.0
      %3651 = vmatpush1.msra.mxu0 0.0
      %3652 = vmatprep.subr.mxu0 0.0
      %3653 = vmatpush1.msra.mxu0 0.0
      %3654 = vmatprep.subr.mxu0 0.0
      %3655 = vmatpush1.msra.mxu0 0.0
      %3656 = vmatprep.subr.mxu0 0.0
      %3657 = vmatpush1.msra.mxu0 0.0
      %3658 = vmatprep.subr.mxu0 0.0
      %3659 = vmatpush1.msra.mxu0 0.0
      %3660 = vmatprep.subr.mxu0 0.0
      %3661 = vmatpush1.msra.mxu0 0.0
      %3662 = vmatprep.subr.mxu0 0.0
      %3663 = vmatpush1.msra.mxu0 0.0
      %3664 = vmatprep.subr.mxu0 0.0
      %3665 = vmatpush1.msra.mxu0 0.0
      %3666 = vmatprep.subr.mxu0 0.0
      %3667 = vmatpush1.msra.mxu0 0.0
      %3668 = vmatprep.subr.mxu0 0.0
      %3669 = vmatpush1.msra.mxu0 0.0
      %3670 = vmatprep.subr.mxu0 0.0
      %3671 = vmatpush1.msra.mxu0 0.0
      %3672 = vmatprep.subr.mxu0 0.0
      %3673 = vmatpush1.msra.mxu0 0.0
      %3674 = vmatprep.subr.mxu0 0.0
      %3675 = vmatpush1.msra.mxu0 0.0
      %3676 = vmatprep.subr.mxu0 0.0
      %3677 = vmatpush1.msra.mxu0 0.0
      %3678 = vmatprep.mubr.f32.mxu0 0.0
      %3679 = vmatmul.mubr.f32.gmra.mrb[0].mxu0 %v2981
      %v3680 = vpop.f32.mrb[0].mxu0
      %v3681 = vadd.f32 0.0, %v3680
      %v3682 = vpop.f32.mrb[0].mxu0
      %3683 = vmatprep.mubr.f32.mxu0 0.0
      %3684 = vmatmul.mubr.f32.gmra.mrb[0].mxu0 %v2984
      %v3685 = vpop.f32.mrb[0].mxu0
      %v3686 = vadd.f32 0.0, %v3685
      %v3687 = vpop.f32.mrb[0].mxu0
      %3688 = vdwg.mxu0
      %v3690 = vsel %vm823, %v3681, 0
      %v3693 = vsel %vm823, %v3686, 0
      %3695 = vmatprep.subr.mxu0 0.0
      %3696 = vmatpush1.msra.mxu0 %v2459
      %3697 = vmatprep.subr.mxu0 0.0
      %3698 = vmatpush1.msra.mxu0 0.0
      %3699 = vmatprep.subr.mxu0 0.0
      %3700 = vmatpush1.msra.mxu0 0.0
      %3701 = vmatprep.subr.mxu0 0.0
      %3702 = vmatpush1.msra.mxu0 0.0
      %3703 = vmatprep.subr.mxu0 0.0
      %3704 = vmatpush1.msra.mxu0 0.0
      %3705 = vmatprep.subr.mxu0 0.0
      %3706 = vmatpush1.msra.mxu0 0.0
      %3707 = vmatprep.subr.mxu0 0.0
      %3708 = vmatpush1.msra.mxu0 0.0
      %3709 = vmatprep.subr.mxu0 0.0
      %3710 = vmatpush1.msra.mxu0 0.0
      %3711 = vmatprep.subr.mxu0 0.0
      %3712 = vmatpush1.msra.mxu0 0.0
      %3713 = vmatprep.subr.mxu0 0.0
      %3714 = vmatpush1.msra.mxu0 0.0
      %3715 = vmatprep.subr.mxu0 0.0
      %3716 = vmatpush1.msra.mxu0 0.0
      %3717 = vmatprep.subr.mxu0 0.0
      %3718 = vmatpush1.msra.mxu0 0.0
      %3719 = vmatprep.subr.mxu0 0.0
      %3720 = vmatpush1.msra.mxu0 0.0
      %3721 = vmatprep.subr.mxu0 0.0
      %3722 = vmatpush1.msra.mxu0 0.0
      %3723 = vmatprep.subr.mxu0 0.0
      %3724 = vmatpush1.msra.mxu0 0.0
      %3725 = vmatprep.subr.mxu0 0.0
      %3726 = vmatpush1.msra.mxu0 0.0
      %3727 = vmatprep.subr.mxu0 0.0
      %3728 = vmatpush1.msra.mxu0 0.0
      %3729 = vmatprep.subr.mxu0 0.0
      %3730 = vmatpush1.msra.mxu0 0.0
      %3731 = vmatprep.subr.mxu0 0.0
      %3732 = vmatpush1.msra.mxu0 0.0
      %3733 = vmatprep.subr.mxu0 0.0
      %3734 = vmatpush1.msra.mxu0 0.0
      %3735 = vmatprep.subr.mxu0 0.0
      %3736 = vmatpush1.msra.mxu0 0.0
      %3737 = vmatprep.subr.mxu0 0.0
      %3738 = vmatpush1.msra.mxu0 0.0
      %3739 = vmatprep.subr.mxu0 0.0
      %3740 = vmatpush1.msra.mxu0 0.0
      %3741 = vmatprep.subr.mxu0 0.0
      %3742 = vmatpush1.msra.mxu0 0.0
      %3743 = vmatprep.subr.mxu0 0.0
      %3744 = vmatpush1.msra.mxu0 0.0
      %3745 = vmatprep.subr.mxu0 0.0
      %3746 = vmatpush1.msra.mxu0 0.0
      %3747 = vmatprep.subr.mxu0 0.0
      %3748 = vmatpush1.msra.mxu0 0.0
      %3749 = vmatprep.subr.mxu0 0.0
      %3750 = vmatpush1.msra.mxu0 0.0
      %3751 = vmatprep.subr.mxu0 0.0
      %3752 = vmatpush1.msra.mxu0 0.0
      %3753 = vmatprep.subr.mxu0 0.0
      %3754 = vmatpush1.msra.mxu0 0.0
      %3755 = vmatprep.subr.mxu0 0.0
      %3756 = vmatpush1.msra.mxu0 0.0
      %3757 = vmatprep.subr.mxu0 0.0
      %3758 = vmatpush1.msra.mxu0 0.0
      %3759 = vmatprep.mubr.f32.mxu0 0.0
      %3760 = vmatmul.mubr.f32.gmra.mrb[0].mxu0 %v3690
      %v3761 = vpop.f32.mrb[0].mxu0
      %v3762 = vadd.f32 0.0, %v3761
      %v3763 = vpop.f32.mrb[0].mxu0
      %3764 = vmatprep.mubr.f32.mxu0 0.0
      %3765 = vmatmul.mubr.f32.gmra.mrb[0].mxu0 %v3693
      %v3766 = vpop.f32.mrb[0].mxu0
      %v3767 = vadd.f32 0.0, %v3766
      %v3768 = vpop.f32.mrb[0].mxu0
      %3769 = vdwg.mxu0
      %v3770 = vadd.f32 %v3612, %v3762
      %v3771 = vadd.f32 %v3613, %v3767
      %3772 = vmatprep.subr.mxu0 0.0
      %3773 = vmatpush1.msra.mxu0 %v2008
      %3774 = vmatprep.subr.mxu0 0.0
      %3775 = vmatpush1.msra.mxu0 %v2013
      %3776 = vmatprep.subr.mxu0 0.0
      %3777 = vmatpush1.msra.mxu0 %v2018
      %3778 = vmatprep.subr.mxu0 0.0
      %3779 = vmatpush1.msra.mxu0 %v2023
      %3780 = vmatprep.subr.mxu0 0.0
      %3781 = vmatpush1.msra.mxu0 %v2028
      %3782 = vmatprep.subr.mxu0 0.0
      %3783 = vmatpush1.msra.mxu0 %v2033
      %3784 = vmatprep.subr.mxu0 0.0
      %3785 = vmatpush1.msra.mxu0 %v2038
      %3786 = vmatprep.subr.mxu0 0.0
      %3787 = vmatpush1.msra.mxu0 %v2043
      %3788 = vmatprep.subr.mxu0 0.0
      %3789 = vmatpush1.msra.mxu0 0.0
      %3790 = vmatprep.subr.mxu0 0.0
      %3791 = vmatpush1.msra.mxu0 0.0
      %3792 = vmatprep.subr.mxu0 0.0
      %3793 = vmatpush1.msra.mxu0 0.0
      %3794 = vmatprep.subr.mxu0 0.0
      %3795 = vmatpush1.msra.mxu0 0.0
      %3796 = vmatprep.subr.mxu0 0.0
      %3797 = vmatpush1.msra.mxu0 0.0
      %3798 = vmatprep.subr.mxu0 0.0
      %3799 = vmatpush1.msra.mxu0 0.0
      %3800 = vmatprep.subr.mxu0 0.0
      %3801 = vmatpush1.msra.mxu0 0.0
      %3802 = vmatprep.subr.mxu0 0.0
      %3803 = vmatpush1.msra.mxu0 0.0
      %3804 = vmatprep.subr.mxu0 0.0
      %3805 = vmatpush1.msra.mxu0 0.0
      %3806 = vmatprep.subr.mxu0 0.0
      %3807 = vmatpush1.msra.mxu0 0.0
      %3808 = vmatprep.subr.mxu0 0.0
      %3809 = vmatpush1.msra.mxu0 0.0
      %3810 = vmatprep.subr.mxu0 0.0
      %3811 = vmatpush1.msra.mxu0 0.0
      %3812 = vmatprep.subr.mxu0 0.0
      %3813 = vmatpush1.msra.mxu0 0.0
      %3814 = vmatprep.subr.mxu0 0.0
      %3815 = vmatpush1.msra.mxu0 0.0
      %3816 = vmatprep.subr.mxu0 0.0
      %3817 = vmatpush1.msra.mxu0 0.0
      %3818 = vmatprep.subr.mxu0 0.0
      %3819 = vmatpush1.msra.mxu0 0.0
      %3820 = vmatprep.subr.mxu0 0.0
      %3821 = vmatpush1.msra.mxu0 0.0
      %3822 = vmatprep.subr.mxu0 0.0
      %3823 = vmatpush1.msra.mxu0 0.0
      %3824 = vmatprep.subr.mxu0 0.0
      %3825 = vmatpush1.msra.mxu0 0.0
      %3826 = vmatprep.subr.mxu0 0.0
      %3827 = vmatpush1.msra.mxu0 0.0
      %3828 = vmatprep.subr.mxu0 0.0
      %3829 = vmatpush1.msra.mxu0 0.0
      %3830 = vmatprep.subr.mxu0 0.0
      %3831 = vmatpush1.msra.mxu0 0.0
      %3832 = vmatprep.subr.mxu0 0.0
      %3833 = vmatpush1.msra.mxu0 0.0
      %3834 = vmatprep.subr.mxu0 0.0
      %3835 = vmatpush1.msra.mxu0 0.0
      %3836 = vmatprep.mubr.f32.mxu0 0.0
      %3837 = vmatmul.mubr.f32.gmra.mrb[0].mxu0 %v2493
      %v3838 = vpop.f32.mrb[0].mxu0
      %v3839 = vadd.f32 0.0, %v3838
      %v3840 = vpop.f32.mrb[0].mxu0
      %3841 = vmatprep.mubr.f32.mxu0 0.0
      %3842 = vmatmul.mubr.f32.gmra.mrb[0].mxu0 %v2496
      %v3843 = vpop.f32.mrb[0].mxu0
      %v3844 = vadd.f32 0.0, %v3843
      %v3845 = vpop.f32.mrb[0].mxu0
      %3846 = vdwg.mxu0
      %3847 = vmatprep.subr.mxu0 0.0
      %3848 = vmatpush1.msra.mxu0 %v2008
      %3849 = vmatprep.subr.mxu0 0.0
      %3850 = vmatpush1.msra.mxu0 %v2013
      %3851 = vmatprep.subr.mxu0 0.0
      %3852 = vmatpush1.msra.mxu0 %v2018
      %3853 = vmatprep.subr.mxu0 0.0
      %3854 = vmatpush1.msra.mxu0 %v2023
      %3855 = vmatprep.subr.mxu0 0.0
      %3856 = vmatpush1.msra.mxu0 %v2028
      %3857 = vmatprep.subr.mxu0 0.0
      %3858 = vmatpush1.msra.mxu0 %v2033
      %3859 = vmatprep.subr.mxu0 0.0
      %3860 = vmatpush1.msra.mxu0 %v2038
      %3861 = vmatprep.subr.mxu0 0.0
      %3862 = vmatpush1.msra.mxu0 %v2043
      %3863 = vmatprep.subr.mxu0 0.0
      %3864 = vmatpush1.msra.mxu0 0.0
      %3865 = vmatprep.subr.mxu0 0.0
      %3866 = vmatpush1.msra.mxu0 0.0
      %3867 = vmatprep.subr.mxu0 0.0
      %3868 = vmatpush1.msra.mxu0 0.0
      %3869 = vmatprep.subr.mxu0 0.0
      %3870 = vmatpush1.msra.mxu0 0.0
      %3871 = vmatprep.subr.mxu0 0.0
      %3872 = vmatpush1.msra.mxu0 0.0
      %3873 = vmatprep.subr.mxu0 0.0
      %3874 = vmatpush1.msra.mxu0 0.0
      %3875 = vmatprep.subr.mxu0 0.0
      %3876 = vmatpush1.msra.mxu0 0.0
      %3877 = vmatprep.subr.mxu0 0.0
      %3878 = vmatpush1.msra.mxu0 0.0
      %3879 = vmatprep.subr.mxu0 0.0
      %3880 = vmatpush1.msra.mxu0 0.0
      %3881 = vmatprep.subr.mxu0 0.0
      %3882 = vmatpush1.msra.mxu0 0.0
      %3883 = vmatprep.subr.mxu0 0.0
      %3884 = vmatpush1.msra.mxu0 0.0
      %3885 = vmatprep.subr.mxu0 0.0
      %3886 = vmatpush1.msra.mxu0 0.0
      %3887 = vmatprep.subr.mxu0 0.0
      %3888 = vmatpush1.msra.mxu0 0.0
      %3889 = vmatprep.subr.mxu0 0.0
      %3890 = vmatpush1.msra.mxu0 0.0
      %3891 = vmatprep.subr.mxu0 0.0
      %3892 = vmatpush1.msra.mxu0 0.0
      %3893 = vmatprep.subr.mxu0 0.0
      %3894 = vmatpush1.msra.mxu0 0.0
      %3895 = vmatprep.subr.mxu0 0.0
      %3896 = vmatpush1.msra.mxu0 0.0
      %3897 = vmatprep.subr.mxu0 0.0
      %3898 = vmatpush1.msra.mxu0 0.0
      %3899 = vmatprep.subr.mxu0 0.0
      %3900 = vmatpush1.msra.mxu0 0.0
      %3901 = vmatprep.subr.mxu0 0.0
      %3902 = vmatpush1.msra.mxu0 0.0
      %3903 = vmatprep.subr.mxu0 0.0
      %3904 = vmatpush1.msra.mxu0 0.0
      %3905 = vmatprep.subr.mxu0 0.0
      %3906 = vmatpush1.msra.mxu0 0.0
      %3907 = vmatprep.subr.mxu0 0.0
      %3908 = vmatpush1.msra.mxu0 0.0
      %3909 = vmatprep.subr.mxu0 0.0
      %3910 = vmatpush1.msra.mxu0 0.0
      %3911 = vmatprep.mubr.f32.mxu0 0.0
      %3912 = vmatmul.mubr.f32.gmra.mrb[0].mxu0 %v2574
      %v3913 = vpop.f32.mrb[0].mxu0
      %v3914 = vadd.f32 0.0, %v3913
      %v3915 = vpop.f32.mrb[0].mxu0
      %3916 = vmatprep.mubr.f32.mxu0 0.0
      %3917 = vmatmul.mubr.f32.gmra.mrb[0].mxu0 %v2577
      %v3918 = vpop.f32.mrb[0].mxu0
      %v3919 = vadd.f32 0.0, %v3918
      %v3920 = vpop.f32.mrb[0].mxu0
      %3921 = vdwg.mxu0
      %v3923 = vsel %vm823, %v3914, 0
      %v3926 = vsel %vm823, %v3919, 0
      %3928 = vmatprep.subr.mxu0 0.0
      %3929 = vmatpush1.msra.mxu0 %v2457
      %3930 = vmatprep.subr.mxu0 0.0
      %3931 = vmatpush1.msra.mxu0 0.0
      %3932 = vmatprep.subr.mxu0 0.0
      %3933 = vmatpush1.msra.mxu0 0.0
      %3934 = vmatprep.subr.mxu0 0.0
      %3935 = vmatpush1.msra.mxu0 0.0
      %3936 = vmatprep.subr.mxu0 0.0
      %3937 = vmatpush1.msra.mxu0 0.0
      %3938 = vmatprep.subr.mxu0 0.0
      %3939 = vmatpush1.msra.mxu0 0.0
      %3940 = vmatprep.subr.mxu0 0.0
      %3941 = vmatpush1.msra.mxu0 0.0
      %3942 = vmatprep.subr.mxu0 0.0
      %3943 = vmatpush1.msra.mxu0 0.0
      %3944 = vmatprep.subr.mxu0 0.0
      %3945 = vmatpush1.msra.mxu0 0.0
      %3946 = vmatprep.subr.mxu0 0.0
      %3947 = vmatpush1.msra.mxu0 0.0
      %3948 = vmatprep.subr.mxu0 0.0
      %3949 = vmatpush1.msra.mxu0 0.0
      %3950 = vmatprep.subr.mxu0 0.0
      %3951 = vmatpush1.msra.mxu0 0.0
      %3952 = vmatprep.subr.mxu0 0.0
      %3953 = vmatpush1.msra.mxu0 0.0
      %3954 = vmatprep.subr.mxu0 0.0
      %3955 = vmatpush1.msra.mxu0 0.0
      %3956 = vmatprep.subr.mxu0 0.0
      %3957 = vmatpush1.msra.mxu0 0.0
      %3958 = vmatprep.subr.mxu0 0.0
      %3959 = vmatpush1.msra.mxu0 0.0
      %3960 = vmatprep.subr.mxu0 0.0
      %3961 = vmatpush1.msra.mxu0 0.0
      %3962 = vmatprep.subr.mxu0 0.0
      %3963 = vmatpush1.msra.mxu0 0.0
      %3964 = vmatprep.subr.mxu0 0.0
      %3965 = vmatpush1.msra.mxu0 0.0
      %3966 = vmatprep.subr.mxu0 0.0
      %3967 = vmatpush1.msra.mxu0 0.0
      %3968 = vmatprep.subr.mxu0 0.0
      %3969 = vmatpush1.msra.mxu0 0.0
      %3970 = vmatprep.subr.mxu0 0.0
      %3971 = vmatpush1.msra.mxu0 0.0
      %3972 = vmatprep.subr.mxu0 0.0
      %3973 = vmatpush1.msra.mxu0 0.0
      %3974 = vmatprep.subr.mxu0 0.0
      %3975 = vmatpush1.msra.mxu0 0.0
      %3976 = vmatprep.subr.mxu0 0.0
      %3977 = vmatpush1.msra.mxu0 0.0
      %3978 = vmatprep.subr.mxu0 0.0
      %3979 = vmatpush1.msra.mxu0 0.0
      %3980 = vmatprep.subr.mxu0 0.0
      %3981 = vmatpush1.msra.mxu0 0.0
      %3982 = vmatprep.subr.mxu0 0.0
      %3983 = vmatpush1.msra.mxu0 0.0
      %3984 = vmatprep.subr.mxu0 0.0
      %3985 = vmatpush1.msra.mxu0 0.0
      %3986 = vmatprep.subr.mxu0 0.0
      %3987 = vmatpush1.msra.mxu0 0.0
      %3988 = vmatprep.subr.mxu0 0.0
      %3989 = vmatpush1.msra.mxu0 0.0
      %3990 = vmatprep.subr.mxu0 0.0
      %3991 = vmatpush1.msra.mxu0 0.0
      %3992 = vmatprep.mubr.f32.mxu0 0.0
      %3993 = vmatmul.mubr.f32.gmra.mrb[0].mxu0 %v3923
      %v3994 = vpop.f32.mrb[0].mxu0
      %v3995 = vadd.f32 0.0, %v3994
      %v3996 = vpop.f32.mrb[0].mxu0
      %3997 = vmatprep.mubr.f32.mxu0 0.0
      %3998 = vmatmul.mubr.f32.gmra.mrb[0].mxu0 %v3926
      %v3999 = vpop.f32.mrb[0].mxu0
      %v4000 = vadd.f32 0.0, %v3999
      %v4001 = vpop.f32.mrb[0].mxu0
      %4002 = vdwg.mxu0
      %v4004 = vsel %vm823, %v3839, 0
      %v4007 = vsel %vm823, %v3844, 0
      %4009 = vmatprep.subr.mxu0 0.0
      %4010 = vmatpush1.msra.mxu0 %v2456
      %4011 = vmatprep.subr.mxu0 0.0
      %4012 = vmatpush1.msra.mxu0 0.0
      %4013 = vmatprep.subr.mxu0 0.0
      %4014 = vmatpush1.msra.mxu0 0.0
      %4015 = vmatprep.subr.mxu0 0.0
      %4016 = vmatpush1.msra.mxu0 0.0
      %4017 = vmatprep.subr.mxu0 0.0
      %4018 = vmatpush1.msra.mxu0 0.0
      %4019 = vmatprep.subr.mxu0 0.0
      %4020 = vmatpush1.msra.mxu0 0.0
      %4021 = vmatprep.subr.mxu0 0.0
      %4022 = vmatpush1.msra.mxu0 0.0
      %4023 = vmatprep.subr.mxu0 0.0
      %4024 = vmatpush1.msra.mxu0 0.0
      %4025 = vmatprep.subr.mxu0 0.0
      %4026 = vmatpush1.msra.mxu0 0.0
      %4027 = vmatprep.subr.mxu0 0.0
      %4028 = vmatpush1.msra.mxu0 0.0
      %4029 = vmatprep.subr.mxu0 0.0
      %4030 = vmatpush1.msra.mxu0 0.0
      %4031 = vmatprep.subr.mxu0 0.0
      %4032 = vmatpush1.msra.mxu0 0.0
      %4033 = vmatprep.subr.mxu0 0.0
      %4034 = vmatpush1.msra.mxu0 0.0
      %4035 = vmatprep.subr.mxu0 0.0
      %4036 = vmatpush1.msra.mxu0 0.0
      %4037 = vmatprep.subr.mxu0 0.0
      %4038 = vmatpush1.msra.mxu0 0.0
      %4039 = vmatprep.subr.mxu0 0.0
      %4040 = vmatpush1.msra.mxu0 0.0
      %4041 = vmatprep.subr.mxu0 0.0
      %4042 = vmatpush1.msra.mxu0 0.0
      %4043 = vmatprep.subr.mxu0 0.0
      %4044 = vmatpush1.msra.mxu0 0.0
      %4045 = vmatprep.subr.mxu0 0.0
      %4046 = vmatpush1.msra.mxu0 0.0
      %4047 = vmatprep.subr.mxu0 0.0
      %4048 = vmatpush1.msra.mxu0 0.0
      %4049 = vmatprep.subr.mxu0 0.0
      %4050 = vmatpush1.msra.mxu0 0.0
      %4051 = vmatprep.subr.mxu0 0.0
      %4052 = vmatpush1.msra.mxu0 0.0
      %4053 = vmatprep.subr.mxu0 0.0
      %4054 = vmatpush1.msra.mxu0 0.0
      %4055 = vmatprep.subr.mxu0 0.0
      %4056 = vmatpush1.msra.mxu0 0.0
      %4057 = vmatprep.subr.mxu0 0.0
      %4058 = vmatpush1.msra.mxu0 0.0
      %4059 = vmatprep.subr.mxu0 0.0
      %4060 = vmatpush1.msra.mxu0 0.0
      %4061 = vmatprep.subr.mxu0 0.0
      %4062 = vmatpush1.msra.mxu0 0.0
      %4063 = vmatprep.subr.mxu0 0.0
      %4064 = vmatpush1.msra.mxu0 0.0
      %4065 = vmatprep.subr.mxu0 0.0
      %4066 = vmatpush1.msra.mxu0 0.0
      %4067 = vmatprep.subr.mxu0 0.0
      %4068 = vmatpush1.msra.mxu0 0.0
      %4069 = vmatprep.subr.mxu0 0.0
      %4070 = vmatpush1.msra.mxu0 0.0
      %4071 = vmatprep.subr.mxu0 0.0
      %4072 = vmatpush1.msra.mxu0 0.0
      %4073 = vmatprep.mubr.f32.mxu0 0.0
      %4074 = vmatmul.mubr.f32.gmra.mrb[0].mxu0 %v4004
      %v4075 = vpop.f32.mrb[0].mxu0
      %v4076 = vadd.f32 %v3995, %v4075
      %v4077 = vpop.f32.mrb[0].mxu0
      %4078 = vmatprep.mubr.f32.mxu0 0.0
      %4079 = vmatmul.mubr.f32.gmra.mrb[0].mxu0 %v4007
      %v4080 = vpop.f32.mrb[0].mxu0
      %v4081 = vadd.f32 %v4000, %v4080
      %v4082 = vpop.f32.mrb[0].mxu0
      %4083 = vdwg.mxu0
      %4084 = vmatprep.subr.mxu0 0.0
      %4085 = vmatpush1.msra.mxu0 %v2008
      %4086 = vmatprep.subr.mxu0 0.0
      %4087 = vmatpush1.msra.mxu0 %v2013
      %4088 = vmatprep.subr.mxu0 0.0
      %4089 = vmatpush1.msra.mxu0 %v2018
      %4090 = vmatprep.subr.mxu0 0.0
      %4091 = vmatpush1.msra.mxu0 %v2023
      %4092 = vmatprep.subr.mxu0 0.0
      %4093 = vmatpush1.msra.mxu0 %v2028
      %4094 = vmatprep.subr.mxu0 0.0
      %4095 = vmatpush1.msra.mxu0 %v2033
      %4096 = vmatprep.subr.mxu0 0.0
      %4097 = vmatpush1.msra.mxu0 %v2038
      %4098 = vmatprep.subr.mxu0 0.0
      %4099 = vmatpush1.msra.mxu0 %v2043
      %4100 = vmatprep.subr.mxu0 0.0
      %4101 = vmatpush1.msra.mxu0 0.0
      %4102 = vmatprep.subr.mxu0 0.0
      %4103 = vmatpush1.msra.mxu0 0.0
      %4104 = vmatprep.subr.mxu0 0.0
      %4105 = vmatpush1.msra.mxu0 0.0
      %4106 = vmatprep.subr.mxu0 0.0
      %4107 = vmatpush1.msra.mxu0 0.0
      %4108 = vmatprep.subr.mxu0 0.0
      %4109 = vmatpush1.msra.mxu0 0.0
      %4110 = vmatprep.subr.mxu0 0.0
      %4111 = vmatpush1.msra.mxu0 0.0
      %4112 = vmatprep.subr.mxu0 0.0
      %4113 = vmatpush1.msra.mxu0 0.0
      %4114 = vmatprep.subr.mxu0 0.0
      %4115 = vmatpush1.msra.mxu0 0.0
      %4116 = vmatprep.subr.mxu0 0.0
      %4117 = vmatpush1.msra.mxu0 0.0
      %4118 = vmatprep.subr.mxu0 0.0
      %4119 = vmatpush1.msra.mxu0 0.0
      %4120 = vmatprep.subr.mxu0 0.0
      %4121 = vmatpush1.msra.mxu0 0.0
      %4122 = vmatprep.subr.mxu0 0.0
      %4123 = vmatpush1.msra.mxu0 0.0
      %4124 = vmatprep.subr.mxu0 0.0
      %4125 = vmatpush1.msra.mxu0 0.0
      %4126 = vmatprep.subr.mxu0 0.0
      %4127 = vmatpush1.msra.mxu0 0.0
      %4128 = vmatprep.subr.mxu0 0.0
      %4129 = vmatpush1.msra.mxu0 0.0
      %4130 = vmatprep.subr.mxu0 0.0
      %4131 = vmatpush1.msra.mxu0 0.0
      %4132 = vmatprep.subr.mxu0 0.0
      %4133 = vmatpush1.msra.mxu0 0.0
      %4134 = vmatprep.subr.mxu0 0.0
      %4135 = vmatpush1.msra.mxu0 0.0
      %4136 = vmatprep.subr.mxu0 0.0
      %4137 = vmatpush1.msra.mxu0 0.0
      %4138 = vmatprep.subr.mxu0 0.0
      %4139 = vmatpush1.msra.mxu0 0.0
      %4140 = vmatprep.subr.mxu0 0.0
      %4141 = vmatpush1.msra.mxu0 0.0
      %4142 = vmatprep.subr.mxu0 0.0
      %4143 = vmatpush1.msra.mxu0 0.0
      %4144 = vmatprep.subr.mxu0 0.0
      %4145 = vmatpush1.msra.mxu0 0.0
      %4146 = vmatprep.subr.mxu0 0.0
      %4147 = vmatpush1.msra.mxu0 0.0
      %4148 = vmatprep.mubr.f32.mxu0 0.0
      %4149 = vmatmul.mubr.f32.gmra.mrb[0].mxu0 %v2817
      %v4150 = vpop.f32.mrb[0].mxu0
      %v4151 = vadd.f32 0.0, %v4150
      %v4152 = vpop.f32.mrb[0].mxu0
      %4153 = vmatprep.mubr.f32.mxu0 0.0
      %4154 = vmatmul.mubr.f32.gmra.mrb[0].mxu0 %v2820
      %v4155 = vpop.f32.mrb[0].mxu0
      %v4156 = vadd.f32 0.0, %v4155
      %v4157 = vpop.f32.mrb[0].mxu0
      %4158 = vdwg.mxu0
      %v4160 = vsel %vm823, %v4151, 0
      %v4163 = vsel %vm823, %v4156, 0
      %4165 = vmatprep.subr.mxu0 0.0
      %4166 = vmatpush1.msra.mxu0 %v2458
      %4167 = vmatprep.subr.mxu0 0.0
      %4168 = vmatpush1.msra.mxu0 0.0
      %4169 = vmatprep.subr.mxu0 0.0
      %4170 = vmatpush1.msra.mxu0 0.0
      %4171 = vmatprep.subr.mxu0 0.0
      %4172 = vmatpush1.msra.mxu0 0.0
      %4173 = vmatprep.subr.mxu0 0.0
      %4174 = vmatpush1.msra.mxu0 0.0
      %4175 = vmatprep.subr.mxu0 0.0
      %4176 = vmatpush1.msra.mxu0 0.0
      %4177 = vmatprep.subr.mxu0 0.0
      %4178 = vmatpush1.msra.mxu0 0.0
      %4179 = vmatprep.subr.mxu0 0.0
      %4180 = vmatpush1.msra.mxu0 0.0
      %4181 = vmatprep.subr.mxu0 0.0
      %4182 = vmatpush1.msra.mxu0 0.0
      %4183 = vmatprep.subr.mxu0 0.0
      %4184 = vmatpush1.msra.mxu0 0.0
      %4185 = vmatprep.subr.mxu0 0.0
      %4186 = vmatpush1.msra.mxu0 0.0
      %4187 = vmatprep.subr.mxu0 0.0
      %4188 = vmatpush1.msra.mxu0 0.0
      %4189 = vmatprep.subr.mxu0 0.0
      %4190 = vmatpush1.msra.mxu0 0.0
      %4191 = vmatprep.subr.mxu0 0.0
      %4192 = vmatpush1.msra.mxu0 0.0
      %4193 = vmatprep.subr.mxu0 0.0
      %4194 = vmatpush1.msra.mxu0 0.0
      %4195 = vmatprep.subr.mxu0 0.0
      %4196 = vmatpush1.msra.mxu0 0.0
      %4197 = vmatprep.subr.mxu0 0.0
      %4198 = vmatpush1.msra.mxu0 0.0
      %4199 = vmatprep.subr.mxu0 0.0
      %4200 = vmatpush1.msra.mxu0 0.0
      %4201 = vmatprep.subr.mxu0 0.0
      %4202 = vmatpush1.msra.mxu0 0.0
      %4203 = vmatprep.subr.mxu0 0.0
      %4204 = vmatpush1.msra.mxu0 0.0
      %4205 = vmatprep.subr.mxu0 0.0
      %4206 = vmatpush1.msra.mxu0 0.0
      %4207 = vmatprep.subr.mxu0 0.0
      %4208 = vmatpush1.msra.mxu0 0.0
      %4209 = vmatprep.subr.mxu0 0.0
      %4210 = vmatpush1.msra.mxu0 0.0
      %4211 = vmatprep.subr.mxu0 0.0
      %4212 = vmatpush1.msra.mxu0 0.0
      %4213 = vmatprep.subr.mxu0 0.0
      %4214 = vmatpush1.msra.mxu0 0.0
      %4215 = vmatprep.subr.mxu0 0.0
      %4216 = vmatpush1.msra.mxu0 0.0
      %4217 = vmatprep.subr.mxu0 0.0
      %4218 = vmatpush1.msra.mxu0 0.0
      %4219 = vmatprep.subr.mxu0 0.0
      %4220 = vmatpush1.msra.mxu0 0.0
      %4221 = vmatprep.subr.mxu0 0.0
      %4222 = vmatpush1.msra.mxu0 0.0
      %4223 = vmatprep.subr.mxu0 0.0
      %4224 = vmatpush1.msra.mxu0 0.0
      %4225 = vmatprep.subr.mxu0 0.0
      %4226 = vmatpush1.msra.mxu0 0.0
      %4227 = vmatprep.subr.mxu0 0.0
      %4228 = vmatpush1.msra.mxu0 0.0
      %4229 = vmatprep.mubr.f32.mxu0 0.0
      %4230 = vmatmul.mubr.f32.gmra.mrb[0].mxu0 %v4160
      %v4231 = vpop.f32.mrb[0].mxu0
      %v4232 = vadd.f32 0.0, %v4231
      %v4233 = vpop.f32.mrb[0].mxu0
      %4234 = vmatprep.mubr.f32.mxu0 0.0
      %4235 = vmatmul.mubr.f32.gmra.mrb[0].mxu0 %v4163
      %v4236 = vpop.f32.mrb[0].mxu0
      %v4237 = vadd.f32 0.0, %v4236
      %v4238 = vpop.f32.mrb[0].mxu0
      %4239 = vdwg.mxu0
      %v4240 = vadd.f32 %v4076, %v4232
      %v4241 = vadd.f32 %v4081, %v4237
      %4242 = vmatprep.subr.mxu0 0.0
      %4243 = vmatpush1.msra.mxu0 %v2008
      %4244 = vmatprep.subr.mxu0 0.0
      %4245 = vmatpush1.msra.mxu0 %v2013
      %4246 = vmatprep.subr.mxu0 0.0
      %4247 = vmatpush1.msra.mxu0 %v2018
      %4248 = vmatprep.subr.mxu0 0.0
      %4249 = vmatpush1.msra.mxu0 %v2023
      %4250 = vmatprep.subr.mxu0 0.0
      %4251 = vmatpush1.msra.mxu0 %v2028
      %4252 = vmatprep.subr.mxu0 0.0
      %4253 = vmatpush1.msra.mxu0 %v2033
      %4254 = vmatprep.subr.mxu0 0.0
      %4255 = vmatpush1.msra.mxu0 %v2038
      %4256 = vmatprep.subr.mxu0 0.0
      %4257 = vmatpush1.msra.mxu0 %v2043
      %4258 = vmatprep.subr.mxu0 0.0
      %4259 = vmatpush1.msra.mxu0 0.0
      %4260 = vmatprep.subr.mxu0 0.0
      %4261 = vmatpush1.msra.mxu0 0.0
      %4262 = vmatprep.subr.mxu0 0.0
      %4263 = vmatpush1.msra.mxu0 0.0
      %4264 = vmatprep.subr.mxu0 0.0
      %4265 = vmatpush1.msra.mxu0 0.0
      %4266 = vmatprep.subr.mxu0 0.0
      %4267 = vmatpush1.msra.mxu0 0.0
      %4268 = vmatprep.subr.mxu0 0.0
      %4269 = vmatpush1.msra.mxu0 0.0
      %4270 = vmatprep.subr.mxu0 0.0
      %4271 = vmatpush1.msra.mxu0 0.0
      %4272 = vmatprep.subr.mxu0 0.0
      %4273 = vmatpush1.msra.mxu0 0.0
      %4274 = vmatprep.subr.mxu0 0.0
      %4275 = vmatpush1.msra.mxu0 0.0
      %4276 = vmatprep.subr.mxu0 0.0
      %4277 = vmatpush1.msra.mxu0 0.0
      %4278 = vmatprep.subr.mxu0 0.0
      %4279 = vmatpush1.msra.mxu0 0.0
      %4280 = vmatprep.subr.mxu0 0.0
      %4281 = vmatpush1.msra.mxu0 0.0
      %4282 = vmatprep.subr.mxu0 0.0
      %4283 = vmatpush1.msra.mxu0 0.0
      %4284 = vmatprep.subr.mxu0 0.0
      %4285 = vmatpush1.msra.mxu0 0.0
      %4286 = vmatprep.subr.mxu0 0.0
      %4287 = vmatpush1.msra.mxu0 0.0
      %4288 = vmatprep.subr.mxu0 0.0
      %4289 = vmatpush1.msra.mxu0 0.0
      %4290 = vmatprep.subr.mxu0 0.0
      %4291 = vmatpush1.msra.mxu0 0.0
      %4292 = vmatprep.subr.mxu0 0.0
      %4293 = vmatpush1.msra.mxu0 0.0
      %4294 = vmatprep.subr.mxu0 0.0
      %4295 = vmatpush1.msra.mxu0 0.0
      %4296 = vmatprep.subr.mxu0 0.0
      %4297 = vmatpush1.msra.mxu0 0.0
      %4298 = vmatprep.subr.mxu0 0.0
      %4299 = vmatpush1.msra.mxu0 0.0
      %4300 = vmatprep.subr.mxu0 0.0
      %4301 = vmatpush1.msra.mxu0 0.0
      %4302 = vmatprep.subr.mxu0 0.0
      %4303 = vmatpush1.msra.mxu0 0.0
      %4304 = vmatprep.subr.mxu0 0.0
      %4305 = vmatpush1.msra.mxu0 0.0
      %4306 = vmatprep.mubr.f32.mxu0 0.0
      %4307 = vmatmul.mubr.f32.gmra.mrb[0].mxu0 %v2981
      %v4308 = vpop.f32.mrb[0].mxu0
      %v4309 = vadd.f32 0.0, %v4308
      %v4310 = vpop.f32.mrb[0].mxu0
      %4311 = vmatprep.mubr.f32.mxu0 0.0
      %4312 = vmatmul.mubr.f32.gmra.mrb[0].mxu0 %v2984
      %v4313 = vpop.f32.mrb[0].mxu0
      %v4314 = vadd.f32 0.0, %v4313
      %v4315 = vpop.f32.mrb[0].mxu0
      %4316 = vdwg.mxu0
      %v4318 = vsel %vm823, %v4309, 0
      %v4321 = vsel %vm823, %v4314, 0
      %4323 = vmatprep.subr.mxu0 0.0
      %4324 = vmatpush1.msra.mxu0 %v2459
      %4325 = vmatprep.subr.mxu0 0.0
      %4326 = vmatpush1.msra.mxu0 0.0
      %4327 = vmatprep.subr.mxu0 0.0
      %4328 = vmatpush1.msra.mxu0 0.0
      %4329 = vmatprep.subr.mxu0 0.0
      %4330 = vmatpush1.msra.mxu0 0.0
      %4331 = vmatprep.subr.mxu0 0.0
      %4332 = vmatpush1.msra.mxu0 0.0
      %4333 = vmatprep.subr.mxu0 0.0
      %4334 = vmatpush1.msra.mxu0 0.0
      %4335 = vmatprep.subr.mxu0 0.0
      %4336 = vmatpush1.msra.mxu0 0.0
      %4337 = vmatprep.subr.mxu0 0.0
      %4338 = vmatpush1.msra.mxu0 0.0
      %4339 = vmatprep.subr.mxu0 0.0
      %4340 = vmatpush1.msra.mxu0 0.0
      %4341 = vmatprep.subr.mxu0 0.0
      %4342 = vmatpush1.msra.mxu0 0.0
      %4343 = vmatprep.subr.mxu0 0.0
      %4344 = vmatpush1.msra.mxu0 0.0
      %4345 = vmatprep.subr.mxu0 0.0
      %4346 = vmatpush1.msra.mxu0 0.0
      %4347 = vmatprep.subr.mxu0 0.0
      %4348 = vmatpush1.msra.mxu0 0.0
      %4349 = vmatprep.subr.mxu0 0.0
      %4350 = vmatpush1.msra.mxu0 0.0
      %4351 = vmatprep.subr.mxu0 0.0
      %4352 = vmatpush1.msra.mxu0 0.0
      %4353 = vmatprep.subr.mxu0 0.0
      %4354 = vmatpush1.msra.mxu0 0.0
      %4355 = vmatprep.subr.mxu0 0.0
      %4356 = vmatpush1.msra.mxu0 0.0
      %4357 = vmatprep.subr.mxu0 0.0
      %4358 = vmatpush1.msra.mxu0 0.0
      %4359 = vmatprep.subr.mxu0 0.0
      %4360 = vmatpush1.msra.mxu0 0.0
      %4361 = vmatprep.subr.mxu0 0.0
      %4362 = vmatpush1.msra.mxu0 0.0
      %4363 = vmatprep.subr.mxu0 0.0
      %4364 = vmatpush1.msra.mxu0 0.0
      %4365 = vmatprep.subr.mxu0 0.0
      %4366 = vmatpush1.msra.mxu0 0.0
      %4367 = vmatprep.subr.mxu0 0.0
      %4368 = vmatpush1.msra.mxu0 0.0
      %4369 = vmatprep.subr.mxu0 0.0
      %4370 = vmatpush1.msra.mxu0 0.0
      %4371 = vmatprep.subr.mxu0 0.0
      %4372 = vmatpush1.msra.mxu0 0.0
      %4373 = vmatprep.subr.mxu0 0.0
      %4374 = vmatpush1.msra.mxu0 0.0
      %4375 = vmatprep.subr.mxu0 0.0
      %4376 = vmatpush1.msra.mxu0 0.0
      %4377 = vmatprep.subr.mxu0 0.0
      %4378 = vmatpush1.msra.mxu0 0.0
      %4379 = vmatprep.subr.mxu0 0.0
      %4380 = vmatpush1.msra.mxu0 0.0
      %4381 = vmatprep.subr.mxu0 0.0
      %4382 = vmatpush1.msra.mxu0 0.0
      %4383 = vmatprep.subr.mxu0 0.0
      %4384 = vmatpush1.msra.mxu0 0.0
      %4385 = vmatprep.subr.mxu0 0.0
      %4386 = vmatpush1.msra.mxu0 0.0
      %4387 = vmatprep.mubr.f32.mxu0 0.0
      %4388 = vmatmul.mubr.f32.gmra.mrb[0].mxu0 %v4318
      %v4389 = vpop.f32.mrb[0].mxu0
      %v4390 = vadd.f32 0.0, %v4389
      %v4391 = vpop.f32.mrb[0].mxu0
      %4392 = vmatprep.mubr.f32.mxu0 0.0
      %4393 = vmatmul.mubr.f32.gmra.mrb[0].mxu0 %v4321
      %v4394 = vpop.f32.mrb[0].mxu0
      %v4395 = vadd.f32 0.0, %v4394
      %v4396 = vpop.f32.mrb[0].mxu0
      %4397 = vdwg.mxu0
      %v4398 = vadd.f32 %v4240, %v4390
      %v4399 = vadd.f32 %v4241, %v4395
      %4400 = vmatprep.subr.mxu0 0.0
      %4401 = vmatpush1.msra.mxu0 %v2418
      %4402 = vmatprep.subr.mxu0 0.0
      %4403 = vmatpush1.msra.mxu0 %v2423
      %4404 = vmatprep.subr.mxu0 0.0
      %4405 = vmatpush1.msra.mxu0 %v2428
      %4406 = vmatprep.subr.mxu0 0.0
      %4407 = vmatpush1.msra.mxu0 %v2433
      %4408 = vmatprep.subr.mxu0 0.0
      %4409 = vmatpush1.msra.mxu0 %v2438
      %4410 = vmatprep.subr.mxu0 0.0
      %4411 = vmatpush1.msra.mxu0 %v2443
      %4412 = vmatprep.subr.mxu0 0.0
      %4413 = vmatpush1.msra.mxu0 %v2448
      %4414 = vmatprep.subr.mxu0 0.0
      %4415 = vmatpush1.msra.mxu0 %v2453
      %4416 = vmatprep.subr.mxu0 0.0
      %4417 = vmatpush1.msra.mxu0 0.0
      %4418 = vmatprep.subr.mxu0 0.0
      %4419 = vmatpush1.msra.mxu0 0.0
      %4420 = vmatprep.subr.mxu0 0.0
      %4421 = vmatpush1.msra.mxu0 0.0
      %4422 = vmatprep.subr.mxu0 0.0
      %4423 = vmatpush1.msra.mxu0 0.0
      %4424 = vmatprep.subr.mxu0 0.0
      %4425 = vmatpush1.msra.mxu0 0.0
      %4426 = vmatprep.subr.mxu0 0.0
      %4427 = vmatpush1.msra.mxu0 0.0
      %4428 = vmatprep.subr.mxu0 0.0
      %4429 = vmatpush1.msra.mxu0 0.0
      %4430 = vmatprep.subr.mxu0 0.0
      %4431 = vmatpush1.msra.mxu0 0.0
      %4432 = vmatprep.subr.mxu0 0.0
      %4433 = vmatpush1.msra.mxu0 0.0
      %4434 = vmatprep.subr.mxu0 0.0
      %4435 = vmatpush1.msra.mxu0 0.0
      %4436 = vmatprep.subr.mxu0 0.0
      %4437 = vmatpush1.msra.mxu0 0.0
      %4438 = vmatprep.subr.mxu0 0.0
      %4439 = vmatpush1.msra.mxu0 0.0
      %4440 = vmatprep.subr.mxu0 0.0
      %4441 = vmatpush1.msra.mxu0 0.0
      %4442 = vmatprep.subr.mxu0 0.0
      %4443 = vmatpush1.msra.mxu0 0.0
      %4444 = vmatprep.subr.mxu0 0.0
      %4445 = vmatpush1.msra.mxu0 0.0
      %4446 = vmatprep.subr.mxu0 0.0
      %4447 = vmatpush1.msra.mxu0 0.0
      %4448 = vmatprep.subr.mxu0 0.0
      %4449 = vmatpush1.msra.mxu0 0.0
      %4450 = vmatprep.subr.mxu0 0.0
      %4451 = vmatpush1.msra.mxu0 0.0
      %4452 = vmatprep.subr.mxu0 0.0
      %4453 = vmatpush1.msra.mxu0 0.0
      %4454 = vmatprep.subr.mxu0 0.0
      %4455 = vmatpush1.msra.mxu0 0.0
      %4456 = vmatprep.subr.mxu0 0.0
      %4457 = vmatpush1.msra.mxu0 0.0
      %4458 = vmatprep.subr.mxu0 0.0
      %4459 = vmatpush1.msra.mxu0 0.0
      %4460 = vmatprep.subr.mxu0 0.0
      %4461 = vmatpush1.msra.mxu0 0.0
      %4462 = vmatprep.subr.mxu0 0.0
      %4463 = vmatpush1.msra.mxu0 0.0
      %4464 = vmatprep.mubr.f32.mxu0 0.0
      %4465 = vmatmul.mubr.f32.gmra.mrb[0].mxu0 %v2493
      %v4466 = vpop.f32.mrb[0].mxu0
      %v4467 = vadd.f32 0.0, %v4466
      %v4468 = vpop.f32.mrb[0].mxu0
      %4469 = vmatprep.mubr.f32.mxu0 0.0
      %4470 = vmatmul.mubr.f32.gmra.mrb[0].mxu0 %v2496
      %v4471 = vpop.f32.mrb[0].mxu0
      %v4472 = vadd.f32 0.0, %v4471
      %v4473 = vpop.f32.mrb[0].mxu0
      %4474 = vdwg.mxu0
      %4475 = vmatprep.subr.mxu0 0.0
      %4476 = vmatpush1.msra.mxu0 %v2418
      %4477 = vmatprep.subr.mxu0 0.0
      %4478 = vmatpush1.msra.mxu0 %v2423
      %4479 = vmatprep.subr.mxu0 0.0
      %4480 = vmatpush1.msra.mxu0 %v2428
      %4481 = vmatprep.subr.mxu0 0.0
      %4482 = vmatpush1.msra.mxu0 %v2433
      %4483 = vmatprep.subr.mxu0 0.0
      %4484 = vmatpush1.msra.mxu0 %v2438
      %4485 = vmatprep.subr.mxu0 0.0
      %4486 = vmatpush1.msra.mxu0 %v2443
      %4487 = vmatprep.subr.mxu0 0.0
      %4488 = vmatpush1.msra.mxu0 %v2448
      %4489 = vmatprep.subr.mxu0 0.0
      %4490 = vmatpush1.msra.mxu0 %v2453
      %4491 = vmatprep.subr.mxu0 0.0
      %4492 = vmatpush1.msra.mxu0 0.0
      %4493 = vmatprep.subr.mxu0 0.0
      %4494 = vmatpush1.msra.mxu0 0.0
      %4495 = vmatprep.subr.mxu0 0.0
      %4496 = vmatpush1.msra.mxu0 0.0
      %4497 = vmatprep.subr.mxu0 0.0
      %4498 = vmatpush1.msra.mxu0 0.0
      %4499 = vmatprep.subr.mxu0 0.0
      %4500 = vmatpush1.msra.mxu0 0.0
      %4501 = vmatprep.subr.mxu0 0.0
      %4502 = vmatpush1.msra.mxu0 0.0
      %4503 = vmatprep.subr.mxu0 0.0
      %4504 = vmatpush1.msra.mxu0 0.0
      %4505 = vmatprep.subr.mxu0 0.0
      %4506 = vmatpush1.msra.mxu0 0.0
      %4507 = vmatprep.subr.mxu0 0.0
      %4508 = vmatpush1.msra.mxu0 0.0
      %4509 = vmatprep.subr.mxu0 0.0
      %4510 = vmatpush1.msra.mxu0 0.0
      %4511 = vmatprep.subr.mxu0 0.0
      %4512 = vmatpush1.msra.mxu0 0.0
      %4513 = vmatprep.subr.mxu0 0.0
      %4514 = vmatpush1.msra.mxu0 0.0
      %4515 = vmatprep.subr.mxu0 0.0
      %4516 = vmatpush1.msra.mxu0 0.0
      %4517 = vmatprep.subr.mxu0 0.0
      %4518 = vmatpush1.msra.mxu0 0.0
      %4519 = vmatprep.subr.mxu0 0.0
      %4520 = vmatpush1.msra.mxu0 0.0
      %4521 = vmatprep.subr.mxu0 0.0
      %4522 = vmatpush1.msra.mxu0 0.0
      %4523 = vmatprep.subr.mxu0 0.0
      %4524 = vmatpush1.msra.mxu0 0.0
      %4525 = vmatprep.subr.mxu0 0.0
      %4526 = vmatpush1.msra.mxu0 0.0
      %4527 = vmatprep.subr.mxu0 0.0
      %4528 = vmatpush1.msra.mxu0 0.0
      %4529 = vmatprep.subr.mxu0 0.0
      %4530 = vmatpush1.msra.mxu0 0.0
      %4531 = vmatprep.subr.mxu0 0.0
      %4532 = vmatpush1.msra.mxu0 0.0
      %4533 = vmatprep.subr.mxu0 0.0
      %4534 = vmatpush1.msra.mxu0 0.0
      %4535 = vmatprep.subr.mxu0 0.0
      %4536 = vmatpush1.msra.mxu0 0.0
      %4537 = vmatprep.subr.mxu0 0.0
      %4538 = vmatpush1.msra.mxu0 0.0
      %4539 = vmatprep.mubr.f32.mxu0 0.0
      %4540 = vmatmul.mubr.f32.gmra.mrb[0].mxu0 %v2574
      %v4541 = vpop.f32.mrb[0].mxu0
      %v4542 = vadd.f32 0.0, %v4541
      %v4543 = vpop.f32.mrb[0].mxu0
      %4544 = vmatprep.mubr.f32.mxu0 0.0
      %4545 = vmatmul.mubr.f32.gmra.mrb[0].mxu0 %v2577
      %v4546 = vpop.f32.mrb[0].mxu0
      %v4547 = vadd.f32 0.0, %v4546
      %v4548 = vpop.f32.mrb[0].mxu0
      %4549 = vdwg.mxu0
      %v4551 = vsel %vm823, %v4542, 0
      %v4554 = vsel %vm823, %v4547, 0
      %4556 = vmatprep.subr.mxu0 0.0
      %4557 = vmatpush1.msra.mxu0 %v2457
      %4558 = vmatprep.subr.mxu0 0.0
      %4559 = vmatpush1.msra.mxu0 0.0
      %4560 = vmatprep.subr.mxu0 0.0
      %4561 = vmatpush1.msra.mxu0 0.0
      %4562 = vmatprep.subr.mxu0 0.0
      %4563 = vmatpush1.msra.mxu0 0.0
      %4564 = vmatprep.subr.mxu0 0.0
      %4565 = vmatpush1.msra.mxu0 0.0
      %4566 = vmatprep.subr.mxu0 0.0
      %4567 = vmatpush1.msra.mxu0 0.0
      %4568 = vmatprep.subr.mxu0 0.0
      %4569 = vmatpush1.msra.mxu0 0.0
      %4570 = vmatprep.subr.mxu0 0.0
      %4571 = vmatpush1.msra.mxu0 0.0
      %4572 = vmatprep.subr.mxu0 0.0
      %4573 = vmatpush1.msra.mxu0 0.0
      %4574 = vmatprep.subr.mxu0 0.0
      %4575 = vmatpush1.msra.mxu0 0.0
      %4576 = vmatprep.subr.mxu0 0.0
      %4577 = vmatpush1.msra.mxu0 0.0
      %4578 = vmatprep.subr.mxu0 0.0
      %4579 = vmatpush1.msra.mxu0 0.0
      %4580 = vmatprep.subr.mxu0 0.0
      %4581 = vmatpush1.msra.mxu0 0.0
      %4582 = vmatprep.subr.mxu0 0.0
      %4583 = vmatpush1.msra.mxu0 0.0
      %4584 = vmatprep.subr.mxu0 0.0
      %4585 = vmatpush1.msra.mxu0 0.0
      %4586 = vmatprep.subr.mxu0 0.0
      %4587 = vmatpush1.msra.mxu0 0.0
      %4588 = vmatprep.subr.mxu0 0.0
      %4589 = vmatpush1.msra.mxu0 0.0
      %4590 = vmatprep.subr.mxu0 0.0
      %4591 = vmatpush1.msra.mxu0 0.0
      %4592 = vmatprep.subr.mxu0 0.0
      %4593 = vmatpush1.msra.mxu0 0.0
      %4594 = vmatprep.subr.mxu0 0.0
      %4595 = vmatpush1.msra.mxu0 0.0
      %4596 = vmatprep.subr.mxu0 0.0
      %4597 = vmatpush1.msra.mxu0 0.0
      %4598 = vmatprep.subr.mxu0 0.0
      %4599 = vmatpush1.msra.mxu0 0.0
      %4600 = vmatprep.subr.mxu0 0.0
      %4601 = vmatpush1.msra.mxu0 0.0
      %4602 = vmatprep.subr.mxu0 0.0
      %4603 = vmatpush1.msra.mxu0 0.0
      %4604 = vmatprep.subr.mxu0 0.0
      %4605 = vmatpush1.msra.mxu0 0.0
      %4606 = vmatprep.subr.mxu0 0.0
      %4607 = vmatpush1.msra.mxu0 0.0
      %4608 = vmatprep.subr.mxu0 0.0
      %4609 = vmatpush1.msra.mxu0 0.0
      %4610 = vmatprep.subr.mxu0 0.0
      %4611 = vmatpush1.msra.mxu0 0.0
      %4612 = vmatprep.subr.mxu0 0.0
      %4613 = vmatpush1.msra.mxu0 0.0
      %4614 = vmatprep.subr.mxu0 0.0
      %4615 = vmatpush1.msra.mxu0 0.0
      %4616 = vmatprep.subr.mxu0 0.0
      %4617 = vmatpush1.msra.mxu0 0.0
      %4618 = vmatprep.subr.mxu0 0.0
      %4619 = vmatpush1.msra.mxu0 0.0
      %4620 = vmatprep.mubr.f32.mxu0 0.0
      %4621 = vmatmul.mubr.f32.gmra.mrb[0].mxu0 %v4551
      %v4622 = vpop.f32.mrb[0].mxu0
      %v4623 = vadd.f32 0.0, %v4622
      %v4624 = vpop.f32.mrb[0].mxu0
      %4625 = vmatprep.mubr.f32.mxu0 0.0
      %4626 = vmatmul.mubr.f32.gmra.mrb[0].mxu0 %v4554
      %v4627 = vpop.f32.mrb[0].mxu0
      %v4628 = vadd.f32 0.0, %v4627
      %v4629 = vpop.f32.mrb[0].mxu0
      %4630 = vdwg.mxu0
      %v4632 = vsel %vm823, %v4467, 0
      %v4635 = vsel %vm823, %v4472, 0
      %4637 = vmatprep.subr.mxu0 0.0
      %4638 = vmatpush1.msra.mxu0 %v2456
      %4639 = vmatprep.subr.mxu0 0.0
      %4640 = vmatpush1.msra.mxu0 0.0
      %4641 = vmatprep.subr.mxu0 0.0
      %4642 = vmatpush1.msra.mxu0 0.0
      %4643 = vmatprep.subr.mxu0 0.0
      %4644 = vmatpush1.msra.mxu0 0.0
      %4645 = vmatprep.subr.mxu0 0.0
      %4646 = vmatpush1.msra.mxu0 0.0
      %4647 = vmatprep.subr.mxu0 0.0
      %4648 = vmatpush1.msra.mxu0 0.0
      %4649 = vmatprep.subr.mxu0 0.0
      %4650 = vmatpush1.msra.mxu0 0.0
      %4651 = vmatprep.subr.mxu0 0.0
      %4652 = vmatpush1.msra.mxu0 0.0
      %4653 = vmatprep.subr.mxu0 0.0
      %4654 = vmatpush1.msra.mxu0 0.0
      %4655 = vmatprep.subr.mxu0 0.0
      %4656 = vmatpush1.msra.mxu0 0.0
      %4657 = vmatprep.subr.mxu0 0.0
      %4658 = vmatpush1.msra.mxu0 0.0
      %4659 = vmatprep.subr.mxu0 0.0
      %4660 = vmatpush1.msra.mxu0 0.0
      %4661 = vmatprep.subr.mxu0 0.0
      %4662 = vmatpush1.msra.mxu0 0.0
      %4663 = vmatprep.subr.mxu0 0.0
      %4664 = vmatpush1.msra.mxu0 0.0
      %4665 = vmatprep.subr.mxu0 0.0
      %4666 = vmatpush1.msra.mxu0 0.0
      %4667 = vmatprep.subr.mxu0 0.0
      %4668 = vmatpush1.msra.mxu0 0.0
      %4669 = vmatprep.subr.mxu0 0.0
      %4670 = vmatpush1.msra.mxu0 0.0
      %4671 = vmatprep.subr.mxu0 0.0
      %4672 = vmatpush1.msra.mxu0 0.0
      %4673 = vmatprep.subr.mxu0 0.0
      %4674 = vmatpush1.msra.mxu0 0.0
      %4675 = vmatprep.subr.mxu0 0.0
      %4676 = vmatpush1.msra.mxu0 0.0
      %4677 = vmatprep.subr.mxu0 0.0
      %4678 = vmatpush1.msra.mxu0 0.0
      %4679 = vmatprep.subr.mxu0 0.0
      %4680 = vmatpush1.msra.mxu0 0.0
      %4681 = vmatprep.subr.mxu0 0.0
      %4682 = vmatpush1.msra.mxu0 0.0
      %4683 = vmatprep.subr.mxu0 0.0
      %4684 = vmatpush1.msra.mxu0 0.0
      %4685 = vmatprep.subr.mxu0 0.0
      %4686 = vmatpush1.msra.mxu0 0.0
      %4687 = vmatprep.subr.mxu0 0.0
      %4688 = vmatpush1.msra.mxu0 0.0
      %4689 = vmatprep.subr.mxu0 0.0
      %4690 = vmatpush1.msra.mxu0 0.0
      %4691 = vmatprep.subr.mxu0 0.0
      %4692 = vmatpush1.msra.mxu0 0.0
      %4693 = vmatprep.subr.mxu0 0.0
      %4694 = vmatpush1.msra.mxu0 0.0
      %4695 = vmatprep.subr.mxu0 0.0
      %4696 = vmatpush1.msra.mxu0 0.0
      %4697 = vmatprep.subr.mxu0 0.0
      %4698 = vmatpush1.msra.mxu0 0.0
      %4699 = vmatprep.subr.mxu0 0.0
      %4700 = vmatpush1.msra.mxu0 0.0
      %4701 = vmatprep.mubr.f32.mxu0 0.0
      %4702 = vmatmul.mubr.f32.gmra.mrb[0].mxu0 %v4632
      %v4703 = vpop.f32.mrb[0].mxu0
      %v4704 = vadd.f32 %v4623, %v4703
      %v4705 = vpop.f32.mrb[0].mxu0
      %4706 = vmatprep.mubr.f32.mxu0 0.0
      %4707 = vmatmul.mubr.f32.gmra.mrb[0].mxu0 %v4635
      %v4708 = vpop.f32.mrb[0].mxu0
      %v4709 = vadd.f32 %v4628, %v4708
      %v4710 = vpop.f32.mrb[0].mxu0
      %4711 = vdwg.mxu0
      %4712 = vmatprep.subr.mxu0 0.0
      %4713 = vmatpush1.msra.mxu0 %v2418
      %4714 = vmatprep.subr.mxu0 0.0
      %4715 = vmatpush1.msra.mxu0 %v2423
      %4716 = vmatprep.subr.mxu0 0.0
      %4717 = vmatpush1.msra.mxu0 %v2428
      %4718 = vmatprep.subr.mxu0 0.0
      %4719 = vmatpush1.msra.mxu0 %v2433
      %4720 = vmatprep.subr.mxu0 0.0
      %4721 = vmatpush1.msra.mxu0 %v2438
      %4722 = vmatprep.subr.mxu0 0.0
      %4723 = vmatpush1.msra.mxu0 %v2443
      %4724 = vmatprep.subr.mxu0 0.0
      %4725 = vmatpush1.msra.mxu0 %v2448
      %4726 = vmatprep.subr.mxu0 0.0
      %4727 = vmatpush1.msra.mxu0 %v2453
      %4728 = vmatprep.subr.mxu0 0.0
      %4729 = vmatpush1.msra.mxu0 0.0
      %4730 = vmatprep.subr.mxu0 0.0
      %4731 = vmatpush1.msra.mxu0 0.0
      %4732 = vmatprep.subr.mxu0 0.0
      %4733 = vmatpush1.msra.mxu0 0.0
      %4734 = vmatprep.subr.mxu0 0.0
      %4735 = vmatpush1.msra.mxu0 0.0
      %4736 = vmatprep.subr.mxu0 0.0
      %4737 = vmatpush1.msra.mxu0 0.0
      %4738 = vmatprep.subr.mxu0 0.0
      %4739 = vmatpush1.msra.mxu0 0.0
      %4740 = vmatprep.subr.mxu0 0.0
      %4741 = vmatpush1.msra.mxu0 0.0
      %4742 = vmatprep.subr.mxu0 0.0
      %4743 = vmatpush1.msra.mxu0 0.0
      %4744 = vmatprep.subr.mxu0 0.0
      %4745 = vmatpush1.msra.mxu0 0.0
      %4746 = vmatprep.subr.mxu0 0.0
      %4747 = vmatpush1.msra.mxu0 0.0
      %4748 = vmatprep.subr.mxu0 0.0
      %4749 = vmatpush1.msra.mxu0 0.0
      %4750 = vmatprep.subr.mxu0 0.0
      %4751 = vmatpush1.msra.mxu0 0.0
      %4752 = vmatprep.subr.mxu0 0.0
      %4753 = vmatpush1.msra.mxu0 0.0
      %4754 = vmatprep.subr.mxu0 0.0
      %4755 = vmatpush1.msra.mxu0 0.0
      %4756 = vmatprep.subr.mxu0 0.0
      %4757 = vmatpush1.msra.mxu0 0.0
      %4758 = vmatprep.subr.mxu0 0.0
      %4759 = vmatpush1.msra.mxu0 0.0
      %4760 = vmatprep.subr.mxu0 0.0
      %4761 = vmatpush1.msra.mxu0 0.0
      %4762 = vmatprep.subr.mxu0 0.0
      %4763 = vmatpush1.msra.mxu0 0.0
      %4764 = vmatprep.subr.mxu0 0.0
      %4765 = vmatpush1.msra.mxu0 0.0
      %4766 = vmatprep.subr.mxu0 0.0
      %4767 = vmatpush1.msra.mxu0 0.0
      %4768 = vmatprep.subr.mxu0 0.0
      %4769 = vmatpush1.msra.mxu0 0.0
      %4770 = vmatprep.subr.mxu0 0.0
      %4771 = vmatpush1.msra.mxu0 0.0
      %4772 = vmatprep.subr.mxu0 0.0
      %4773 = vmatpush1.msra.mxu0 0.0
      %4774 = vmatprep.subr.mxu0 0.0
      %4775 = vmatpush1.msra.mxu0 0.0
      %4776 = vmatprep.mubr.f32.mxu0 0.0
      %4777 = vmatmul.mubr.f32.gmra.mrb[0].mxu0 %v2817
      %v4778 = vpop.f32.mrb[0].mxu0
      %v4779 = vadd.f32 0.0, %v4778
      %v4780 = vpop.f32.mrb[0].mxu0
      %4781 = vmatprep.mubr.f32.mxu0 0.0
      %4782 = vmatmul.mubr.f32.gmra.mrb[0].mxu0 %v2820
      %v4783 = vpop.f32.mrb[0].mxu0
      %v4784 = vadd.f32 0.0, %v4783
      %v4785 = vpop.f32.mrb[0].mxu0
      %4786 = vdwg.mxu0
      %v4788 = vsel %vm823, %v4779, 0
      %v4791 = vsel %vm823, %v4784, 0
      %4793 = vmatprep.subr.mxu0 0.0
      %4794 = vmatpush1.msra.mxu0 %v2458
      %4795 = vmatprep.subr.mxu0 0.0
      %4796 = vmatpush1.msra.mxu0 0.0
      %4797 = vmatprep.subr.mxu0 0.0
      %4798 = vmatpush1.msra.mxu0 0.0
      %4799 = vmatprep.subr.mxu0 0.0
      %4800 = vmatpush1.msra.mxu0 0.0
      %4801 = vmatprep.subr.mxu0 0.0
      %4802 = vmatpush1.msra.mxu0 0.0
      %4803 = vmatprep.subr.mxu0 0.0
      %4804 = vmatpush1.msra.mxu0 0.0
      %4805 = vmatprep.subr.mxu0 0.0
      %4806 = vmatpush1.msra.mxu0 0.0
      %4807 = vmatprep.subr.mxu0 0.0
      %4808 = vmatpush1.msra.mxu0 0.0
      %4809 = vmatprep.subr.mxu0 0.0
      %4810 = vmatpush1.msra.mxu0 0.0
      %4811 = vmatprep.subr.mxu0 0.0
      %4812 = vmatpush1.msra.mxu0 0.0
      %4813 = vmatprep.subr.mxu0 0.0
      %4814 = vmatpush1.msra.mxu0 0.0
      %4815 = vmatprep.subr.mxu0 0.0
      %4816 = vmatpush1.msra.mxu0 0.0
      %4817 = vmatprep.subr.mxu0 0.0
      %4818 = vmatpush1.msra.mxu0 0.0
      %4819 = vmatprep.subr.mxu0 0.0
      %4820 = vmatpush1.msra.mxu0 0.0
      %4821 = vmatprep.subr.mxu0 0.0
      %4822 = vmatpush1.msra.mxu0 0.0
      %4823 = vmatprep.subr.mxu0 0.0
      %4824 = vmatpush1.msra.mxu0 0.0
      %4825 = vmatprep.subr.mxu0 0.0
      %4826 = vmatpush1.msra.mxu0 0.0
      %4827 = vmatprep.subr.mxu0 0.0
      %4828 = vmatpush1.msra.mxu0 0.0
      %4829 = vmatprep.subr.mxu0 0.0
      %4830 = vmatpush1.msra.mxu0 0.0
      %4831 = vmatprep.subr.mxu0 0.0
      %4832 = vmatpush1.msra.mxu0 0.0
      %4833 = vmatprep.subr.mxu0 0.0
      %4834 = vmatpush1.msra.mxu0 0.0
      %4835 = vmatprep.subr.mxu0 0.0
      %4836 = vmatpush1.msra.mxu0 0.0
      %4837 = vmatprep.subr.mxu0 0.0
      %4838 = vmatpush1.msra.mxu0 0.0
      %4839 = vmatprep.subr.mxu0 0.0
      %4840 = vmatpush1.msra.mxu0 0.0
      %4841 = vmatprep.subr.mxu0 0.0
      %4842 = vmatpush1.msra.mxu0 0.0
      %4843 = vmatprep.subr.mxu0 0.0
      %4844 = vmatpush1.msra.mxu0 0.0
      %4845 = vmatprep.subr.mxu0 0.0
      %4846 = vmatpush1.msra.mxu0 0.0
      %4847 = vmatprep.subr.mxu0 0.0
      %4848 = vmatpush1.msra.mxu0 0.0
      %4849 = vmatprep.subr.mxu0 0.0
      %4850 = vmatpush1.msra.mxu0 0.0
      %4851 = vmatprep.subr.mxu0 0.0
      %4852 = vmatpush1.msra.mxu0 0.0
      %4853 = vmatprep.subr.mxu0 0.0
      %4854 = vmatpush1.msra.mxu0 0.0
      %4855 = vmatprep.subr.mxu0 0.0
      %4856 = vmatpush1.msra.mxu0 0.0
      %4857 = vmatprep.mubr.f32.mxu0 0.0
      %4858 = vmatmul.mubr.f32.gmra.mrb[0].mxu0 %v4788
      %v4859 = vpop.f32.mrb[0].mxu0
      %v4860 = vadd.f32 0.0, %v4859
      %v4861 = vpop.f32.mrb[0].mxu0
      %4862 = vmatprep.mubr.f32.mxu0 0.0
      %4863 = vmatmul.mubr.f32.gmra.mrb[0].mxu0 %v4791
      %v4864 = vpop.f32.mrb[0].mxu0
      %v4865 = vadd.f32 0.0, %v4864
      %v4866 = vpop.f32.mrb[0].mxu0
      %4867 = vdwg.mxu0
      %v4868 = vadd.f32 %v4704, %v4860
      %v4869 = vadd.f32 %v4709, %v4865
      %4870 = vmatprep.subr.mxu0 0.0
      %4871 = vmatpush1.msra.mxu0 %v2418
      %4872 = vmatprep.subr.mxu0 0.0
      %4873 = vmatpush1.msra.mxu0 %v2423
      %4874 = vmatprep.subr.mxu0 0.0
      %4875 = vmatpush1.msra.mxu0 %v2428
      %4876 = vmatprep.subr.mxu0 0.0
      %4877 = vmatpush1.msra.mxu0 %v2433
      %4878 = vmatprep.subr.mxu0 0.0
      %4879 = vmatpush1.msra.mxu0 %v2438
      %4880 = vmatprep.subr.mxu0 0.0
      %4881 = vmatpush1.msra.mxu0 %v2443
      %4882 = vmatprep.subr.mxu0 0.0
      %4883 = vmatpush1.msra.mxu0 %v2448
      %4884 = vmatprep.subr.mxu0 0.0
      %4885 = vmatpush1.msra.mxu0 %v2453
      %4886 = vmatprep.subr.mxu0 0.0
      %4887 = vmatpush1.msra.mxu0 0.0
      %4888 = vmatprep.subr.mxu0 0.0
      %4889 = vmatpush1.msra.mxu0 0.0
      %4890 = vmatprep.subr.mxu0 0.0
      %4891 = vmatpush1.msra.mxu0 0.0
      %4892 = vmatprep.subr.mxu0 0.0
      %4893 = vmatpush1.msra.mxu0 0.0
      %4894 = vmatprep.subr.mxu0 0.0
      %4895 = vmatpush1.msra.mxu0 0.0
      %4896 = vmatprep.subr.mxu0 0.0
      %4897 = vmatpush1.msra.mxu0 0.0
      %4898 = vmatprep.subr.mxu0 0.0
      %4899 = vmatpush1.msra.mxu0 0.0
      %4900 = vmatprep.subr.mxu0 0.0
      %4901 = vmatpush1.msra.mxu0 0.0
      %4902 = vmatprep.subr.mxu0 0.0
      %4903 = vmatpush1.msra.mxu0 0.0
      %4904 = vmatprep.subr.mxu0 0.0
      %4905 = vmatpush1.msra.mxu0 0.0
      %4906 = vmatprep.subr.mxu0 0.0
      %4907 = vmatpush1.msra.mxu0 0.0
      %4908 = vmatprep.subr.mxu0 0.0
      %4909 = vmatpush1.msra.mxu0 0.0
      %4910 = vmatprep.subr.mxu0 0.0
      %4911 = vmatpush1.msra.mxu0 0.0
      %4912 = vmatprep.subr.mxu0 0.0
      %4913 = vmatpush1.msra.mxu0 0.0
      %4914 = vmatprep.subr.mxu0 0.0
      %4915 = vmatpush1.msra.mxu0 0.0
      %4916 = vmatprep.subr.mxu0 0.0
      %4917 = vmatpush1.msra.mxu0 0.0
      %4918 = vmatprep.subr.mxu0 0.0
      %4919 = vmatpush1.msra.mxu0 0.0
      %4920 = vmatprep.subr.mxu0 0.0
      %4921 = vmatpush1.msra.mxu0 0.0
      %4922 = vmatprep.subr.mxu0 0.0
      %4923 = vmatpush1.msra.mxu0 0.0
      %4924 = vmatprep.subr.mxu0 0.0
      %4925 = vmatpush1.msra.mxu0 0.0
      %4926 = vmatprep.subr.mxu0 0.0
      %4927 = vmatpush1.msra.mxu0 0.0
      %4928 = vmatprep.subr.mxu0 0.0
      %4929 = vmatpush1.msra.mxu0 0.0
      %4930 = vmatprep.subr.mxu0 0.0
      %4931 = vmatpush1.msra.mxu0 0.0
      %4932 = vmatprep.subr.mxu0 0.0
      %4933 = vmatpush1.msra.mxu0 0.0
      %4934 = vmatprep.mubr.f32.mxu0 0.0
      %4935 = vmatmul.mubr.f32.gmra.mrb[0].mxu0 %v2981
      %v4936 = vpop.f32.mrb[0].mxu0
      %v4937 = vadd.f32 0.0, %v4936
      %v4938 = vpop.f32.mrb[0].mxu0
      %4939 = vmatprep.mubr.f32.mxu0 0.0
      %4940 = vmatmul.mubr.f32.gmra.mrb[0].mxu0 %v2984
      %v4941 = vpop.f32.mrb[0].mxu0
      %v4942 = vadd.f32 0.0, %v4941
      %v4943 = vpop.f32.mrb[0].mxu0
      %4944 = vdwg.mxu0
      %v4946 = vsel %vm823, %v4937, 0
      %v4949 = vsel %vm823, %v4942, 0
      %4951 = vmatprep.subr.mxu0 0.0
      %4952 = vmatpush1.msra.mxu0 %v2459
      %4953 = vmatprep.subr.mxu0 0.0
      %4954 = vmatpush1.msra.mxu0 0.0
      %4955 = vmatprep.subr.mxu0 0.0
      %4956 = vmatpush1.msra.mxu0 0.0
      %4957 = vmatprep.subr.mxu0 0.0
      %4958 = vmatpush1.msra.mxu0 0.0
      %4959 = vmatprep.subr.mxu0 0.0
      %4960 = vmatpush1.msra.mxu0 0.0
      %4961 = vmatprep.subr.mxu0 0.0
      %4962 = vmatpush1.msra.mxu0 0.0
      %4963 = vmatprep.subr.mxu0 0.0
      %4964 = vmatpush1.msra.mxu0 0.0
      %4965 = vmatprep.subr.mxu0 0.0
      %4966 = vmatpush1.msra.mxu0 0.0
      %4967 = vmatprep.subr.mxu0 0.0
      %4968 = vmatpush1.msra.mxu0 0.0
      %4969 = vmatprep.subr.mxu0 0.0
      %4970 = vmatpush1.msra.mxu0 0.0
      %4971 = vmatprep.subr.mxu0 0.0
      %4972 = vmatpush1.msra.mxu0 0.0
      %4973 = vmatprep.subr.mxu0 0.0
      %4974 = vmatpush1.msra.mxu0 0.0
      %4975 = vmatprep.subr.mxu0 0.0
      %4976 = vmatpush1.msra.mxu0 0.0
      %4977 = vmatprep.subr.mxu0 0.0
      %4978 = vmatpush1.msra.mxu0 0.0
      %4979 = vmatprep.subr.mxu0 0.0
      %4980 = vmatpush1.msra.mxu0 0.0
      %4981 = vmatprep.subr.mxu0 0.0
      %4982 = vmatpush1.msra.mxu0 0.0
      %4983 = vmatprep.subr.mxu0 0.0
      %4984 = vmatpush1.msra.mxu0 0.0
      %4985 = vmatprep.subr.mxu0 0.0
      %4986 = vmatpush1.msra.mxu0 0.0
      %4987 = vmatprep.subr.mxu0 0.0
      %4988 = vmatpush1.msra.mxu0 0.0
      %4989 = vmatprep.subr.mxu0 0.0
      %4990 = vmatpush1.msra.mxu0 0.0
      %4991 = vmatprep.subr.mxu0 0.0
      %4992 = vmatpush1.msra.mxu0 0.0
      %4993 = vmatprep.subr.mxu0 0.0
      %4994 = vmatpush1.msra.mxu0 0.0
      %4995 = vmatprep.subr.mxu0 0.0
      %4996 = vmatpush1.msra.mxu0 0.0
      %4997 = vmatprep.subr.mxu0 0.0
      %4998 = vmatpush1.msra.mxu0 0.0
      %4999 = vmatprep.subr.mxu0 0.0
      %5000 = vmatpush1.msra.mxu0 0.0
      %5001 = vmatprep.subr.mxu0 0.0
      %5002 = vmatpush1.msra.mxu0 0.0
      %5003 = vmatprep.subr.mxu0 0.0
      %5004 = vmatpush1.msra.mxu0 0.0
      %5005 = vmatprep.subr.mxu0 0.0
      %5006 = vmatpush1.msra.mxu0 0.0
      %5007 = vmatprep.subr.mxu0 0.0
      %5008 = vmatpush1.msra.mxu0 0.0
      %5009 = vmatprep.subr.mxu0 0.0
      %5010 = vmatpush1.msra.mxu0 0.0
      %5011 = vmatprep.subr.mxu0 0.0
      %5012 = vmatpush1.msra.mxu0 0.0
      %5013 = vmatprep.subr.mxu0 0.0
      %5014 = vmatpush1.msra.mxu0 0.0
      %5015 = vmatprep.mubr.f32.mxu0 0.0
      %5016 = vmatmul.mubr.f32.gmra.mrb[0].mxu0 %v4946
      %v5017 = vpop.f32.mrb[0].mxu0
      %v5018 = vadd.f32 0.0, %v5017
      %v5019 = vpop.f32.mrb[0].mxu0
      %5020 = vmatprep.mubr.f32.mxu0 0.0
      %5021 = vmatmul.mubr.f32.gmra.mrb[0].mxu0 %v4949
      %v5022 = vpop.f32.mrb[0].mxu0
      %v5023 = vadd.f32 0.0, %v5022
      %v5024 = vpop.f32.mrb[0].mxu0
      %5025 = vdwg.mxu0
      %v5026 = vadd.f32 %v4868, %v5018
      %v5027 = vadd.f32 %v4869, %v5023
      %v5028 = vsel %vm526, %v3142, 0.0
      %5029 = vadd.xlane.f32.xlu0 %v5028
      %v5030 = vpop.xlane.xlu0 %5029
      %v5031 = vsel %vm526, %v3143, 0.0
      %5032 = vadd.xlane.f32.xlu0 %v5031
      %v5033 = vpop.xlane.xlu0 %5032
      %v5034 = vsel %vm526, %v3770, 0.0
      %5035 = vadd.xlane.f32.xlu0 %v5034
      %v5036 = vpop.xlane.xlu0 %5035
      %v5037 = vsel %vm526, %v3771, 0.0
      %5038 = vadd.xlane.f32.xlu0 %v5037
      %v5039 = vpop.xlane.xlu0 %5038
      %v5040 = vsel %vm526, %v4398, 0.0
      %5041 = vadd.xlane.f32.xlu0 %v5040
      %v5042 = vpop.xlane.xlu0 %5041
      %v5043 = vsel %vm526, %v4399, 0.0
      %5044 = vadd.xlane.f32.xlu0 %v5043
      %v5045 = vpop.xlane.xlu0 %5044
      %v5046 = vsel %vm526, %v5026, 0.0
      %5047 = vadd.xlane.f32.xlu0 %v5046
      %v5048 = vpop.xlane.xlu0 %5047
      %v5049 = vsel %vm526, %v5027, 0.0
      %5050 = vadd.xlane.f32.xlu0 %v5049
      %v5051 = vpop.xlane.xlu0 %5050
      %v5052 = vrcp.pop 32.0
      %v5053 = vmul.f32 %v5030, %v5052
      %v5054 = vmul.f32 %v5033, %v5052
      %v5055 = vmul.f32 %v5036, %v5052
      %v5056 = vmul.f32 %v5039, %v5052
      %v5057 = vmul.f32 %v5042, %v5052
      %v5058 = vmul.f32 %v5045, %v5052
      %v5059 = vmul.f32 %v5048, %v5052
      %v5060 = vmul.f32 %v5051, %v5052
      %v5061 = vsub.f32 %v3142, %v5053
      %v5062 = vsub.f32 %v3143, %v5054
      %v5063 = vsub.f32 %v3770, %v5055
      %v5064 = vsub.f32 %v3771, %v5056
      %v5065 = vsub.f32 %v4398, %v5057
      %v5066 = vsub.f32 %v4399, %v5058
      %v5067 = vsub.f32 %v5026, %v5059
      %v5068 = vsub.f32 %v5027, %v5060
      %v5069 = vmul.f32 %v5061, %v5061
      %v5070 = vmul.f32 %v5062, %v5062
      %v5071 = vmul.f32 %v5063, %v5063
      %v5072 = vmul.f32 %v5064, %v5064
      %v5073 = vmul.f32 %v5065, %v5065
      %v5074 = vmul.f32 %v5066, %v5066
      %v5075 = vmul.f32 %v5067, %v5067
      %v5076 = vmul.f32 %v5068, %v5068
      %v5077 = vsel %vm526, %v5069, 0.0
      %5078 = vadd.xlane.f32.xlu0 %v5077
      %v5079 = vpop.xlane.xlu0 %5078
      %v5080 = vsel %vm526, %v5070, 0.0
      %5081 = vadd.xlane.f32.xlu0 %v5080
      %v5082 = vpop.xlane.xlu0 %5081
      %v5083 = vsel %vm526, %v5071, 0.0
      %5084 = vadd.xlane.f32.xlu0 %v5083
      %v5085 = vpop.xlane.xlu0 %5084
      %v5086 = vsel %vm526, %v5072, 0.0
      %5087 = vadd.xlane.f32.xlu0 %v5086
      %v5088 = vpop.xlane.xlu0 %5087
      %v5089 = vsel %vm526, %v5073, 0.0
      %5090 = vadd.xlane.f32.xlu0 %v5089
      %v5091 = vpop.xlane.xlu0 %5090
      %v5092 = vsel %vm526, %v5074, 0.0
      %5093 = vadd.xlane.f32.xlu0 %v5092
      %v5094 = vpop.xlane.xlu0 %5093
      %v5095 = vsel %vm526, %v5075, 0.0
      %5096 = vadd.xlane.f32.xlu0 %v5095
      %v5097 = vpop.xlane.xlu0 %5096
      %v5098 = vsel %vm526, %v5076, 0.0
      %5099 = vadd.xlane.f32.xlu0 %v5098
      %v5100 = vpop.xlane.xlu0 %5099
      %v5101 = vmul.f32 %v5079, %v5052
      %v5102 = vmul.f32 %v5082, %v5052
      %v5103 = vmul.f32 %v5085, %v5052
      %v5104 = vmul.f32 %v5088, %v5052
      %v5105 = vmul.f32 %v5091, %v5052
      %v5106 = vmul.f32 %v5094, %v5052
      %v5107 = vmul.f32 %v5097, %v5052
      %v5108 = vmul.f32 %v5100, %v5052
      %v5109 = vadd.f32 %v5101, 1e-05
      %v5110 = vadd.f32 %v5102, 1e-05
      %v5111 = vadd.f32 %v5103, 1e-05
      %v5112 = vadd.f32 %v5104, 1e-05
      %v5113 = vadd.f32 %v5105, 1e-05
      %v5114 = vadd.f32 %v5106, 1e-05
      %v5115 = vadd.f32 %v5107, 1e-05
      %v5116 = vadd.f32 %v5108, 1e-05
      %v5117 = vrsqrt.pop %v5109
      %v5118 = vrsqrt.pop %v5110
      %v5119 = vrsqrt.pop %v5111
      %v5120 = vrsqrt.pop %v5112
      %v5121 = vrsqrt.pop %v5113
      %v5122 = vrsqrt.pop %v5114
      %v5123 = vrsqrt.pop %v5115
      %v5124 = vrsqrt.pop %v5116
      %v5125 = vmul.f32 %v5061, %v5117
      %v5126 = vmul.f32 %v5062, %v5118
      %v5127 = vmul.f32 %v5063, %v5119
      %v5128 = vmul.f32 %v5064, %v5120
      %v5129 = vmul.f32 %v5065, %v5121
      %v5130 = vmul.f32 %v5066, %v5122
      %v5131 = vmul.f32 %v5067, %v5123
      %v5132 = vmul.f32 %v5068, %v5124
      %s5133 = scalar_lea.vmem %s7, 3
      %v5134 = vld [vmem:[%s5133] sm:$0x1]
      %v5136 = vlaneseq
      %v5137 = vshrl.u32 %v5136, 7
      %v5138 = vsub.s32 0, %v5137
      %v5139 = vrot.slane %v5134, %v5138
      %v5141 = vmul.f32 %v5125, %v5139
      %v5142 = vmul.f32 %v5126, %v5139
      %v5143 = vmul.f32 %v5127, %v5139
      %v5144 = vmul.f32 %v5128, %v5139
      %v5145 = vmul.f32 %v5129, %v5139
      %v5146 = vmul.f32 %v5130, %v5139
      %v5147 = vmul.f32 %v5131, %v5139
      %v5148 = vmul.f32 %v5132, %v5139
      %s5149 = scalar_lea.vmem %s7, 4
      %v5150 = vld [vmem:[%s5149] sm:$0x1]
      %v5152 = vlaneseq
      %v5153 = vshrl.u32 %v5152, 7
      %v5154 = vsub.s32 0, %v5153
      %v5155 = vrot.slane %v5150, %v5154
      %v5157 = vadd.f32 %v5141, %v5155
      %v5158 = vadd.f32 %v5142, %v5155
      %v5159 = vadd.f32 %v5143, %v5155
      %v5160 = vadd.f32 %v5144, %v5155
      %v5161 = vadd.f32 %v5145, %v5155
      %v5162 = vadd.f32 %v5146, %v5155
      %v5163 = vadd.f32 %v5147, %v5155
      %v5164 = vadd.f32 %v5148, %v5155
      %5173 = vrot.lane.b32.xlu0 %v5157, 32
      %v5174 = vpop.permute.xlu0 %5173
      %5175 = vrot.lane.b32.xlu0 %v5158, 32
      %v5176 = vpop.permute.xlu0 %5175
      %5177 = vrot.lane.b32.xlu0 %v5159, 32
      %v5178 = vpop.permute.xlu0 %5177
      %5179 = vrot.lane.b32.xlu0 %v5160, 32
      %v5180 = vpop.permute.xlu0 %5179
      %5181 = vrot.lane.b32.xlu0 %v5161, 32
      %v5182 = vpop.permute.xlu0 %5181
      %5183 = vrot.lane.b32.xlu0 %v5162, 32
      %v5184 = vpop.permute.xlu0 %5183
      %5185 = vrot.lane.b32.xlu0 %v5163, 32
      %v5186 = vpop.permute.xlu0 %5185
      %5187 = vrot.lane.b32.xlu0 %v5164, 32
      %v5188 = vpop.permute.xlu0 %5187
      %v5197 = vsel %vm526, %v326, %v5174
      %v5198 = vsel %vm526, %v327, %v5176
      %v5199 = vsel %vm526, %v328, %v5178
      %v5200 = vsel %vm526, %v329, %v5180
      %v5201 = vsel %vm526, %v330, %v5182
      %v5202 = vsel %vm526, %v331, %v5184
      %v5203 = vsel %vm526, %v332, %v5186
      %v5204 = vsel %vm526, %v333, %v5188
      %v5205 = vld [vmem:[%s5] sm:$0xff]
      %v5206 = vld [vmem:[%s5 + $0x8] sm:$0xff]
      %v5207 = vld [vmem:[%s5 + $0x10] sm:$0xff]
      %v5208 = vld [vmem:[%s5 + $0x18] sm:$0xff]
      %v5209 = vld [vmem:[%s5 + $0x20] sm:$0xff]
      %v5210 = vld [vmem:[%s5 + $0x28] sm:$0xff]
      %v5211 = vld [vmem:[%s5 + $0x30] sm:$0xff]
      %v5212 = vld [vmem:[%s5 + $0x38] sm:$0xff]
      %v5214 = vsel %vm373, %v5197, 0
      %v5217 = vsel %vm373, %v5198, 0
      %v5220 = vsel %vm373, %v5199, 0
      %v5223 = vsel %vm373, %v5200, 0
      %v5226 = vsel %vm373, %v5201, 0
      %v5229 = vsel %vm373, %v5202, 0
      %v5232 = vsel %vm373, %v5203, 0
      %v5235 = vsel %vm373, %v5204, 0
      %5237 = vmatprep.subr.mxu0 0.0
      %5238 = vmatpush1.msra.mxu0 %v5205
      %5239 = vmatprep.subr.mxu0 0.0
      %5240 = vmatpush1.msra.mxu0 %v5206
      %5241 = vmatprep.subr.mxu0 0.0
      %5242 = vmatpush1.msra.mxu0 %v5207
      %5243 = vmatprep.subr.mxu0 0.0
      %5244 = vmatpush1.msra.mxu0 %v5208
      %5245 = vmatprep.subr.mxu0 0.0
      %5246 = vmatpush1.msra.mxu0 %v5209
      %5247 = vmatprep.subr.mxu0 0.0
      %5248 = vmatpush1.msra.mxu0 %v5210
      %5249 = vmatprep.subr.mxu0 0.0
      %5250 = vmatpush1.msra.mxu0 %v5211
      %5251 = vmatprep.subr.mxu0 0.0
      %5252 = vmatpush1.msra.mxu0 %v5212
      %5253 = vmatprep.subr.mxu0 0.0
      %5254 = vmatpush1.msra.mxu0 0.0
      %5255 = vmatprep.subr.mxu0 0.0
      %5256 = vmatpush1.msra.mxu0 0.0
      %5257 = vmatprep.subr.mxu0 0.0
      %5258 = vmatpush1.msra.mxu0 0.0
      %5259 = vmatprep.subr.mxu0 0.0
      %5260 = vmatpush1.msra.mxu0 0.0
      %5261 = vmatprep.subr.mxu0 0.0
      %5262 = vmatpush1.msra.mxu0 0.0
      %5263 = vmatprep.subr.mxu0 0.0
      %5264 = vmatpush1.msra.mxu0 0.0
      %5265 = vmatprep.subr.mxu0 0.0
      %5266 = vmatpush1.msra.mxu0 0.0
      %5267 = vmatprep.subr.mxu0 0.0
      %5268 = vmatpush1.msra.mxu0 0.0
      %5269 = vmatprep.subr.mxu0 0.0
      %5270 = vmatpush1.msra.mxu0 0.0
      %5271 = vmatprep.subr.mxu0 0.0
      %5272 = vmatpush1.msra.mxu0 0.0
      %5273 = vmatprep.subr.mxu0 0.0
      %5274 = vmatpush1.msra.mxu0 0.0
      %5275 = vmatprep.subr.mxu0 0.0
      %5276 = vmatpush1.msra.mxu0 0.0
      %5277 = vmatprep.subr.mxu0 0.0
      %5278 = vmatpush1.msra.mxu0 0.0
      %5279 = vmatprep.subr.mxu0 0.0
      %5280 = vmatpush1.msra.mxu0 0.0
      %5281 = vmatprep.subr.mxu0 0.0
      %5282 = vmatpush1.msra.mxu0 0.0
      %5283 = vmatprep.subr.mxu0 0.0
      %5284 = vmatpush1.msra.mxu0 0.0
      %5285 = vmatprep.subr.mxu0 0.0
      %5286 = vmatpush1.msra.mxu0 0.0
      %5287 = vmatprep.subr.mxu0 0.0
      %5288 = vmatpush1.msra.mxu0 0.0
      %5289 = vmatprep.subr.mxu0 0.0
      %5290 = vmatpush1.msra.mxu0 0.0
      %5291 = vmatprep.subr.mxu0 0.0
      %5292 = vmatpush1.msra.mxu0 0.0
      %5293 = vmatprep.subr.mxu0 0.0
      %5294 = vmatpush1.msra.mxu0 0.0
      %5295 = vmatprep.subr.mxu0 0.0
      %5296 = vmatpush1.msra.mxu0 0.0
      %5297 = vmatprep.subr.mxu0 0.0
      %5298 = vmatpush1.msra.mxu0 0.0
      %5299 = vmatprep.subr.mxu0 0.0
      %5300 = vmatpush1.msra.mxu0 0.0
      %5301 = vmatprep.mubr.f32.mxu0 0.0
      %5302 = vmatmul.mubr.f32.gmra.mrb[0].mxu0 %v5214
      %v5303 = vpop.f32.mrb[0].mxu0
      %v5304 = vadd.f32 0.0, %v5303
      %v5305 = vpop.f32.mrb[0].mxu0
      %5306 = vmatprep.mubr.f32.mxu0 0.0
      %5307 = vmatmul.mubr.f32.gmra.mrb[0].mxu0 %v5217
      %v5308 = vpop.f32.mrb[0].mxu0
      %v5309 = vadd.f32 0.0, %v5308
      %v5310 = vpop.f32.mrb[0].mxu0
      %5311 = vmatprep.mubr.f32.mxu0 0.0
      %5312 = vmatmul.mubr.f32.gmra.mrb[0].mxu0 %v5220
      %v5313 = vpop.f32.mrb[0].mxu0
      %v5314 = vadd.f32 0.0, %v5313
      %v5315 = vpop.f32.mrb[0].mxu0
      %5316 = vmatprep.mubr.f32.mxu0 0.0
      %5317 = vmatmul.mubr.f32.gmra.mrb[0].mxu0 %v5223
      %v5318 = vpop.f32.mrb[0].mxu0
      %v5319 = vadd.f32 0.0, %v5318
      %v5320 = vpop.f32.mrb[0].mxu0
      %5321 = vmatprep.mubr.f32.mxu0 0.0
      %5322 = vmatmul.mubr.f32.gmra.mrb[0].mxu0 %v5226
      %v5323 = vpop.f32.mrb[0].mxu0
      %v5324 = vadd.f32 0.0, %v5323
      %v5325 = vpop.f32.mrb[0].mxu0
      %5326 = vmatprep.mubr.f32.mxu0 0.0
      %5327 = vmatmul.mubr.f32.gmra.mrb[0].mxu0 %v5229
      %v5328 = vpop.f32.mrb[0].mxu0
      %v5329 = vadd.f32 0.0, %v5328
      %v5330 = vpop.f32.mrb[0].mxu0
      %5331 = vmatprep.mubr.f32.mxu0 0.0
      %5332 = vmatmul.mubr.f32.gmra.mrb[0].mxu0 %v5232
      %v5333 = vpop.f32.mrb[0].mxu0
      %v5334 = vadd.f32 0.0, %v5333
      %v5335 = vpop.f32.mrb[0].mxu0
      %5336 = vmatprep.mubr.f32.mxu0 0.0
      %5337 = vmatmul.mubr.f32.gmra.mrb[0].mxu0 %v5235
      %v5338 = vpop.f32.mrb[0].mxu0
      %v5339 = vadd.f32 0.0, %v5338
      %v5340 = vpop.f32.mrb[0].mxu0
      %5341 = vdwg.mxu0
      %v5342 = vmax.f32 %v5304, 0.0
      %v5343 = vmax.f32 %v5309, 0.0
      %v5344 = vmax.f32 %v5314, 0.0
      %v5345 = vmax.f32 %v5319, 0.0
      %v5346 = vmax.f32 %v5324, 0.0
      %v5347 = vmax.f32 %v5329, 0.0
      %v5348 = vmax.f32 %v5334, 0.0
      %v5349 = vmax.f32 %v5339, 0.0
      %v5350 = vld [vmem:[%s6] sm:$0xff]
      %v5351 = vld [vmem:[%s6 + $0x8] sm:$0xff]
      %v5352 = vld [vmem:[%s6 + $0x10] sm:$0xff]
      %v5353 = vld [vmem:[%s6 + $0x18] sm:$0xff]
      %v5354 = vld [vmem:[%s6 + $0x20] sm:$0xff]
      %v5355 = vld [vmem:[%s6 + $0x28] sm:$0xff]
      %v5356 = vld [vmem:[%s6 + $0x30] sm:$0xff]
      %v5357 = vld [vmem:[%s6 + $0x38] sm:$0xff]
      %v5359 = vsel %vm373, %v5342, 0
      %v5362 = vsel %vm373, %v5343, 0
      %v5365 = vsel %vm373, %v5344, 0
      %v5368 = vsel %vm373, %v5345, 0
      %v5371 = vsel %vm373, %v5346, 0
      %v5374 = vsel %vm373, %v5347, 0
      %v5377 = vsel %vm373, %v5348, 0
      %v5380 = vsel %vm373, %v5349, 0
      %5382 = vmatprep.subr.mxu0 0.0
      %5383 = vmatpush1.msra.mxu0 %v5350
      %5384 = vmatprep.subr.mxu0 0.0
      %5385 = vmatpush1.msra.mxu0 %v5351
      %5386 = vmatprep.subr.mxu0 0.0
      %5387 = vmatpush1.msra.mxu0 %v5352
      %5388 = vmatprep.subr.mxu0 0.0
      %5389 = vmatpush1.msra.mxu0 %v5353
      %5390 = vmatprep.subr.mxu0 0.0
      %5391 = vmatpush1.msra.mxu0 %v5354
      %5392 = vmatprep.subr.mxu0 0.0
      %5393 = vmatpush1.msra.mxu0 %v5355
      %5394 = vmatprep.subr.mxu0 0.0
      %5395 = vmatpush1.msra.mxu0 %v5356
      %5396 = vmatprep.subr.mxu0 0.0
      %5397 = vmatpush1.msra.mxu0 %v5357
      %5398 = vmatprep.subr.mxu0 0.0
      %5399 = vmatpush1.msra.mxu0 0.0
      %5400 = vmatprep.subr.mxu0 0.0
      %5401 = vmatpush1.msra.mxu0 0.0
      %5402 = vmatprep.subr.mxu0 0.0
      %5403 = vmatpush1.msra.mxu0 0.0
      %5404 = vmatprep.subr.mxu0 0.0
      %5405 = vmatpush1.msra.mxu0 0.0
      %5406 = vmatprep.subr.mxu0 0.0
      %5407 = vmatpush1.msra.mxu0 0.0
      %5408 = vmatprep.subr.mxu0 0.0
      %5409 = vmatpush1.msra.mxu0 0.0
      %5410 = vmatprep.subr.mxu0 0.0
      %5411 = vmatpush1.msra.mxu0 0.0
      %5412 = vmatprep.subr.mxu0 0.0
      %5413 = vmatpush1.msra.mxu0 0.0
      %5414 = vmatprep.subr.mxu0 0.0
      %5415 = vmatpush1.msra.mxu0 0.0
      %5416 = vmatprep.subr.mxu0 0.0
      %5417 = vmatpush1.msra.mxu0 0.0
      %5418 = vmatprep.subr.mxu0 0.0
      %5419 = vmatpush1.msra.mxu0 0.0
      %5420 = vmatprep.subr.mxu0 0.0
      %5421 = vmatpush1.msra.mxu0 0.0
      %5422 = vmatprep.subr.mxu0 0.0
      %5423 = vmatpush1.msra.mxu0 0.0
      %5424 = vmatprep.subr.mxu0 0.0
      %5425 = vmatpush1.msra.mxu0 0.0
      %5426 = vmatprep.subr.mxu0 0.0
      %5427 = vmatpush1.msra.mxu0 0.0
      %5428 = vmatprep.subr.mxu0 0.0
      %5429 = vmatpush1.msra.mxu0 0.0
      %5430 = vmatprep.subr.mxu0 0.0
      %5431 = vmatpush1.msra.mxu0 0.0
      %5432 = vmatprep.subr.mxu0 0.0
      %5433 = vmatpush1.msra.mxu0 0.0
      %5434 = vmatprep.subr.mxu0 0.0
      %5435 = vmatpush1.msra.mxu0 0.0
      %5436 = vmatprep.subr.mxu0 0.0
      %5437 = vmatpush1.msra.mxu0 0.0
      %5438 = vmatprep.subr.mxu0 0.0
      %5439 = vmatpush1.msra.mxu0 0.0
      %5440 = vmatprep.subr.mxu0 0.0
      %5441 = vmatpush1.msra.mxu0 0.0
      %5442 = vmatprep.subr.mxu0 0.0
      %5443 = vmatpush1.msra.mxu0 0.0
      %5444 = vmatprep.subr.mxu0 0.0
      %5445 = vmatpush1.msra.mxu0 0.0
      %5446 = vmatprep.mubr.f32.mxu0 0.0
      %5447 = vmatmul.mubr.f32.gmra.mrb[0].mxu0 %v5359
      %v5448 = vpop.f32.mrb[0].mxu0
      %v5449 = vadd.f32 0.0, %v5448
      %v5450 = vpop.f32.mrb[0].mxu0
      %5451 = vmatprep.mubr.f32.mxu0 0.0
      %5452 = vmatmul.mubr.f32.gmra.mrb[0].mxu0 %v5362
      %v5453 = vpop.f32.mrb[0].mxu0
      %v5454 = vadd.f32 0.0, %v5453
      %v5455 = vpop.f32.mrb[0].mxu0
      %5456 = vmatprep.mubr.f32.mxu0 0.0
      %5457 = vmatmul.mubr.f32.gmra.mrb[0].mxu0 %v5365
      %v5458 = vpop.f32.mrb[0].mxu0
      %v5459 = vadd.f32 0.0, %v5458
      %v5460 = vpop.f32.mrb[0].mxu0
      %5461 = vmatprep.mubr.f32.mxu0 0.0
      %5462 = vmatmul.mubr.f32.gmra.mrb[0].mxu0 %v5368
      %v5463 = vpop.f32.mrb[0].mxu0
      %v5464 = vadd.f32 0.0, %v5463
      %v5465 = vpop.f32.mrb[0].mxu0
      %5466 = vmatprep.mubr.f32.mxu0 0.0
      %5467 = vmatmul.mubr.f32.gmra.mrb[0].mxu0 %v5371
      %v5468 = vpop.f32.mrb[0].mxu0
      %v5469 = vadd.f32 0.0, %v5468
      %v5470 = vpop.f32.mrb[0].mxu0
      %5471 = vmatprep.mubr.f32.mxu0 0.0
      %5472 = vmatmul.mubr.f32.gmra.mrb[0].mxu0 %v5374
      %v5473 = vpop.f32.mrb[0].mxu0
      %v5474 = vadd.f32 0.0, %v5473
      %v5475 = vpop.f32.mrb[0].mxu0
      %5476 = vmatprep.mubr.f32.mxu0 0.0
      %5477 = vmatmul.mubr.f32.gmra.mrb[0].mxu0 %v5377
      %v5478 = vpop.f32.mrb[0].mxu0
      %v5479 = vadd.f32 0.0, %v5478
      %v5480 = vpop.f32.mrb[0].mxu0
      %5481 = vmatprep.mubr.f32.mxu0 0.0
      %5482 = vmatmul.mubr.f32.gmra.mrb[0].mxu0 %v5380
      %v5483 = vpop.f32.mrb[0].mxu0
      %v5484 = vadd.f32 0.0, %v5483
      %v5485 = vpop.f32.mrb[0].mxu0
      %5486 = vdwg.mxu0
      %v5487 = vsel %vm526, %v5449, 0.0
      %5488 = vadd.xlane.f32.xlu0 %v5487
      %v5489 = vpop.xlane.xlu0 %5488
      %v5490 = vsel %vm526, %v5454, 0.0
      %5491 = vadd.xlane.f32.xlu0 %v5490
      %v5492 = vpop.xlane.xlu0 %5491
      %v5493 = vsel %vm526, %v5459, 0.0
      %5494 = vadd.xlane.f32.xlu0 %v5493
      %v5495 = vpop.xlane.xlu0 %5494
      %v5496 = vsel %vm526, %v5464, 0.0
      %5497 = vadd.xlane.f32.xlu0 %v5496
      %v5498 = vpop.xlane.xlu0 %5497
      %v5499 = vsel %vm526, %v5469, 0.0
      %5500 = vadd.xlane.f32.xlu0 %v5499
      %v5501 = vpop.xlane.xlu0 %5500
      %v5502 = vsel %vm526, %v5474, 0.0
      %5503 = vadd.xlane.f32.xlu0 %v5502
      %v5504 = vpop.xlane.xlu0 %5503
      %v5505 = vsel %vm526, %v5479, 0.0
      %5506 = vadd.xlane.f32.xlu0 %v5505
      %v5507 = vpop.xlane.xlu0 %5506
      %v5508 = vsel %vm526, %v5484, 0.0
      %5509 = vadd.xlane.f32.xlu0 %v5508
      %v5510 = vpop.xlane.xlu0 %5509
      %v5511 = vmul.f32 %v5489, %v5052
      %v5512 = vmul.f32 %v5492, %v5052
      %v5513 = vmul.f32 %v5495, %v5052
      %v5514 = vmul.f32 %v5498, %v5052
      %v5515 = vmul.f32 %v5501, %v5052
      %v5516 = vmul.f32 %v5504, %v5052
      %v5517 = vmul.f32 %v5507, %v5052
      %v5518 = vmul.f32 %v5510, %v5052
      %v5519 = vsub.f32 %v5449, %v5511
      %v5520 = vsub.f32 %v5454, %v5512
      %v5521 = vsub.f32 %v5459, %v5513
      %v5522 = vsub.f32 %v5464, %v5514
      %v5523 = vsub.f32 %v5469, %v5515
      %v5524 = vsub.f32 %v5474, %v5516
      %v5525 = vsub.f32 %v5479, %v5517
      %v5526 = vsub.f32 %v5484, %v5518
      %v5527 = vmul.f32 %v5519, %v5519
      %v5528 = vmul.f32 %v5520, %v5520
      %v5529 = vmul.f32 %v5521, %v5521
      %v5530 = vmul.f32 %v5522, %v5522
      %v5531 = vmul.f32 %v5523, %v5523
      %v5532 = vmul.f32 %v5524, %v5524
      %v5533 = vmul.f32 %v5525, %v5525
      %v5534 = vmul.f32 %v5526, %v5526
      %v5535 = vsel %vm526, %v5527, 0.0
      %5536 = vadd.xlane.f32.xlu0 %v5535
      %v5537 = vpop.xlane.xlu0 %5536
      %v5538 = vsel %vm526, %v5528, 0.0
      %5539 = vadd.xlane.f32.xlu0 %v5538
      %v5540 = vpop.xlane.xlu0 %5539
      %v5541 = vsel %vm526, %v5529, 0.0
      %5542 = vadd.xlane.f32.xlu0 %v5541
      %v5543 = vpop.xlane.xlu0 %5542
      %v5544 = vsel %vm526, %v5530, 0.0
      %5545 = vadd.xlane.f32.xlu0 %v5544
      %v5546 = vpop.xlane.xlu0 %5545
      %v5547 = vsel %vm526, %v5531, 0.0
      %5548 = vadd.xlane.f32.xlu0 %v5547
      %v5549 = vpop.xlane.xlu0 %5548
      %v5550 = vsel %vm526, %v5532, 0.0
      %5551 = vadd.xlane.f32.xlu0 %v5550
      %v5552 = vpop.xlane.xlu0 %5551
      %v5553 = vsel %vm526, %v5533, 0.0
      %5554 = vadd.xlane.f32.xlu0 %v5553
      %v5555 = vpop.xlane.xlu0 %5554
      %v5556 = vsel %vm526, %v5534, 0.0
      %5557 = vadd.xlane.f32.xlu0 %v5556
      %v5558 = vpop.xlane.xlu0 %5557
      %v5559 = vmul.f32 %v5537, %v5052
      %v5560 = vmul.f32 %v5540, %v5052
      %v5561 = vmul.f32 %v5543, %v5052
      %v5562 = vmul.f32 %v5546, %v5052
      %v5563 = vmul.f32 %v5549, %v5052
      %v5564 = vmul.f32 %v5552, %v5052
      %v5565 = vmul.f32 %v5555, %v5052
      %v5566 = vmul.f32 %v5558, %v5052
      %v5567 = vadd.f32 %v5559, 1e-05
      %v5568 = vadd.f32 %v5560, 1e-05
      %v5569 = vadd.f32 %v5561, 1e-05
      %v5570 = vadd.f32 %v5562, 1e-05
      %v5571 = vadd.f32 %v5563, 1e-05
      %v5572 = vadd.f32 %v5564, 1e-05
      %v5573 = vadd.f32 %v5565, 1e-05
      %v5574 = vadd.f32 %v5566, 1e-05
      %v5575 = vrsqrt.pop %v5567
      %v5576 = vrsqrt.pop %v5568
      %v5577 = vrsqrt.pop %v5569
      %v5578 = vrsqrt.pop %v5570
      %v5579 = vrsqrt.pop %v5571
      %v5580 = vrsqrt.pop %v5572
      %v5581 = vrsqrt.pop %v5573
      %v5582 = vrsqrt.pop %v5574
      %v5583 = vmul.f32 %v5519, %v5575
      %v5584 = vmul.f32 %v5520, %v5576
      %v5585 = vmul.f32 %v5521, %v5577
      %v5586 = vmul.f32 %v5522, %v5578
      %v5587 = vmul.f32 %v5523, %v5579
      %v5588 = vmul.f32 %v5524, %v5580
      %v5589 = vmul.f32 %v5525, %v5581
      %v5590 = vmul.f32 %v5526, %v5582
      %s5591 = scalar_lea.vmem %s7, 5
      %v5592 = vld [vmem:[%s5591] sm:$0x1]
      %v5594 = vlaneseq
      %v5595 = vshrl.u32 %v5594, 7
      %v5596 = vsub.s32 0, %v5595
      %v5597 = vrot.slane %v5592, %v5596
      %v5599 = vmul.f32 %v5583, %v5597
      %v5600 = vmul.f32 %v5584, %v5597
      %v5601 = vmul.f32 %v5585, %v5597
      %v5602 = vmul.f32 %v5586, %v5597
      %v5603 = vmul.f32 %v5587, %v5597
      %v5604 = vmul.f32 %v5588, %v5597
      %v5605 = vmul.f32 %v5589, %v5597
      %v5606 = vmul.f32 %v5590, %v5597
      %s5607 = scalar_lea.vmem %s7, 6
      %v5608 = vld [vmem:[%s5607] sm:$0x1]
      %v5610 = vlaneseq
      %v5611 = vshrl.u32 %v5610, 7
      %v5612 = vsub.s32 0, %v5611
      %v5613 = vrot.slane %v5608, %v5612
      %v5615 = vadd.f32 %v5599, %v5613
      %v5616 = vadd.f32 %v5600, %v5613
      %v5617 = vadd.f32 %v5601, %v5613
      %v5618 = vadd.f32 %v5602, %v5613
      %v5619 = vadd.f32 %v5603, %v5613
      %v5620 = vadd.f32 %v5604, %v5613
      %v5621 = vadd.f32 %v5605, %v5613
      %v5622 = vadd.f32 %v5606, %v5613
      %v5623 = vadd.f32 %v326, %v5615
      %v5624 = vadd.f32 %v327, %v5616
      %v5625 = vadd.f32 %v328, %v5617
      %v5626 = vadd.f32 %v329, %v5618
      %v5627 = vadd.f32 %v330, %v5619
      %v5628 = vadd.f32 %v331, %v5620
      %v5629 = vadd.f32 %v332, %v5621
      %v5630 = vadd.f32 %v333, %v5622
      %5631 = vst.msk [vmem:[%s325] sm:$0xff] %vm526, %v5623
      %5632 = vst.msk [vmem:[%s325 + $0x8] sm:$0xff] %vm526, %v5624
      %5633 = vst.msk [vmem:[%s325 + $0x10] sm:$0xff] %vm526, %v5625
      %5634 = vst.msk [vmem:[%s325 + $0x18] sm:$0xff] %vm526, %v5626
      %5635 = vst.msk [vmem:[%s325 + $0x20] sm:$0xff] %vm526, %v5627
      %5636 = vst.msk [vmem:[%s325 + $0x28] sm:$0xff] %vm526, %v5628
      %5637 = vst.msk [vmem:[%s325 + $0x30] sm:$0xff] %vm526, %v5629
      %5638 = vst.msk [vmem:[%s325 + $0x38] sm:$0xff] %vm526, %v5630
      %p5639 = scmp.lt.s32.totalorder %s19, 1
      %s5640 = scalar_select %p5639, %s19, 1
      %s5641 = smul.addr %s5640, 8
      %s5642 = smul.addr %s5641, 8
      %s5643 = scalar_lea.vmem %s8, %s5642
      // Predicated region
      $region53: #{multihead_self_attention.1} parent=51 // pred_check
        %p5644 = pneg %p215
      $region54: #{multihead_self_attention.1} parent=51 // pred_check_branch
        %5646 = sbr.rel (%p5644) target = $region56
      $region55: #{multihead_self_attention.1} parent=51 // pred_region
        _
      $region56: #{multihead_self_attention.1} parent=51 // pred_fallthru
        _
    $region52: #{multihead_self_attention.1} parent=5 // pred_fallthru
      _
    %p5647 = scmp.le.s32.totalorder 2, %s14
    // Predicated region
    $region57: #{multihead_self_attention.1} parent=5 // pred_check
      %p5648 = pneg %p5647
    $region58: #{multihead_self_attention.1} parent=5 // pred_check_branch
      %5650 = sbr.rel (%p5648) target = $region60
    $region59: #{multihead_self_attention.1} parent=5 // pred_region
      %s5651 = ssub.s32 %s14, 2
      // Predicated region
      $region61: #{multihead_self_attention.1} parent=59 // pred_check
        %p5652 = pneg %p221
      $region62: #{multihead_self_attention.1} parent=59 // pred_check_branch
        %5654 = sbr.rel (%p5652) target = $region64
      $region63: #{multihead_self_attention.1} parent=59 // pred_region
        %p5655 = scmp.lt.s32.totalorder %s20, 1
        %s5656 = scalar_select %p5655, %s20, 1
        %s5657 = smul.addr %s5656, 8
        %s5658 = smul.addr %s5657, 8
        %s5659 = scalar_lea.vmem %s8, %s5658
      $region64: #{multihead_self_attention.1} parent=59 // pred_fallthru
        _
    $region60: #{multihead_self_attention.1} parent=5 // pred_fallthru
      _
  $region6: #{multihead_self_attention.1} parent=0 // loop_footer
    %s18 = sadd.s32 1, %s14
  $region7: #{multihead_self_attention.1} parent=0 // loop_footer_branch
    %13 = sbr.rel target = $region3
  $region8: #{multihead_self_attention.1} parent=0 // loop_exit
    _

</llo_original>
